<compile_context>
chip_gen: v7x
topology: tpu7x:2x2x1
jax: 0.10.0
libtpu: 0.0.40
codegen_flags: <defaults>
</compile_context>

<pallas_src>
import functools

import jax
import jax.numpy as jnp
from jax.experimental import pallas as pl
from jax.experimental.pallas import tpu as pltpu

# ----------------------------- static config ------------------------------
LAYER_DIMS = (3, 32, 32, 32, 32)   # layer_dims of the torch module
SKIP = (2,)                        # skip_connection
N_LIN = len(LAYER_DIMS) - 1
D0 = LAYER_DIMS[0]
TILE_N = 2048                      # points per grid step (sweep 2048-8192)


def _layer_in_dims():
    """(k_in, k_out) per linear, including skip concat (same logic as __init__)."""
    dims = []
    for li, (k_in, k_out) in enumerate(zip(LAYER_DIMS[:-1], LAYER_DIMS[1:])):
        if li in SKIP:
            k_in += LAYER_DIMS[0]
        dims.append((k_in, k_out))
    return dims


IN_OUT_DIMS = _layer_in_dims()
MAX_KIN = max(k_in for k_in, _ in IN_OUT_DIMS)                     # 35
MAX_KOUT = max(k_out + (1 if li == N_LIN - 1 else 0)               # 33 (sdf row fused)
               for li, (_, k_out) in enumerate(IN_OUT_DIMS))


# ------------------------------- kernel -----------------------------------
def mlp_sdf_kernel(x_ref, w_ref, b_ref, sdf_out_ref, feat_out_ref):
    # x_ref:        (D0, TILE_N)          raw input block (channels-major)
    # w_ref:        (N_LIN, MAX_KOUT, MAX_KIN)  packed, transposed, zero-padded
    # b_ref:        (N_LIN, MAX_KOUT, 1)
    # sdf_out_ref:  (1, TILE_N)           lane-dense
    # feat_out_ref: (K_LAST, TILE_N)      lane-dense
    x = x_ref[...].astype(jnp.float32)           # keep raw input for skips
    feat = x

    for li, (k_in, k_out) in enumerate(IN_OUT_DIMS):
        last = (li == N_LIN - 1)
        k_out_eff = k_out + (1 if last else 0)   # fused SDF row on the last layer

        w = w_ref[li][:k_out_eff, :k_in].astype(jnp.float32)   # (k_out_eff, k_in)
        b = b_ref[li][:k_out_eff, :].astype(jnp.float32)       # (k_out_eff, 1)

        if li in SKIP:
            # W @ cat([feat, x], 0)  ==  W[:, :k_prev] @ feat + W[:, k_prev:] @ x
            k_prev = k_in - D0
            pre = (jnp.dot(w[:, :k_prev], feat, preferred_element_type=jnp.float32)
                   + jnp.dot(w[:, k_prev:], x, preferred_element_type=jnp.float32))
        else:
            pre = jnp.dot(w, feat, preferred_element_type=jnp.float32)
        pre = pre + b                                           # bias bcast over lanes

        if last:
            # SDF head acts on the *input* of the last linear, no activation.
            sdf_out_ref[...] = pre[k_out:k_out_eff, :].astype(sdf_out_ref.dtype)
            pre = pre[:k_out, :]

        feat = jnp.maximum(pre, 0.0)             # activ = relu

    feat_out_ref[...] = feat.astype(feat_out_ref.dtype)


# --------------------------- parameter packing -----------------------------
def _pack_params(params):
    """Pack per-layer (W.T, b.T) into (N_LIN, MAX_KOUT, MAX_KIN) / (N_LIN, MAX_KOUT, 1).

    Last layer gets the SDF head fused in as an extra output row.
    """
    ws, bs = [], []
    for li, (k_in, k_out) in enumerate(IN_OUT_DIMS):
        wt = params[f"w{li}"].T                  # (k_out, k_in)
        bt = params[f"b{li}"].T                  # (k_out, 1)
        if li == N_LIN - 1:
            wt = jnp.concatenate([wt, params["w_sdf"].T], axis=0)   # (k_out+1, k_in)
            bt = jnp.concatenate([bt, params["b_sdf"].T], axis=0)   # (k_out+1, 1)
        k_o, k_i = wt.shape
        ws.append(jnp.pad(wt, ((0, MAX_KOUT - k_o), (0, MAX_KIN - k_i))))
        bs.append(jnp.pad(bt, ((0, MAX_KOUT - k_o), (0, 0))))
    return jnp.stack(ws, axis=0), jnp.stack(bs, axis=0)


# ------------------------------- wrapper -----------------------------------
@functools.partial(jax.jit, static_argnames=("tile_n",))
def mlp_sdf_forward(x, params, *, tile_n=TILE_N):
    """x: (N, LAYER_DIMS[0]) f32.  params: dict of weights/biases (see init).

    Returns (sdf (N, 1), feat (N, LAYER_DIMS[-1])) in f32, matching the module.
    """
    N, d_in = x.shape
    assert d_in == LAYER_DIMS[0]
    k_last = LAYER_DIMS[-1]

    # Pad N up to a multiple of the row tile; extra rows are zeros and dropped.
    n_pad = pl.cdiv(N, tile_n) * tile_n
    x_cm = jnp.pad(x.T, ((0, 0), (0, n_pad - N)))          # (d_in, n_pad) channels-major

    wpack, bpack = _pack_params(params)

    full_spec = lambda a: pl.BlockSpec(a.shape, lambda i: (0,) * a.ndim)

    grid = (n_pad // tile_n,)
    in_specs = [
        pl.BlockSpec((d_in, tile_n), lambda i: (0, i)),     # x block (lane-dense)
        full_spec(wpack),                                   # packed weights (resident)
        full_spec(bpack),                                   # packed biases  (resident)
    ]
    out_shape = (
        jax.ShapeDtypeStruct((1, n_pad), jnp.float32),      # sdf  (lane-dense)
        jax.ShapeDtypeStruct((k_last, n_pad), jnp.float32), # feat (lane-dense)
    )
    out_specs = (
        pl.BlockSpec((1, tile_n), lambda i: (0, i)),
        pl.BlockSpec((k_last, tile_n), lambda i: (0, i)),
    )

    # Only needed if tile_n is pushed very large (v7x: 64 MiB physical VMEM).
    vmem_limit = 64 * 1024 * 1024 if tile_n >= 8192 else None

    sdf_cm, feat_cm = pl.pallas_call(
        mlp_sdf_kernel,
        out_shape=out_shape,
        grid=grid,
        in_specs=in_specs,
        out_specs=out_specs,
        compiler_params=pltpu.CompilerParams(
            dimension_semantics=("parallel",),
            vmem_limit_bytes=vmem_limit,
        ),
    )(x_cm, wpack, bpack)

    # Back to the module's (N, C) interface (layout plumbing outside the kernel).
    sdf = sdf_cm[:, :N].T                                   # (N, 1)
    feat = feat_cm[:, :N].T                                 # (N, k_last)
    return sdf, feat


# --------------------------- deterministic init ----------------------------
def init_params(key):
    params = {}
    for li, (k_in, k_out) in enumerate(IN_OUT_DIMS):
        key, kw, kb = jax.random.split(key, 3)
        # weights stored as (k_in, k_out) = transpose of torch Linear.weight
        params[f"w{li}"] = (jax.random.normal(kw, (k_in, k_out), jnp.float32)
                            * (1.0 / jnp.sqrt(k_in)))
        if li == N_LIN - 1:
            params[f"b{li}"] = jnp.zeros((1, k_out), jnp.float32)  # bias.fill_(0.0)
        else:
            params[f"b{li}"] = (jax.random.normal(kb, (1, k_out), jnp.float32)
                                * (1.0 / jnp.sqrt(k_in)))
    sdf_k_in = IN_OUT_DIMS[-1][0]
    key, kw, kb = jax.random.split(key, 3)
    params["w_sdf"] = (jax.random.normal(kw, (sdf_k_in, 1), jnp.float32)
                       * (1.0 / jnp.sqrt(sdf_k_in)))
    params["b_sdf"] = jax.random.normal(kb, (1, 1), jnp.float32) * 0.01
    return params


# ----------------------------- pure-JAX reference ---------------------------
def ref_forward(x, params):
    feat = x
    sdf = None
    for li in range(N_LIN):
        if li in SKIP:
            feat = jnp.concatenate([feat, x], axis=-1)
        pre = feat @ params[f"w{li}"] + params[f"b{li}"]
        if li == N_LIN - 1:
            sdf = feat @ params["w_sdf"] + params["b_sdf"]
        feat = jax.nn.relu(pre)
    return sdf, feat


# --------------------------------- main -------------------------------------
if __name__ == "__main__":
    key = jax.random.PRNGKey(0)
    key, kx, kx2 = jax.random.split(key, 3)
    params = init_params(key)

    # Main check: multiple of TILE_N, >2 grid steps (v7x megacore friendly).
    N = 8192
    x = jax.random.normal(kx, (N, LAYER_DIMS[0]), jnp.float32)
    sdf, feat = mlp_sdf_forward(x, params)
    jax.block_until_ready((sdf, feat))

    sdf_ref, feat_ref = ref_forward(x, params)
    assert sdf.shape == (N, 1) and feat.shape == (N, LAYER_DIMS[-1])
    assert jnp.allclose(sdf, sdf_ref, atol=2e-4, rtol=2e-4)
    assert jnp.allclose(feat, feat_ref, atol=2e-4, rtol=2e-4)

    # Ragged-N check: exercises the zero-padding path.
    N2 = 300
    x2 = jax.random.normal(kx2, (N2, LAYER_DIMS[0]), jnp.float32)
    sdf2, feat2 = mlp_sdf_forward(x2, params)
    jax.block_until_ready((sdf2, feat2))
    sdf2_ref, feat2_ref = ref_forward(x2, params)
    assert jnp.allclose(sdf2, sdf2_ref, atol=2e-4, rtol=2e-4)
    assert jnp.allclose(feat2, feat2_ref, atol=2e-4, rtol=2e-4)

    print("KERNEL_OK")
</pallas_src>

<mosaic_0001>
module attributes {stable_mosaic.version = 11 : i64} {
  func.func @mlp_sdf_kernel(%arg0: i32, %arg1: memref<3x2048xf32, #tpu.memory_space<vmem>>, %arg2: memref<4x33x35xf32, #tpu.memory_space<vmem>>, %arg3: memref<4x33x1xf32, #tpu.memory_space<vmem>>, %arg4: memref<1x2048xf32, #tpu.memory_space<vmem>>, %arg5: memref<32x2048xf32, #tpu.memory_space<vmem>>) attributes {dimension_semantics = [#tpu.dimension_semantics<parallel>], iteration_bounds = array<i64: 4>, scalar_prefetch = 0 : i64, scratch_operands = 0 : i64, tpu.core_type = #tpu.core_type<tc>, window_params = [{transform_indices = @transform_0, window_bounds = array<i64: 3, 2048>}, {pipeline_mode = #tpu.pipeline_mode<synchronous>, transform_indices = @transform_1, window_bounds = array<i64: 4, 33, 35>}, {pipeline_mode = #tpu.pipeline_mode<synchronous>, transform_indices = @transform_2, window_bounds = array<i64: 4, 33, 1>}, {transform_indices = @transform_3, window_bounds = array<i64: 1, 2048>}, {transform_indices = @transform_4, window_bounds = array<i64: 32, 2048>}]} {
    %c0 = arith.constant 0 : index
    %c0_0 = arith.constant 0 : index
    %0 = vector.load %arg1[%c0, %c0_0] : memref<3x2048xf32, #tpu.memory_space<vmem>>, vector<3x2048xf32>
    %c0_1 = arith.constant 0 : index
    %c0_2 = arith.constant 0 : index
    %c0_3 = arith.constant 0 : index
    %1 = vector.load %arg2[%c0_1, %c0_2, %c0_3] : memref<4x33x35xf32, #tpu.memory_space<vmem>>, vector<1x33x35xf32>
    %2 = vector.shape_cast %1 : vector<1x33x35xf32> to vector<33x35xf32>
    %3 = vector.extract_strided_slice %2 {offsets = [0, 0], sizes = [32, 3], strides = [1, 1]} : vector<33x35xf32> to vector<32x3xf32>
    %c0_4 = arith.constant 0 : index
    %c0_5 = arith.constant 0 : index
    %c0_6 = arith.constant 0 : index
    %4 = vector.load %arg3[%c0_4, %c0_5, %c0_6] : memref<4x33x1xf32, #tpu.memory_space<vmem>>, vector<1x33x1xf32>
    %5 = vector.shape_cast %4 : vector<1x33x1xf32> to vector<33x1xf32>
    %6 = vector.extract_strided_slice %5 {offsets = [0, 0], sizes = [32, 1], strides = [1, 1]} : vector<33x1xf32> to vector<32x1xf32>
    %cst = arith.constant dense<0.000000e+00> : vector<32x2048xf32>
    %7 = tpu.matmul %3, %0, %cst {dimension_numbers = #tpu.dot_dimension_numbers<[1], [0], [0], [1], [0, 0, 1, 1], [], []>} : vector<32x3xf32>, vector<3x2048xf32>, vector<32x2048xf32> -> vector<32x2048xf32>
    %8 = vector.broadcast %6 : vector<32x1xf32> to vector<32x2048xf32>
    %9 = arith.addf %7, %8 : vector<32x2048xf32>
    %cst_7 = arith.constant 0.000000e+00 : f32
    %10 = vector.broadcast %cst_7 : f32 to vector<32x2048xf32>
    %11 = arith.maximumf %9, %10 : vector<32x2048xf32>
    %c1 = arith.constant 1 : index
    %c0_8 = arith.constant 0 : index
    %c0_9 = arith.constant 0 : index
    %12 = vector.load %arg2[%c1, %c0_8, %c0_9] : memref<4x33x35xf32, #tpu.memory_space<vmem>>, vector<1x33x35xf32>
    %13 = vector.shape_cast %12 : vector<1x33x35xf32> to vector<33x35xf32>
    %14 = vector.extract_strided_slice %13 {offsets = [0, 0], sizes = [32, 32], strides = [1, 1]} : vector<33x35xf32> to vector<32x32xf32>
    %c1_10 = arith.constant 1 : index
    %c0_11 = arith.constant 0 : index
    %c0_12 = arith.constant 0 : index
    %15 = vector.load %arg3[%c1_10, %c0_11, %c0_12] : memref<4x33x1xf32, #tpu.memory_space<vmem>>, vector<1x33x1xf32>
    %16 = vector.shape_cast %15 : vector<1x33x1xf32> to vector<33x1xf32>
    %17 = vector.extract_strided_slice %16 {offsets = [0, 0], sizes = [32, 1], strides = [1, 1]} : vector<33x1xf32> to vector<32x1xf32>
    %cst_13 = arith.constant dense<0.000000e+00> : vector<32x2048xf32>
    %18 = tpu.matmul %14, %11, %cst_13 {dimension_numbers = #tpu.dot_dimension_numbers<[1], [0], [0], [1], [0, 0, 1, 1], [], []>} : vector<32x32xf32>, vector<32x2048xf32>, vector<32x2048xf32> -> vector<32x2048xf32>
    %19 = vector.broadcast %17 : vector<32x1xf32> to vector<32x2048xf32>
    %20 = arith.addf %18, %19 : vector<32x2048xf32>
    %cst_14 = arith.constant 0.000000e+00 : f32
    %21 = vector.broadcast %cst_14 : f32 to vector<32x2048xf32>
    %22 = arith.maximumf %20, %21 : vector<32x2048xf32>
    %c2 = arith.constant 2 : index
    %c0_15 = arith.constant 0 : index
    %c0_16 = arith.constant 0 : index
    %23 = vector.load %arg2[%c2, %c0_15, %c0_16] : memref<4x33x35xf32, #tpu.memory_space<vmem>>, vector<1x33x35xf32>
    %24 = vector.shape_cast %23 : vector<1x33x35xf32> to vector<33x35xf32>
    %25 = vector.extract_strided_slice %24 {offsets = [0, 0], sizes = [32, 35], strides = [1, 1]} : vector<33x35xf32> to vector<32x35xf32>
    %c2_17 = arith.constant 2 : index
    %c0_18 = arith.constant 0 : index
    %c0_19 = arith.constant 0 : index
    %26 = vector.load %arg3[%c2_17, %c0_18, %c0_19] : memref<4x33x1xf32, #tpu.memory_space<vmem>>, vector<1x33x1xf32>
    %27 = vector.shape_cast %26 : vector<1x33x1xf32> to vector<33x1xf32>
    %28 = vector.extract_strided_slice %27 {offsets = [0, 0], sizes = [32, 1], strides = [1, 1]} : vector<33x1xf32> to vector<32x1xf32>
    %29 = vector.extract_strided_slice %25 {offsets = [0, 0], sizes = [32, 32], strides = [1, 1]} : vector<32x35xf32> to vector<32x32xf32>
    %cst_20 = arith.constant dense<0.000000e+00> : vector<32x2048xf32>
    %30 = tpu.matmul %29, %22, %cst_20 {dimension_numbers = #tpu.dot_dimension_numbers<[1], [0], [0], [1], [0, 0, 1, 1], [], []>} : vector<32x32xf32>, vector<32x2048xf32>, vector<32x2048xf32> -> vector<32x2048xf32>
    %31 = vector.extract_strided_slice %25 {offsets = [0, 32], sizes = [32, 3], strides = [1, 1]} : vector<32x35xf32> to vector<32x3xf32>
    %cst_21 = arith.constant dense<0.000000e+00> : vector<32x2048xf32>
    %32 = tpu.matmul %31, %0, %cst_21 {dimension_numbers = #tpu.dot_dimension_numbers<[1], [0], [0], [1], [0, 0, 1, 1], [], []>} : vector<32x3xf32>, vector<3x2048xf32>, vector<32x2048xf32> -> vector<32x2048xf32>
    %33 = arith.addf %30, %32 : vector<32x2048xf32>
    %34 = vector.broadcast %28 : vector<32x1xf32> to vector<32x2048xf32>
    %35 = arith.addf %33, %34 : vector<32x2048xf32>
    %cst_22 = arith.constant 0.000000e+00 : f32
    %36 = vector.broadcast %cst_22 : f32 to vector<32x2048xf32>
    %37 = arith.maximumf %35, %36 : vector<32x2048xf32>
    %c3 = arith.constant 3 : index
    %c0_23 = arith.constant 0 : index
    %c0_24 = arith.constant 0 : index
    %38 = vector.load %arg2[%c3, %c0_23, %c0_24] : memref<4x33x35xf32, #tpu.memory_space<vmem>>, vector<1x33x35xf32>
    %39 = vector.shape_cast %38 : vector<1x33x35xf32> to vector<33x35xf32>
    %40 = vector.extract_strided_slice %39 {offsets = [0, 0], sizes = [33, 32], strides = [1, 1]} : vector<33x35xf32> to vector<33x32xf32>
    %c3_25 = arith.constant 3 : index
    %c0_26 = arith.constant 0 : index
    %c0_27 = arith.constant 0 : index
    %41 = vector.load %arg3[%c3_25, %c0_26, %c0_27] : memref<4x33x1xf32, #tpu.memory_space<vmem>>, vector<1x33x1xf32>
    %42 = vector.shape_cast %41 : vector<1x33x1xf32> to vector<33x1xf32>
    %cst_28 = arith.constant dense<0.000000e+00> : vector<33x2048xf32>
    %43 = tpu.matmul %40, %37, %cst_28 {dimension_numbers = #tpu.dot_dimension_numbers<[1], [0], [0], [1], [0, 0, 1, 1], [], []>} : vector<33x32xf32>, vector<32x2048xf32>, vector<33x2048xf32> -> vector<33x2048xf32>
    %44 = vector.broadcast %42 : vector<33x1xf32> to vector<33x2048xf32>
    %45 = arith.addf %43, %44 : vector<33x2048xf32>
    %46 = vector.extract_strided_slice %45 {offsets = [32, 0], sizes = [1, 2048], strides = [1, 1]} : vector<33x2048xf32> to vector<1x2048xf32>
    %c0_29 = arith.constant 0 : index
    %c0_30 = arith.constant 0 : index
    %47 = vector.load %arg4[%c0_29, %c0_30] : memref<1x2048xf32, #tpu.memory_space<vmem>>, vector<1x2048xf32>
    tpu.vector_store %arg4[%c0_29, %c0_30], %46 {strides = array<i32>} : memref<1x2048xf32, #tpu.memory_space<vmem>>, vector<1x2048xf32>,
    %48 = vector.extract_strided_slice %45 {offsets = [0, 0], sizes = [32, 2048], strides = [1, 1]} : vector<33x2048xf32> to vector<32x2048xf32>
    %cst_31 = arith.constant 0.000000e+00 : f32
    %49 = vector.broadcast %cst_31 : f32 to vector<32x2048xf32>
    %50 = arith.maximumf %48, %49 : vector<32x2048xf32>
    %c0_32 = arith.constant 0 : index
    %c0_33 = arith.constant 0 : index
    %51 = vector.load %arg5[%c0_32, %c0_33] : memref<32x2048xf32, #tpu.memory_space<vmem>>, vector<32x2048xf32>
    tpu.vector_store %arg5[%c0_32, %c0_33], %50 {strides = array<i32>} : memref<32x2048xf32, #tpu.memory_space<vmem>>, vector<32x2048xf32>,
    return
  }
  func.func @transform_0(%arg0: i32) -> (i32, i32) {
    %c0_i32 = arith.constant 0 : i32
    %c0_i32_0 = arith.constant 0 : i32
    return %c0_i32, %arg0 : i32, i32
  }
  func.func @transform_1(%arg0: i32) -> (i32, i32, i32) {
    %c0_i32 = arith.constant 0 : i32
    %c0_i32_0 = arith.constant 0 : i32
    %c0_i32_1 = arith.constant 0 : i32
    %c0_i32_2 = arith.constant 0 : i32
    return %c0_i32, %c0_i32_0, %c0_i32_1 : i32, i32, i32
  }
  func.func @transform_2(%arg0: i32) -> (i32, i32, i32) {
    %c0_i32 = arith.constant 0 : i32
    %c0_i32_0 = arith.constant 0 : i32
    %c0_i32_1 = arith.constant 0 : i32
    %c0_i32_2 = arith.constant 0 : i32
    return %c0_i32, %c0_i32_0, %c0_i32_1 : i32, i32, i32
  }
  func.func @transform_3(%arg0: i32) -> (i32, i32) {
    %c0_i32 = arith.constant 0 : i32
    %c0_i32_0 = arith.constant 0 : i32
    return %c0_i32, %arg0 : i32, i32
  }
  func.func @transform_4(%arg0: i32) -> (i32, i32) {
    %c0_i32 = arith.constant 0 : i32
    %c0_i32_0 = arith.constant 0 : i32
    return %c0_i32, %arg0 : i32, i32
  }
}

</mosaic_0001>

<llo_original>
// kernel: mlp_sdf_forward.1
$region0: #{mlp_sdf_forward.1}
  #allocation0 [shape = 'u32[]', space=smem, size = 0x4, offset = 0x4, fixed_abs, tag = 'smem constant byte address 0x4 - core index']
  #allocation1 [shape = 'u32[144,128]{1,0:T(1,128)}', space=vmem, size = 0x12000, scoped, tag = 'internal scratch']
  %s0 = inlined_call_operand.vmem [shape: f32[3,8192], index: 0, kind: input, shape index: {}]
  %s1 = inlined_call_operand.vmem [shape: f32[4,33,35], index: 1, kind: input, shape index: {}]
  %s2 = inlined_call_operand.vmem [shape: f32[4,33,1], index: 2, kind: input, shape index: {}]
  %s3 = inlined_call_operand.hbm [shape: f32[1,8192], index: 3, kind: output, shape index: {0}]
  %s4 = inlined_call_operand.hbm [shape: f32[32,8192], index: 4, kind: output, shape index: {1}]
  %5 = xla_tuple %s3, %s4
  %s6 = sld [smem:[#allocation0]]
  $region53: #{mlp_sdf_forward.1} parent=0
    _
  %s8 = ssub.s32 1, %s6
  %s9 = scalar_select 0, %s8, %s6
  $region1: #{mlp_sdf_forward.1} parent=0
    #allocation2 [shape = 'u8[16384]{0}', space=vmem, size = 0x4000, scoped, tag = 'output window, operand 0']
    #allocation3 [shape = 's32[2]{0}', space=sflag, size = 0x8, scoped, tag = 'scoped memory for mlp_sdf_forward.1']
    #allocation4 [shape = 'u8[524288]{0}', space=vmem, size = 0x80000, scoped, tag = 'output window, operand 1']
    #allocation5 [shape = 's32[2]{0}', space=sflag, size = 0x8, scoped, tag = 'scoped memory for mlp_sdf_forward.1']
    %10 = vsyncpa [#allocation3], 0
    %s11 = scalar_lea.sflag [#allocation3], 1
    %12 = vsyncpa %s11, 0
    %13 = vsyncpa [#allocation5], 0
    %s14 = scalar_lea.sflag [#allocation5], 1
    %15 = vsyncpa %s14, 0
    loop: start=0, step=1, limit=6
    $region2: #{mlp_sdf_forward.1} parent=1 // loop_pre_header
      _
    $region3: #{mlp_sdf_forward.1} parent=1 // loop_header
      %s17 = sphi 0, %s21
      %p18 = scmp.ge.s32.totalorder %s17, 6
      %s27 = sphi 0, %s29
      %s30 = sphi 0, %s27
      %s31 = sphi 0, %s30
      %s47 = sphi 0, %s31
      %s51 = sphi 0, %s51
      %s53 = sphi 0, %s51
      %s54 = sphi 0, %s53
      %s68 = sphi 0, %s54
      %s72 = sphi 0, %s72
      %s74 = sphi 0, %s72
      %s75 = sphi 0, %s74
      %s89 = sphi 0, %s75
      %s95 = sphi 0, %s97
      %s98 = sphi 0, %s95
      %s99 = sphi 0, %s98
      %s115 = sphi 0, %s99
      %s121 = sphi 0, %s123
      %s124 = sphi 0, %s121
      %s125 = sphi 0, %s124
      %s141 = sphi 0, %s125
    $region4: #{mlp_sdf_forward.1} parent=1 // loop_header_branch
      %20 = sbr.rel (%p18) target = $region8
    $region5: #{mlp_sdf_forward.1} parent=1 // loop_body
      %s22 = ssub.s32 %s17, 1
      %s23 = ssub.s32 %s17, 2
      %s24 = sadd.s32 %s17, 1
      %s25 = ssub.s32 %s17, %s24
      %p26 = scmp.eq.s32.totalorder %s25, 0
      %s28 = sadd.s32 %s27, 1
      %s29 = scalar_select %p26, %s27, %s28
      %p32 = pneg %p26
      %p33 = scmp.eq.s32.totalorder %s17, 3
      %p34 = por %p32, %p33
      %p35 = scmp.ne.s32.totalorder %s27, %s30
      %p36 = scmp.eq.s32.totalorder %s17, 0
      %p37 = por %p35, %p36
      %p38 = scmp.ne.s32.totalorder %s27, %s30
      %p39 = scmp.eq.s32.totalorder %s22, 3
      %p40 = por %p38, %p39
      %p41 = scmp.ne.s32.totalorder %s30, %s31
      %p42 = scmp.eq.s32.totalorder %s22, 0
      %p43 = por %p41, %p42
      %p44 = scmp.ne.s32.totalorder %s30, %s31
      %p45 = scmp.eq.s32.totalorder %s23, 3
      %p46 = por %p44, %p45
      %p48 = scmp.ne.s32.totalorder %s31, %s47
      %p49 = scmp.eq.s32.totalorder %s23, 0
      %p50 = por %p48, %p49
      %s52 = sadd.s32 %s51, 1
      %p55 = scmp.eq.s32.totalorder %s17, 3
      %p56 = scmp.ne.s32.totalorder %s51, %s53
      %p57 = scmp.eq.s32.totalorder %s17, 0
      %p58 = por %p56, %p57
      %p59 = scmp.ne.s32.totalorder %s51, %s53
      %p60 = scmp.eq.s32.totalorder %s22, 3
      %p61 = por %p59, %p60
      %p62 = scmp.ne.s32.totalorder %s53, %s54
      %p63 = scmp.eq.s32.totalorder %s22, 0
      %p64 = por %p62, %p63
      %p65 = scmp.ne.s32.totalorder %s53, %s54
      %p66 = scmp.eq.s32.totalorder %s23, 3
      %p67 = por %p65, %p66
      %p69 = scmp.ne.s32.totalorder %s54, %s68
      %p70 = scmp.eq.s32.totalorder %s23, 0
      %p71 = por %p69, %p70
      %s73 = sadd.s32 %s72, 1
      %p76 = scmp.eq.s32.totalorder %s17, 3
      %p77 = scmp.ne.s32.totalorder %s72, %s74
      %p78 = scmp.eq.s32.totalorder %s17, 0
      %p79 = por %p77, %p78
      %p80 = scmp.ne.s32.totalorder %s72, %s74
      %p81 = scmp.eq.s32.totalorder %s22, 3
      %p82 = por %p80, %p81
      %p83 = scmp.ne.s32.totalorder %s74, %s75
      %p84 = scmp.eq.s32.totalorder %s22, 0
      %p85 = por %p83, %p84
      %p86 = scmp.ne.s32.totalorder %s74, %s75
      %p87 = scmp.eq.s32.totalorder %s23, 3
      %p88 = por %p86, %p87
      %p90 = scmp.ne.s32.totalorder %s75, %s89
      %p91 = scmp.eq.s32.totalorder %s23, 0
      %p92 = por %p90, %p91
      %s93 = ssub.s32 %s17, %s24
      %p94 = scmp.eq.s32.totalorder %s93, 0
      %s96 = sadd.s32 %s95, 1
      %s97 = scalar_select %p94, %s95, %s96
      %p100 = pneg %p94
      %p101 = scmp.eq.s32.totalorder %s17, 3
      %p102 = por %p100, %p101
      %p103 = scmp.ne.s32.totalorder %s95, %s98
      %p104 = scmp.eq.s32.totalorder %s17, 0
      %p105 = por %p103, %p104
      %p106 = scmp.ne.s32.totalorder %s95, %s98
      %p107 = scmp.eq.s32.totalorder %s22, 3
      %p108 = por %p106, %p107
      %p109 = scmp.ne.s32.totalorder %s98, %s99
      %p110 = scmp.eq.s32.totalorder %s22, 0
      %p111 = por %p109, %p110
      %p112 = scmp.ne.s32.totalorder %s98, %s99
      %p113 = scmp.eq.s32.totalorder %s23, 3
      %p114 = por %p112, %p113
      %p116 = scmp.ne.s32.totalorder %s99, %s115
      %p117 = scmp.eq.s32.totalorder %s23, 0
      %p118 = por %p116, %p117
      %s119 = ssub.s32 %s17, %s24
      %p120 = scmp.eq.s32.totalorder %s119, 0
      %s122 = sadd.s32 %s121, 1
      %s123 = scalar_select %p120, %s121, %s122
      %p126 = pneg %p120
      %p127 = scmp.eq.s32.totalorder %s17, 3
      %p128 = por %p126, %p127
      %p129 = scmp.ne.s32.totalorder %s121, %s124
      %p130 = scmp.eq.s32.totalorder %s17, 0
      %p131 = por %p129, %p130
      %p132 = scmp.ne.s32.totalorder %s121, %s124
      %p133 = scmp.eq.s32.totalorder %s22, 3
      %p134 = por %p132, %p133
      %p135 = scmp.ne.s32.totalorder %s124, %s125
      %p136 = scmp.eq.s32.totalorder %s22, 0
      %p137 = por %p135, %p136
      %p138 = scmp.ne.s32.totalorder %s124, %s125
      %p139 = scmp.eq.s32.totalorder %s23, 3
      %p140 = por %p138, %p139
      %p142 = scmp.ne.s32.totalorder %s125, %s141
      %p143 = scmp.eq.s32.totalorder %s23, 0
      %p144 = por %p142, %p143
      %p145 = scmp.le.s32.totalorder 1, %s17
      %p146 = scmp.lt.s32.totalorder %s17, 5
      %p147 = pnand %p145, %p146
      %p148 = pneg %p147
      // Predicated region
      $region9: #{mlp_sdf_forward.1} parent=5 // pred_check
        _
      $region10: #{mlp_sdf_forward.1} parent=5 // pred_check_branch
        %150 = sbr.rel (%p147) target = $region12
      $region11: #{mlp_sdf_forward.1} parent=5 // pred_region
        %s151 = ssub.s32 %s17, 1
        // Predicated region
        $region13: #{mlp_sdf_forward.1} parent=11 // pred_check
          %p152 = pneg %p64
        $region14: #{mlp_sdf_forward.1} parent=11 // pred_check_branch
          %154 = sbr.rel (%p152) target = $region16
        $region15: #{mlp_sdf_forward.1} parent=11 // pred_region
          _
        $region16: #{mlp_sdf_forward.1} parent=11 // pred_fallthru
          _
        // Predicated region
        $region17: #{mlp_sdf_forward.1} parent=11 // pred_check
          %p155 = pneg %p85
        $region18: #{mlp_sdf_forward.1} parent=11 // pred_check_branch
          %157 = sbr.rel (%p155) target = $region20
        $region19: #{mlp_sdf_forward.1} parent=11 // pred_region
          _
        $region20: #{mlp_sdf_forward.1} parent=11 // pred_fallthru
          _
      $region12: #{mlp_sdf_forward.1} parent=5 // pred_fallthru
        _
      %p158 = scmp.lt.s32.totalorder %s17, 4
      // Predicated region
      $region21: #{mlp_sdf_forward.1} parent=5 // pred_check
        %p159 = pneg %p158
      $region22: #{mlp_sdf_forward.1} parent=5 // pred_check_branch
        %161 = sbr.rel (%p159) target = $region24
      $region23: #{mlp_sdf_forward.1} parent=5 // pred_region
        // Predicated region
        $region25: #{mlp_sdf_forward.1} parent=23 // pred_check
          %p162 = pneg %p37
        $region26: #{mlp_sdf_forward.1} parent=23 // pred_check_branch
          %164 = sbr.rel (%p162) target = $region28
        $region27: #{mlp_sdf_forward.1} parent=23 // pred_region
          %s165 = smul.u32 16, %s17
          %p166 = scmp.lt.s32.totalorder %s165, 63
          %s167 = scalar_select %p166, %s165, 63
          %s168 = smul.addr %s167, 4
          %s169 = scalar_lea.vmem %s0, %s168
          %s170 = smul.u32 16, %s17
        $region28: #{mlp_sdf_forward.1} parent=23 // pred_fallthru
          _
      $region24: #{mlp_sdf_forward.1} parent=5 // pred_fallthru
        _
      %p171 = scmp.le.s32.totalorder 1, %s17
      %p172 = scmp.lt.s32.totalorder %s17, 5
      %p173 = pnand %p171, %p172
      %p174 = pneg %p173
      // Predicated region
      $region29: #{mlp_sdf_forward.1} parent=5 // pred_check
        _
      $region30: #{mlp_sdf_forward.1} parent=5 // pred_check_branch
        %176 = sbr.rel (%p173) target = $region32
      $region31: #{mlp_sdf_forward.1} parent=5 // pred_region
        %s177 = ssub.s32 %s17, 1
        %s178 = smul.u32 16, %s22
        %p179 = scmp.lt.s32.totalorder %s178, 63
        %s180 = scalar_select %p179, %s178, 63
        %s181 = smul.addr %s180, 4
        %s182 = scalar_lea.vmem %s0, %s181
        %p183 = pneg %p43
        %p184 = pneg %p40
        %p185 = pneg %p64
        %p186 = pneg %p61
        %p187 = pneg %p85
        %p188 = pneg %p82
        %p189 = pneg %p111
        %p190 = pneg %p108
        %s191 = sand.u32 %s98, 1
        %s192 = scalar_lea.sflag [#allocation3], %s191
        %s193 = sand.u32 %s98, 1
        %s194 = smul.addr %s193, 16
        %s195 = scalar_lea.vmem [#allocation2], %s194
        %p196 = pneg %p137
        %p197 = pneg %p134
        %s198 = sand.u32 %s124, 1
        %s199 = scalar_lea.sflag [#allocation5], %s198
        %s200 = sand.u32 %s124, 1
        %s201 = smul.addr %s200, 512
        %s202 = scalar_lea.vmem [#allocation4], %s201
        %s203 = smul.u32 16, %s22
        %p204 = scmp.lt.s32.totalorder %s203, 63
        %s205 = scalar_select %p204, %s203, 63
        %s206 = smul.addr %s205, 4
        %s207 = scalar_lea.vmem %s0, %s206
        %s208 = smul.u32 16, %s22
        %s209 = smul.u32 16, %s22
        %s210 = smul.u32 16, %s22
        %v211 = vld [vmem:[%s207] sm:$0x77]
        %v212 = vld [vmem:[%s207 + $0x8] sm:$0x77]
        %v213 = vld [vmem:[%s207 + $0x10] sm:$0x77]
        %v214 = vld [vmem:[%s207 + $0x18] sm:$0x77]
        %v215 = vld [vmem:[%s207 + $0x20] sm:$0x77]
        %v216 = vld [vmem:[%s207 + $0x28] sm:$0x77]
        %v217 = vld [vmem:[%s207 + $0x30] sm:$0x77]
        %v218 = vld [vmem:[%s207 + $0x38] sm:$0x77]
        %v219 = vld [vmem:[%s1] sm:$0xff]
        %v220 = vld [vmem:[%s1 + $0x8] sm:$0xff]
        %v221 = vld [vmem:[%s1 + $0x10] sm:$0xff]
        %v222 = vld [vmem:[%s1 + $0x18] sm:$0xff]
        %v223 = vld [vmem:[%s2] sm:$0xff]
        %v224 = vld [vmem:[%s2 + $0x8] sm:$0xff]
        %v225 = vld [vmem:[%s2 + $0x10] sm:$0xff]
        %v226 = vld [vmem:[%s2 + $0x18] sm:$0xff]
        %228 = vset.pattern.permute.xlu0 0
        %229 = vperm.xlu0 %228, %v223
        %v230 = vpop.permute.xlu0 %229
        %233 = vset.pattern.permute.xlu0 0
        %234 = vperm.xlu0 %233, %v224
        %v235 = vpop.permute.xlu0 %234
        %238 = vset.pattern.permute.xlu0 0
        %239 = vperm.xlu0 %238, %v225
        %v240 = vpop.permute.xlu0 %239
        %243 = vset.pattern.permute.xlu0 0
        %244 = vperm.xlu0 %243, %v226
        %v245 = vpop.permute.xlu0 %244
        %v255 = vcombine.high %v211, %v211
        %v256 = vcombine.high %v212, %v212
        %v257 = vcombine.high %v213, %v213
        %v258 = vcombine.high %v214, %v214
        %v259 = vcombine.high %v215, %v215
        %v260 = vcombine.high %v216, %v216
        %v261 = vcombine.high %v217, %v217
        %v262 = vcombine.high %v218, %v218
        %vm263 = vcmask 23552
        %v265 = vsel %vm263, %v219, 0
        %v268 = vsel %vm263, %v220, 0
        %v271 = vsel %vm263, %v221, 0
        %v274 = vsel %vm263, %v222, 0
        %vm276 = vcmask 1042432
        %v277 = vsel %vm276, %v211, 0
        %v279 = vsel %vm276, %v255, 0
        %v281 = vsel %vm276, %v212, 0
        %v283 = vsel %vm276, %v256, 0
        %v285 = vsel %vm276, %v213, 0
        %v287 = vsel %vm276, %v257, 0
        %v289 = vsel %vm276, %v214, 0
        %v291 = vsel %vm276, %v258, 0
        %v293 = vsel %vm276, %v215, 0
        %v295 = vsel %vm276, %v259, 0
        %v297 = vsel %vm276, %v216, 0
        %v299 = vsel %vm276, %v260, 0
        %v301 = vsel %vm276, %v217, 0
        %v303 = vsel %vm276, %v261, 0
        %v305 = vsel %vm276, %v218, 0
        %v307 = vsel %vm276, %v262, 0
        %309 = vmatprep.subr.mxu0 %v279
        %310 = vmatpush1.msra.mxu0 %v277
        %311 = vmatprep.subr.mxu0 0.0
        %312 = vmatpush1.msra.mxu0 0.0
        %313 = vmatprep.subr.mxu0 0.0
        %314 = vmatpush1.msra.mxu0 0.0
        %315 = vmatprep.subr.mxu0 0.0
        %316 = vmatpush1.msra.mxu0 0.0
        %317 = vmatprep.subr.mxu0 0.0
        %318 = vmatpush1.msra.mxu0 0.0
        %319 = vmatprep.subr.mxu0 0.0
        %320 = vmatpush1.msra.mxu0 0.0
        %321 = vmatprep.subr.mxu0 0.0
        %322 = vmatpush1.msra.mxu0 0.0
        %323 = vmatprep.subr.mxu0 0.0
        %324 = vmatpush1.msra.mxu0 0.0
        %325 = vmatprep.subr.mxu0 0.0
        %326 = vmatpush1.msra.mxu0 0.0
        %327 = vmatprep.subr.mxu0 0.0
        %328 = vmatpush1.msra.mxu0 0.0
        %329 = vmatprep.subr.mxu0 0.0
        %330 = vmatpush1.msra.mxu0 0.0
        %331 = vmatprep.subr.mxu0 0.0
        %332 = vmatpush1.msra.mxu0 0.0
        %333 = vmatprep.subr.mxu0 0.0
        %334 = vmatpush1.msra.mxu0 0.0
        %335 = vmatprep.subr.mxu0 0.0
        %336 = vmatpush1.msra.mxu0 0.0
        %337 = vmatprep.subr.mxu0 0.0
        %338 = vmatpush1.msra.mxu0 0.0
        %339 = vmatprep.subr.mxu0 0.0
        %340 = vmatpush1.msra.mxu0 0.0
        %341 = vmatprep.subr.mxu0 0.0
        %342 = vmatpush1.msra.mxu0 0.0
        %343 = vmatprep.subr.mxu0 0.0
        %344 = vmatpush1.msra.mxu0 0.0
        %345 = vmatprep.subr.mxu0 0.0
        %346 = vmatpush1.msra.mxu0 0.0
        %347 = vmatprep.subr.mxu0 0.0
        %348 = vmatpush1.msra.mxu0 0.0
        %349 = vmatprep.subr.mxu0 0.0
        %350 = vmatpush1.msra.mxu0 0.0
        %351 = vmatprep.subr.mxu0 0.0
        %352 = vmatpush1.msra.mxu0 0.0
        %353 = vmatprep.subr.mxu0 0.0
        %354 = vmatpush1.msra.mxu0 0.0
        %355 = vmatprep.subr.mxu0 0.0
        %356 = vmatpush1.msra.mxu0 0.0
        %357 = vmatprep.subr.mxu0 0.0
        %358 = vmatpush1.msra.mxu0 0.0
        %359 = vmatprep.subr.mxu0 0.0
        %360 = vmatpush1.msra.mxu0 0.0
        %361 = vmatprep.subr.mxu0 0.0
        %362 = vmatpush1.msra.mxu0 0.0
        %363 = vmatprep.subr.mxu0 0.0
        %364 = vmatpush1.msra.mxu0 0.0
        %365 = vmatprep.subr.mxu0 0.0
        %366 = vmatpush1.msra.mxu0 0.0
        %367 = vmatprep.subr.mxu0 0.0
        %368 = vmatpush1.msra.mxu0 0.0
        %369 = vmatprep.subr.mxu0 0.0
        %370 = vmatpush1.msra.mxu0 0.0
        %371 = vmatprep.subr.mxu0 0.0
        %372 = vmatpush1.msra.mxu0 0.0
        %373 = vmatprep.mubr.f32.mxu0 0.0
        %374 = vmatmul.mubr.f32.gmra.mrb[0].mxu0 %v265
        %v375 = vpop.f32.mrb[0].mxu0
        %v376 = vadd.f32 %v230, %v375
        %v377 = vpop.f32.mrb[0].mxu0
        %v378 = vadd.f32 %v230, %v377
        %379 = vmatprep.mubr.f32.mxu0 0.0
        %380 = vmatmul.mubr.f32.gmra.mrb[0].mxu0 %v268
        %v381 = vpop.f32.mrb[0].mxu0
        %v382 = vadd.f32 %v235, %v381
        %v383 = vpop.f32.mrb[0].mxu0
        %v384 = vadd.f32 %v235, %v383
        %385 = vmatprep.mubr.f32.mxu0 0.0
        %386 = vmatmul.mubr.f32.gmra.mrb[0].mxu0 %v271
        %v387 = vpop.f32.mrb[0].mxu0
        %v388 = vadd.f32 %v240, %v387
        %v389 = vpop.f32.mrb[0].mxu0
        %v390 = vadd.f32 %v240, %v389
        %391 = vmatprep.mubr.f32.mxu0 0.0
        %392 = vmatmul.mubr.f32.gmra.mrb[0].mxu0 %v274
        %v393 = vpop.f32.mrb[0].mxu0
        %v394 = vadd.f32 %v245, %v393
        %v395 = vpop.f32.mrb[0].mxu0
        %v396 = vadd.f32 %v245, %v395
        %397 = vdwg.mxu0
        %398 = vmatprep.subr.mxu0 %v283
        %399 = vmatpush1.msra.mxu0 %v281
        %400 = vmatprep.subr.mxu0 0.0
        %401 = vmatpush1.msra.mxu0 0.0
        %402 = vmatprep.subr.mxu0 0.0
        %403 = vmatpush1.msra.mxu0 0.0
        %404 = vmatprep.subr.mxu0 0.0
        %405 = vmatpush1.msra.mxu0 0.0
        %406 = vmatprep.subr.mxu0 0.0
        %407 = vmatpush1.msra.mxu0 0.0
        %408 = vmatprep.subr.mxu0 0.0
        %409 = vmatpush1.msra.mxu0 0.0
        %410 = vmatprep.subr.mxu0 0.0
        %411 = vmatpush1.msra.mxu0 0.0
        %412 = vmatprep.subr.mxu0 0.0
        %413 = vmatpush1.msra.mxu0 0.0
        %414 = vmatprep.subr.mxu0 0.0
        %415 = vmatpush1.msra.mxu0 0.0
        %416 = vmatprep.subr.mxu0 0.0
        %417 = vmatpush1.msra.mxu0 0.0
        %418 = vmatprep.subr.mxu0 0.0
        %419 = vmatpush1.msra.mxu0 0.0
        %420 = vmatprep.subr.mxu0 0.0
        %421 = vmatpush1.msra.mxu0 0.0
        %422 = vmatprep.subr.mxu0 0.0
        %423 = vmatpush1.msra.mxu0 0.0
        %424 = vmatprep.subr.mxu0 0.0
        %425 = vmatpush1.msra.mxu0 0.0
        %426 = vmatprep.subr.mxu0 0.0
        %427 = vmatpush1.msra.mxu0 0.0
        %428 = vmatprep.subr.mxu0 0.0
        %429 = vmatpush1.msra.mxu0 0.0
        %430 = vmatprep.subr.mxu0 0.0
        %431 = vmatpush1.msra.mxu0 0.0
        %432 = vmatprep.subr.mxu0 0.0
        %433 = vmatpush1.msra.mxu0 0.0
        %434 = vmatprep.subr.mxu0 0.0
        %435 = vmatpush1.msra.mxu0 0.0
        %436 = vmatprep.subr.mxu0 0.0
        %437 = vmatpush1.msra.mxu0 0.0
        %438 = vmatprep.subr.mxu0 0.0
        %439 = vmatpush1.msra.mxu0 0.0
        %440 = vmatprep.subr.mxu0 0.0
        %441 = vmatpush1.msra.mxu0 0.0
        %442 = vmatprep.subr.mxu0 0.0
        %443 = vmatpush1.msra.mxu0 0.0
        %444 = vmatprep.subr.mxu0 0.0
        %445 = vmatpush1.msra.mxu0 0.0
        %446 = vmatprep.subr.mxu0 0.0
        %447 = vmatpush1.msra.mxu0 0.0
        %448 = vmatprep.subr.mxu0 0.0
        %449 = vmatpush1.msra.mxu0 0.0
        %450 = vmatprep.subr.mxu0 0.0
        %451 = vmatpush1.msra.mxu0 0.0
        %452 = vmatprep.subr.mxu0 0.0
        %453 = vmatpush1.msra.mxu0 0.0
        %454 = vmatprep.subr.mxu0 0.0
        %455 = vmatpush1.msra.mxu0 0.0
        %456 = vmatprep.subr.mxu0 0.0
        %457 = vmatpush1.msra.mxu0 0.0
        %458 = vmatprep.subr.mxu0 0.0
        %459 = vmatpush1.msra.mxu0 0.0
        %460 = vmatprep.subr.mxu0 0.0
        %461 = vmatpush1.msra.mxu0 0.0
        %462 = vmatprep.mubr.f32.mxu0 0.0
        %463 = vmatmul.mubr.f32.gmra.mrb[0].mxu0 %v265
        %v464 = vpop.f32.mrb[0].mxu0
        %v465 = vadd.f32 %v230, %v464
        %v466 = vpop.f32.mrb[0].mxu0
        %v467 = vadd.f32 %v230, %v466
        %468 = vmatprep.mubr.f32.mxu0 0.0
        %469 = vmatmul.mubr.f32.gmra.mrb[0].mxu0 %v268
        %v470 = vpop.f32.mrb[0].mxu0
        %v471 = vadd.f32 %v235, %v470
        %v472 = vpop.f32.mrb[0].mxu0
        %v473 = vadd.f32 %v235, %v472
        %474 = vmatprep.mubr.f32.mxu0 0.0
        %475 = vmatmul.mubr.f32.gmra.mrb[0].mxu0 %v271
        %v476 = vpop.f32.mrb[0].mxu0
        %v477 = vadd.f32 %v240, %v476
        %v478 = vpop.f32.mrb[0].mxu0
        %v479 = vadd.f32 %v240, %v478
        %480 = vmatprep.mubr.f32.mxu0 0.0
        %481 = vmatmul.mubr.f32.gmra.mrb[0].mxu0 %v274
        %v482 = vpop.f32.mrb[0].mxu0
        %v483 = vadd.f32 %v245, %v482
        %v484 = vpop.f32.mrb[0].mxu0
        %v485 = vadd.f32 %v245, %v484
        %486 = vdwg.mxu0
        %487 = vmatprep.subr.mxu0 %v287
        %488 = vmatpush1.msra.mxu0 %v285
        %489 = vmatprep.subr.mxu0 0.0
        %490 = vmatpush1.msra.mxu0 0.0
        %491 = vmatprep.subr.mxu0 0.0
        %492 = vmatpush1.msra.mxu0 0.0
        %493 = vmatprep.subr.mxu0 0.0
        %494 = vmatpush1.msra.mxu0 0.0
        %495 = vmatprep.subr.mxu0 0.0
        %496 = vmatpush1.msra.mxu0 0.0
        %497 = vmatprep.subr.mxu0 0.0
        %498 = vmatpush1.msra.mxu0 0.0
        %499 = vmatprep.subr.mxu0 0.0
        %500 = vmatpush1.msra.mxu0 0.0
        %501 = vmatprep.subr.mxu0 0.0
        %502 = vmatpush1.msra.mxu0 0.0
        %503 = vmatprep.subr.mxu0 0.0
        %504 = vmatpush1.msra.mxu0 0.0
        %505 = vmatprep.subr.mxu0 0.0
        %506 = vmatpush1.msra.mxu0 0.0
        %507 = vmatprep.subr.mxu0 0.0
        %508 = vmatpush1.msra.mxu0 0.0
        %509 = vmatprep.subr.mxu0 0.0
        %510 = vmatpush1.msra.mxu0 0.0
        %511 = vmatprep.subr.mxu0 0.0
        %512 = vmatpush1.msra.mxu0 0.0
        %513 = vmatprep.subr.mxu0 0.0
        %514 = vmatpush1.msra.mxu0 0.0
        %515 = vmatprep.subr.mxu0 0.0
        %516 = vmatpush1.msra.mxu0 0.0
        %517 = vmatprep.subr.mxu0 0.0
        %518 = vmatpush1.msra.mxu0 0.0
        %519 = vmatprep.subr.mxu0 0.0
        %520 = vmatpush1.msra.mxu0 0.0
        %521 = vmatprep.subr.mxu0 0.0
        %522 = vmatpush1.msra.mxu0 0.0
        %523 = vmatprep.subr.mxu0 0.0
        %524 = vmatpush1.msra.mxu0 0.0
        %525 = vmatprep.subr.mxu0 0.0
        %526 = vmatpush1.msra.mxu0 0.0
        %527 = vmatprep.subr.mxu0 0.0
        %528 = vmatpush1.msra.mxu0 0.0
        %529 = vmatprep.subr.mxu0 0.0
        %530 = vmatpush1.msra.mxu0 0.0
        %531 = vmatprep.subr.mxu0 0.0
        %532 = vmatpush1.msra.mxu0 0.0
        %533 = vmatprep.subr.mxu0 0.0
        %534 = vmatpush1.msra.mxu0 0.0
        %535 = vmatprep.subr.mxu0 0.0
        %536 = vmatpush1.msra.mxu0 0.0
        %537 = vmatprep.subr.mxu0 0.0
        %538 = vmatpush1.msra.mxu0 0.0
        %539 = vmatprep.subr.mxu0 0.0
        %540 = vmatpush1.msra.mxu0 0.0
        %541 = vmatprep.subr.mxu0 0.0
        %542 = vmatpush1.msra.mxu0 0.0
        %543 = vmatprep.subr.mxu0 0.0
        %544 = vmatpush1.msra.mxu0 0.0
        %545 = vmatprep.subr.mxu0 0.0
        %546 = vmatpush1.msra.mxu0 0.0
        %547 = vmatprep.subr.mxu0 0.0
        %548 = vmatpush1.msra.mxu0 0.0
        %549 = vmatprep.subr.mxu0 0.0
        %550 = vmatpush1.msra.mxu0 0.0
        %551 = vmatprep.mubr.f32.mxu0 0.0
        %552 = vmatmul.mubr.f32.gmra.mrb[0].mxu0 %v265
        %v553 = vpop.f32.mrb[0].mxu0
        %v554 = vadd.f32 %v230, %v553
        %v555 = vpop.f32.mrb[0].mxu0
        %v556 = vadd.f32 %v230, %v555
        %557 = vmatprep.mubr.f32.mxu0 0.0
        %558 = vmatmul.mubr.f32.gmra.mrb[0].mxu0 %v268
        %v559 = vpop.f32.mrb[0].mxu0
        %v560 = vadd.f32 %v235, %v559
        %v561 = vpop.f32.mrb[0].mxu0
        %v562 = vadd.f32 %v235, %v561
        %563 = vmatprep.mubr.f32.mxu0 0.0
        %564 = vmatmul.mubr.f32.gmra.mrb[0].mxu0 %v271
        %v565 = vpop.f32.mrb[0].mxu0
        %v566 = vadd.f32 %v240, %v565
        %v567 = vpop.f32.mrb[0].mxu0
        %v568 = vadd.f32 %v240, %v567
        %569 = vmatprep.mubr.f32.mxu0 0.0
        %570 = vmatmul.mubr.f32.gmra.mrb[0].mxu0 %v274
        %v571 = vpop.f32.mrb[0].mxu0
        %v572 = vadd.f32 %v245, %v571
        %v573 = vpop.f32.mrb[0].mxu0
        %v574 = vadd.f32 %v245, %v573
        %575 = vdwg.mxu0
        %576 = vmatprep.subr.mxu0 %v291
        %577 = vmatpush1.msra.mxu0 %v289
        %578 = vmatprep.subr.mxu0 0.0
        %579 = vmatpush1.msra.mxu0 0.0
        %580 = vmatprep.subr.mxu0 0.0
        %581 = vmatpush1.msra.mxu0 0.0
        %582 = vmatprep.subr.mxu0 0.0
        %583 = vmatpush1.msra.mxu0 0.0
        %584 = vmatprep.subr.mxu0 0.0
        %585 = vmatpush1.msra.mxu0 0.0
        %586 = vmatprep.subr.mxu0 0.0
        %587 = vmatpush1.msra.mxu0 0.0
        %588 = vmatprep.subr.mxu0 0.0
        %589 = vmatpush1.msra.mxu0 0.0
        %590 = vmatprep.subr.mxu0 0.0
        %591 = vmatpush1.msra.mxu0 0.0
        %592 = vmatprep.subr.mxu0 0.0
        %593 = vmatpush1.msra.mxu0 0.0
        %594 = vmatprep.subr.mxu0 0.0
        %595 = vmatpush1.msra.mxu0 0.0
        %596 = vmatprep.subr.mxu0 0.0
        %597 = vmatpush1.msra.mxu0 0.0
        %598 = vmatprep.subr.mxu0 0.0
        %599 = vmatpush1.msra.mxu0 0.0
        %600 = vmatprep.subr.mxu0 0.0
        %601 = vmatpush1.msra.mxu0 0.0
        %602 = vmatprep.subr.mxu0 0.0
        %603 = vmatpush1.msra.mxu0 0.0
        %604 = vmatprep.subr.mxu0 0.0
        %605 = vmatpush1.msra.mxu0 0.0
        %606 = vmatprep.subr.mxu0 0.0
        %607 = vmatpush1.msra.mxu0 0.0
        %608 = vmatprep.subr.mxu0 0.0
        %609 = vmatpush1.msra.mxu0 0.0
        %610 = vmatprep.subr.mxu0 0.0
        %611 = vmatpush1.msra.mxu0 0.0
        %612 = vmatprep.subr.mxu0 0.0
        %613 = vmatpush1.msra.mxu0 0.0
        %614 = vmatprep.subr.mxu0 0.0
        %615 = vmatpush1.msra.mxu0 0.0
        %616 = vmatprep.subr.mxu0 0.0
        %617 = vmatpush1.msra.mxu0 0.0
        %618 = vmatprep.subr.mxu0 0.0
        %619 = vmatpush1.msra.mxu0 0.0
        %620 = vmatprep.subr.mxu0 0.0
        %621 = vmatpush1.msra.mxu0 0.0
        %622 = vmatprep.subr.mxu0 0.0
        %623 = vmatpush1.msra.mxu0 0.0
        %624 = vmatprep.subr.mxu0 0.0
        %625 = vmatpush1.msra.mxu0 0.0
        %626 = vmatprep.subr.mxu0 0.0
        %627 = vmatpush1.msra.mxu0 0.0
        %628 = vmatprep.subr.mxu0 0.0
        %629 = vmatpush1.msra.mxu0 0.0
        %630 = vmatprep.subr.mxu0 0.0
        %631 = vmatpush1.msra.mxu0 0.0
        %632 = vmatprep.subr.mxu0 0.0
        %633 = vmatpush1.msra.mxu0 0.0
        %634 = vmatprep.subr.mxu0 0.0
        %635 = vmatpush1.msra.mxu0 0.0
        %636 = vmatprep.subr.mxu0 0.0
        %637 = vmatpush1.msra.mxu0 0.0
        %638 = vmatprep.subr.mxu0 0.0
        %639 = vmatpush1.msra.mxu0 0.0
        %640 = vmatprep.mubr.f32.mxu0 0.0
        %641 = vmatmul.mubr.f32.gmra.mrb[0].mxu0 %v265
        %v642 = vpop.f32.mrb[0].mxu0
        %v643 = vadd.f32 %v230, %v642
        %v644 = vpop.f32.mrb[0].mxu0
        %v645 = vadd.f32 %v230, %v644
        %646 = vmatprep.mubr.f32.mxu0 0.0
        %647 = vmatmul.mubr.f32.gmra.mrb[0].mxu0 %v268
        %v648 = vpop.f32.mrb[0].mxu0
        %v649 = vadd.f32 %v235, %v648
        %v650 = vpop.f32.mrb[0].mxu0
        %v651 = vadd.f32 %v235, %v650
        %652 = vmatprep.mubr.f32.mxu0 0.0
        %653 = vmatmul.mubr.f32.gmra.mrb[0].mxu0 %v271
        %v654 = vpop.f32.mrb[0].mxu0
        %v655 = vadd.f32 %v240, %v654
        %v656 = vpop.f32.mrb[0].mxu0
        %v657 = vadd.f32 %v240, %v656
        %658 = vmatprep.mubr.f32.mxu0 0.0
        %659 = vmatmul.mubr.f32.gmra.mrb[0].mxu0 %v274
        %v660 = vpop.f32.mrb[0].mxu0
        %v661 = vadd.f32 %v245, %v660
        %v662 = vpop.f32.mrb[0].mxu0
        %v663 = vadd.f32 %v245, %v662
        %664 = vdwg.mxu0
        %665 = vmatprep.subr.mxu0 %v295
        %666 = vmatpush1.msra.mxu0 %v293
        %667 = vmatprep.subr.mxu0 0.0
        %668 = vmatpush1.msra.mxu0 0.0
        %669 = vmatprep.subr.mxu0 0.0
        %670 = vmatpush1.msra.mxu0 0.0
        %671 = vmatprep.subr.mxu0 0.0
        %672 = vmatpush1.msra.mxu0 0.0
        %673 = vmatprep.subr.mxu0 0.0
        %674 = vmatpush1.msra.mxu0 0.0
        %675 = vmatprep.subr.mxu0 0.0
        %676 = vmatpush1.msra.mxu0 0.0
        %677 = vmatprep.subr.mxu0 0.0
        %678 = vmatpush1.msra.mxu0 0.0
        %679 = vmatprep.subr.mxu0 0.0
        %680 = vmatpush1.msra.mxu0 0.0
        %681 = vmatprep.subr.mxu0 0.0
        %682 = vmatpush1.msra.mxu0 0.0
        %683 = vmatprep.subr.mxu0 0.0
        %684 = vmatpush1.msra.mxu0 0.0
        %685 = vmatprep.subr.mxu0 0.0
        %686 = vmatpush1.msra.mxu0 0.0
        %687 = vmatprep.subr.mxu0 0.0
        %688 = vmatpush1.msra.mxu0 0.0
        %689 = vmatprep.subr.mxu0 0.0
        %690 = vmatpush1.msra.mxu0 0.0
        %691 = vmatprep.subr.mxu0 0.0
        %692 = vmatpush1.msra.mxu0 0.0
        %693 = vmatprep.subr.mxu0 0.0
        %694 = vmatpush1.msra.mxu0 0.0
        %695 = vmatprep.subr.mxu0 0.0
        %696 = vmatpush1.msra.mxu0 0.0
        %697 = vmatprep.subr.mxu0 0.0
        %698 = vmatpush1.msra.mxu0 0.0
        %699 = vmatprep.subr.mxu0 0.0
        %700 = vmatpush1.msra.mxu0 0.0
        %701 = vmatprep.subr.mxu0 0.0
        %702 = vmatpush1.msra.mxu0 0.0
        %703 = vmatprep.subr.mxu0 0.0
        %704 = vmatpush1.msra.mxu0 0.0
        %705 = vmatprep.subr.mxu0 0.0
        %706 = vmatpush1.msra.mxu0 0.0
        %707 = vmatprep.subr.mxu0 0.0
        %708 = vmatpush1.msra.mxu0 0.0
        %709 = vmatprep.subr.mxu0 0.0
        %710 = vmatpush1.msra.mxu0 0.0
        %711 = vmatprep.subr.mxu0 0.0
        %712 = vmatpush1.msra.mxu0 0.0
        %713 = vmatprep.subr.mxu0 0.0
        %714 = vmatpush1.msra.mxu0 0.0
        %715 = vmatprep.subr.mxu0 0.0
        %716 = vmatpush1.msra.mxu0 0.0
        %717 = vmatprep.subr.mxu0 0.0
        %718 = vmatpush1.msra.mxu0 0.0
        %719 = vmatprep.subr.mxu0 0.0
        %720 = vmatpush1.msra.mxu0 0.0
        %721 = vmatprep.subr.mxu0 0.0
        %722 = vmatpush1.msra.mxu0 0.0
        %723 = vmatprep.subr.mxu0 0.0
        %724 = vmatpush1.msra.mxu0 0.0
        %725 = vmatprep.subr.mxu0 0.0
        %726 = vmatpush1.msra.mxu0 0.0
        %727 = vmatprep.subr.mxu0 0.0
        %728 = vmatpush1.msra.mxu0 0.0
        %729 = vmatprep.mubr.f32.mxu0 0.0
        %730 = vmatmul.mubr.f32.gmra.mrb[0].mxu0 %v265
        %v731 = vpop.f32.mrb[0].mxu0
        %v732 = vadd.f32 %v230, %v731
        %v733 = vpop.f32.mrb[0].mxu0
        %v734 = vadd.f32 %v230, %v733
        %735 = vmatprep.mubr.f32.mxu0 0.0
        %736 = vmatmul.mubr.f32.gmra.mrb[0].mxu0 %v268
        %v737 = vpop.f32.mrb[0].mxu0
        %v738 = vadd.f32 %v235, %v737
        %v739 = vpop.f32.mrb[0].mxu0
        %v740 = vadd.f32 %v235, %v739
        %741 = vmatprep.mubr.f32.mxu0 0.0
        %742 = vmatmul.mubr.f32.gmra.mrb[0].mxu0 %v271
        %v743 = vpop.f32.mrb[0].mxu0
        %v744 = vadd.f32 %v240, %v743
        %v745 = vpop.f32.mrb[0].mxu0
        %v746 = vadd.f32 %v240, %v745
        %747 = vmatprep.mubr.f32.mxu0 0.0
        %748 = vmatmul.mubr.f32.gmra.mrb[0].mxu0 %v274
        %v749 = vpop.f32.mrb[0].mxu0
        %v750 = vadd.f32 %v245, %v749
        %v751 = vpop.f32.mrb[0].mxu0
        %v752 = vadd.f32 %v245, %v751
        %753 = vdwg.mxu0
        %754 = vmatprep.subr.mxu0 %v299
        %755 = vmatpush1.msra.mxu0 %v297
        %756 = vmatprep.subr.mxu0 0.0
        %757 = vmatpush1.msra.mxu0 0.0
        %758 = vmatprep.subr.mxu0 0.0
        %759 = vmatpush1.msra.mxu0 0.0
        %760 = vmatprep.subr.mxu0 0.0
        %761 = vmatpush1.msra.mxu0 0.0
        %762 = vmatprep.subr.mxu0 0.0
        %763 = vmatpush1.msra.mxu0 0.0
        %764 = vmatprep.subr.mxu0 0.0
        %765 = vmatpush1.msra.mxu0 0.0
        %766 = vmatprep.subr.mxu0 0.0
        %767 = vmatpush1.msra.mxu0 0.0
        %768 = vmatprep.subr.mxu0 0.0
        %769 = vmatpush1.msra.mxu0 0.0
        %770 = vmatprep.subr.mxu0 0.0
        %771 = vmatpush1.msra.mxu0 0.0
        %772 = vmatprep.subr.mxu0 0.0
        %773 = vmatpush1.msra.mxu0 0.0
        %774 = vmatprep.subr.mxu0 0.0
        %775 = vmatpush1.msra.mxu0 0.0
        %776 = vmatprep.subr.mxu0 0.0
        %777 = vmatpush1.msra.mxu0 0.0
        %778 = vmatprep.subr.mxu0 0.0
        %779 = vmatpush1.msra.mxu0 0.0
        %780 = vmatprep.subr.mxu0 0.0
        %781 = vmatpush1.msra.mxu0 0.0
        %782 = vmatprep.subr.mxu0 0.0
        %783 = vmatpush1.msra.mxu0 0.0
        %784 = vmatprep.subr.mxu0 0.0
        %785 = vmatpush1.msra.mxu0 0.0
        %786 = vmatprep.subr.mxu0 0.0
        %787 = vmatpush1.msra.mxu0 0.0
        %788 = vmatprep.subr.mxu0 0.0
        %789 = vmatpush1.msra.mxu0 0.0
        %790 = vmatprep.subr.mxu0 0.0
        %791 = vmatpush1.msra.mxu0 0.0
        %792 = vmatprep.subr.mxu0 0.0
        %793 = vmatpush1.msra.mxu0 0.0
        %794 = vmatprep.subr.mxu0 0.0
        %795 = vmatpush1.msra.mxu0 0.0
        %796 = vmatprep.subr.mxu0 0.0
        %797 = vmatpush1.msra.mxu0 0.0
        %798 = vmatprep.subr.mxu0 0.0
        %799 = vmatpush1.msra.mxu0 0.0
        %800 = vmatprep.subr.mxu0 0.0
        %801 = vmatpush1.msra.mxu0 0.0
        %802 = vmatprep.subr.mxu0 0.0
        %803 = vmatpush1.msra.mxu0 0.0
        %804 = vmatprep.subr.mxu0 0.0
        %805 = vmatpush1.msra.mxu0 0.0
        %806 = vmatprep.subr.mxu0 0.0
        %807 = vmatpush1.msra.mxu0 0.0
        %808 = vmatprep.subr.mxu0 0.0
        %809 = vmatpush1.msra.mxu0 0.0
        %810 = vmatprep.subr.mxu0 0.0
        %811 = vmatpush1.msra.mxu0 0.0
        %812 = vmatprep.subr.mxu0 0.0
        %813 = vmatpush1.msra.mxu0 0.0
        %814 = vmatprep.subr.mxu0 0.0
        %815 = vmatpush1.msra.mxu0 0.0
        %816 = vmatprep.subr.mxu0 0.0
        %817 = vmatpush1.msra.mxu0 0.0
        %818 = vmatprep.mubr.f32.mxu0 0.0
        %819 = vmatmul.mubr.f32.gmra.mrb[0].mxu0 %v265
        %v820 = vpop.f32.mrb[0].mxu0
        %v821 = vadd.f32 %v230, %v820
        %v822 = vpop.f32.mrb[0].mxu0
        %v823 = vadd.f32 %v230, %v822
        %824 = vmatprep.mubr.f32.mxu0 0.0
        %825 = vmatmul.mubr.f32.gmra.mrb[0].mxu0 %v268
        %v826 = vpop.f32.mrb[0].mxu0
        %v827 = vadd.f32 %v235, %v826
        %v828 = vpop.f32.mrb[0].mxu0
        %v829 = vadd.f32 %v235, %v828
        %830 = vmatprep.mubr.f32.mxu0 0.0
        %831 = vmatmul.mubr.f32.gmra.mrb[0].mxu0 %v271
        %v832 = vpop.f32.mrb[0].mxu0
        %v833 = vadd.f32 %v240, %v832
        %v834 = vpop.f32.mrb[0].mxu0
        %v835 = vadd.f32 %v240, %v834
        %836 = vmatprep.mubr.f32.mxu0 0.0
        %837 = vmatmul.mubr.f32.gmra.mrb[0].mxu0 %v274
        %v838 = vpop.f32.mrb[0].mxu0
        %v839 = vadd.f32 %v245, %v838
        %v840 = vpop.f32.mrb[0].mxu0
        %v841 = vadd.f32 %v245, %v840
        %842 = vdwg.mxu0
        %843 = vmatprep.subr.mxu0 %v303
        %844 = vmatpush1.msra.mxu0 %v301
        %845 = vmatprep.subr.mxu0 0.0
        %846 = vmatpush1.msra.mxu0 0.0
        %847 = vmatprep.subr.mxu0 0.0
        %848 = vmatpush1.msra.mxu0 0.0
        %849 = vmatprep.subr.mxu0 0.0
        %850 = vmatpush1.msra.mxu0 0.0
        %851 = vmatprep.subr.mxu0 0.0
        %852 = vmatpush1.msra.mxu0 0.0
        %853 = vmatprep.subr.mxu0 0.0
        %854 = vmatpush1.msra.mxu0 0.0
        %855 = vmatprep.subr.mxu0 0.0
        %856 = vmatpush1.msra.mxu0 0.0
        %857 = vmatprep.subr.mxu0 0.0
        %858 = vmatpush1.msra.mxu0 0.0
        %859 = vmatprep.subr.mxu0 0.0
        %860 = vmatpush1.msra.mxu0 0.0
        %861 = vmatprep.subr.mxu0 0.0
        %862 = vmatpush1.msra.mxu0 0.0
        %863 = vmatprep.subr.mxu0 0.0
        %864 = vmatpush1.msra.mxu0 0.0
        %865 = vmatprep.subr.mxu0 0.0
        %866 = vmatpush1.msra.mxu0 0.0
        %867 = vmatprep.subr.mxu0 0.0
        %868 = vmatpush1.msra.mxu0 0.0
        %869 = vmatprep.subr.mxu0 0.0
        %870 = vmatpush1.msra.mxu0 0.0
        %871 = vmatprep.subr.mxu0 0.0
        %872 = vmatpush1.msra.mxu0 0.0
        %873 = vmatprep.subr.mxu0 0.0
        %874 = vmatpush1.msra.mxu0 0.0
        %875 = vmatprep.subr.mxu0 0.0
        %876 = vmatpush1.msra.mxu0 0.0
        %877 = vmatprep.subr.mxu0 0.0
        %878 = vmatpush1.msra.mxu0 0.0
        %879 = vmatprep.subr.mxu0 0.0
        %880 = vmatpush1.msra.mxu0 0.0
        %881 = vmatprep.subr.mxu0 0.0
        %882 = vmatpush1.msra.mxu0 0.0
        %883 = vmatprep.subr.mxu0 0.0
        %884 = vmatpush1.msra.mxu0 0.0
        %885 = vmatprep.subr.mxu0 0.0
        %886 = vmatpush1.msra.mxu0 0.0
        %887 = vmatprep.subr.mxu0 0.0
        %888 = vmatpush1.msra.mxu0 0.0
        %889 = vmatprep.subr.mxu0 0.0
        %890 = vmatpush1.msra.mxu0 0.0
        %891 = vmatprep.subr.mxu0 0.0
        %892 = vmatpush1.msra.mxu0 0.0
        %893 = vmatprep.subr.mxu0 0.0
        %894 = vmatpush1.msra.mxu0 0.0
        %895 = vmatprep.subr.mxu0 0.0
        %896 = vmatpush1.msra.mxu0 0.0
        %897 = vmatprep.subr.mxu0 0.0
        %898 = vmatpush1.msra.mxu0 0.0
        %899 = vmatprep.subr.mxu0 0.0
        %900 = vmatpush1.msra.mxu0 0.0
        %901 = vmatprep.subr.mxu0 0.0
        %902 = vmatpush1.msra.mxu0 0.0
        %903 = vmatprep.subr.mxu0 0.0
        %904 = vmatpush1.msra.mxu0 0.0
        %905 = vmatprep.subr.mxu0 0.0
        %906 = vmatpush1.msra.mxu0 0.0
        %907 = vmatprep.mubr.f32.mxu0 0.0
        %908 = vmatmul.mubr.f32.gmra.mrb[0].mxu0 %v265
        %v909 = vpop.f32.mrb[0].mxu0
        %v910 = vadd.f32 %v230, %v909
        %v911 = vpop.f32.mrb[0].mxu0
        %v912 = vadd.f32 %v230, %v911
        %913 = vmatprep.mubr.f32.mxu0 0.0
        %914 = vmatmul.mubr.f32.gmra.mrb[0].mxu0 %v268
        %v915 = vpop.f32.mrb[0].mxu0
        %v916 = vadd.f32 %v235, %v915
        %v917 = vpop.f32.mrb[0].mxu0
        %v918 = vadd.f32 %v235, %v917
        %919 = vmatprep.mubr.f32.mxu0 0.0
        %920 = vmatmul.mubr.f32.gmra.mrb[0].mxu0 %v271
        %v921 = vpop.f32.mrb[0].mxu0
        %v922 = vadd.f32 %v240, %v921
        %v923 = vpop.f32.mrb[0].mxu0
        %v924 = vadd.f32 %v240, %v923
        %925 = vmatprep.mubr.f32.mxu0 0.0
        %926 = vmatmul.mubr.f32.gmra.mrb[0].mxu0 %v274
        %v927 = vpop.f32.mrb[0].mxu0
        %v928 = vadd.f32 %v245, %v927
        %v929 = vpop.f32.mrb[0].mxu0
        %v930 = vadd.f32 %v245, %v929
        %931 = vdwg.mxu0
        %932 = vmatprep.subr.mxu0 %v307
        %933 = vmatpush1.msra.mxu0 %v305
        %934 = vmatprep.subr.mxu0 0.0
        %935 = vmatpush1.msra.mxu0 0.0
        %936 = vmatprep.subr.mxu0 0.0
        %937 = vmatpush1.msra.mxu0 0.0
        %938 = vmatprep.subr.mxu0 0.0
        %939 = vmatpush1.msra.mxu0 0.0
        %940 = vmatprep.subr.mxu0 0.0
        %941 = vmatpush1.msra.mxu0 0.0
        %942 = vmatprep.subr.mxu0 0.0
        %943 = vmatpush1.msra.mxu0 0.0
        %944 = vmatprep.subr.mxu0 0.0
        %945 = vmatpush1.msra.mxu0 0.0
        %946 = vmatprep.subr.mxu0 0.0
        %947 = vmatpush1.msra.mxu0 0.0
        %948 = vmatprep.subr.mxu0 0.0
        %949 = vmatpush1.msra.mxu0 0.0
        %950 = vmatprep.subr.mxu0 0.0
        %951 = vmatpush1.msra.mxu0 0.0
        %952 = vmatprep.subr.mxu0 0.0
        %953 = vmatpush1.msra.mxu0 0.0
        %954 = vmatprep.subr.mxu0 0.0
        %955 = vmatpush1.msra.mxu0 0.0
        %956 = vmatprep.subr.mxu0 0.0
        %957 = vmatpush1.msra.mxu0 0.0
        %958 = vmatprep.subr.mxu0 0.0
        %959 = vmatpush1.msra.mxu0 0.0
        %960 = vmatprep.subr.mxu0 0.0
        %961 = vmatpush1.msra.mxu0 0.0
        %962 = vmatprep.subr.mxu0 0.0
        %963 = vmatpush1.msra.mxu0 0.0
        %964 = vmatprep.subr.mxu0 0.0
        %965 = vmatpush1.msra.mxu0 0.0
        %966 = vmatprep.subr.mxu0 0.0
        %967 = vmatpush1.msra.mxu0 0.0
        %968 = vmatprep.subr.mxu0 0.0
        %969 = vmatpush1.msra.mxu0 0.0
        %970 = vmatprep.subr.mxu0 0.0
        %971 = vmatpush1.msra.mxu0 0.0
        %972 = vmatprep.subr.mxu0 0.0
        %973 = vmatpush1.msra.mxu0 0.0
        %974 = vmatprep.subr.mxu0 0.0
        %975 = vmatpush1.msra.mxu0 0.0
        %976 = vmatprep.subr.mxu0 0.0
        %977 = vmatpush1.msra.mxu0 0.0
        %978 = vmatprep.subr.mxu0 0.0
        %979 = vmatpush1.msra.mxu0 0.0
        %980 = vmatprep.subr.mxu0 0.0
        %981 = vmatpush1.msra.mxu0 0.0
        %982 = vmatprep.subr.mxu0 0.0
        %983 = vmatpush1.msra.mxu0 0.0
        %984 = vmatprep.subr.mxu0 0.0
        %985 = vmatpush1.msra.mxu0 0.0
        %986 = vmatprep.subr.mxu0 0.0
        %987 = vmatpush1.msra.mxu0 0.0
        %988 = vmatprep.subr.mxu0 0.0
        %989 = vmatpush1.msra.mxu0 0.0
        %990 = vmatprep.subr.mxu0 0.0
        %991 = vmatpush1.msra.mxu0 0.0
        %992 = vmatprep.subr.mxu0 0.0
        %993 = vmatpush1.msra.mxu0 0.0
        %994 = vmatprep.subr.mxu0 0.0
        %995 = vmatpush1.msra.mxu0 0.0
        %996 = vmatprep.mubr.f32.mxu0 0.0
        %997 = vmatmul.mubr.f32.gmra.mrb[0].mxu0 %v265
        %v998 = vpop.f32.mrb[0].mxu0
        %v999 = vadd.f32 %v230, %v998
        %v1000 = vpop.f32.mrb[0].mxu0
        %v1001 = vadd.f32 %v230, %v1000
        %1002 = vmatprep.mubr.f32.mxu0 0.0
        %1003 = vmatmul.mubr.f32.gmra.mrb[0].mxu0 %v268
        %v1004 = vpop.f32.mrb[0].mxu0
        %v1005 = vadd.f32 %v235, %v1004
        %v1006 = vpop.f32.mrb[0].mxu0
        %v1007 = vadd.f32 %v235, %v1006
        %1008 = vmatprep.mubr.f32.mxu0 0.0
        %1009 = vmatmul.mubr.f32.gmra.mrb[0].mxu0 %v271
        %v1010 = vpop.f32.mrb[0].mxu0
        %v1011 = vadd.f32 %v240, %v1010
        %v1012 = vpop.f32.mrb[0].mxu0
        %v1013 = vadd.f32 %v240, %v1012
        %1014 = vmatprep.mubr.f32.mxu0 0.0
        %1015 = vmatmul.mubr.f32.gmra.mrb[0].mxu0 %v274
        %v1016 = vpop.f32.mrb[0].mxu0
        %v1017 = vadd.f32 %v245, %v1016
        %v1018 = vpop.f32.mrb[0].mxu0
        %v1019 = vadd.f32 %v245, %v1018
        %1020 = vdwg.mxu0
        %v1021 = vmax.f32 %v376, 0.0
        %v1022 = vmax.f32 %v378, 0.0
        %v1023 = vmax.f32 %v465, 0.0
        %v1024 = vmax.f32 %v467, 0.0
        %v1025 = vmax.f32 %v554, 0.0
        %v1026 = vmax.f32 %v556, 0.0
        %v1027 = vmax.f32 %v643, 0.0
        %v1028 = vmax.f32 %v645, 0.0
        %v1029 = vmax.f32 %v732, 0.0
        %v1030 = vmax.f32 %v734, 0.0
        %v1031 = vmax.f32 %v821, 0.0
        %v1032 = vmax.f32 %v823, 0.0
        %v1033 = vmax.f32 %v910, 0.0
        %v1034 = vmax.f32 %v912, 0.0
        %v1035 = vmax.f32 %v999, 0.0
        %v1036 = vmax.f32 %v1001, 0.0
        %v1037 = vmax.f32 %v382, 0.0
        %v1038 = vmax.f32 %v384, 0.0
        %v1039 = vmax.f32 %v471, 0.0
        %v1040 = vmax.f32 %v473, 0.0
        %v1041 = vmax.f32 %v560, 0.0
        %v1042 = vmax.f32 %v562, 0.0
        %v1043 = vmax.f32 %v649, 0.0
        %v1044 = vmax.f32 %v651, 0.0
        %v1045 = vmax.f32 %v738, 0.0
        %v1046 = vmax.f32 %v740, 0.0
        %v1047 = vmax.f32 %v827, 0.0
        %v1048 = vmax.f32 %v829, 0.0
        %v1049 = vmax.f32 %v916, 0.0
        %v1050 = vmax.f32 %v918, 0.0
        %v1051 = vmax.f32 %v1005, 0.0
        %v1052 = vmax.f32 %v1007, 0.0
        %v1053 = vmax.f32 %v388, 0.0
        %v1054 = vmax.f32 %v390, 0.0
        %v1055 = vmax.f32 %v477, 0.0
        %v1056 = vmax.f32 %v479, 0.0
        %v1057 = vmax.f32 %v566, 0.0
        %v1058 = vmax.f32 %v568, 0.0
        %v1059 = vmax.f32 %v655, 0.0
        %v1060 = vmax.f32 %v657, 0.0
        %v1061 = vmax.f32 %v744, 0.0
        %v1062 = vmax.f32 %v746, 0.0
        %v1063 = vmax.f32 %v833, 0.0
        %v1064 = vmax.f32 %v835, 0.0
        %v1065 = vmax.f32 %v922, 0.0
        %v1066 = vmax.f32 %v924, 0.0
        %v1067 = vmax.f32 %v1011, 0.0
        %v1068 = vmax.f32 %v1013, 0.0
        %v1069 = vmax.f32 %v394, 0.0
        %v1070 = vmax.f32 %v396, 0.0
        %v1071 = vmax.f32 %v483, 0.0
        %v1072 = vmax.f32 %v485, 0.0
        %v1073 = vmax.f32 %v572, 0.0
        %v1074 = vmax.f32 %v574, 0.0
        %v1075 = vmax.f32 %v661, 0.0
        %v1076 = vmax.f32 %v663, 0.0
        %v1077 = vmax.f32 %v750, 0.0
        %v1078 = vmax.f32 %v752, 0.0
        %v1079 = vmax.f32 %v839, 0.0
        %v1080 = vmax.f32 %v841, 0.0
        %v1081 = vmax.f32 %v928, 0.0
        %v1082 = vmax.f32 %v930, 0.0
        %v1083 = vmax.f32 %v1017, 0.0
        %v1084 = vmax.f32 %v1019, 0.0
        %s1085 = scalar_lea.vmem %s1, 40
        %v1086 = vld [vmem:[%s1085] sm:$0xff]
        %v1087 = vld [vmem:[%s1085 + $0x8] sm:$0xff]
        %v1088 = vld [vmem:[%s1085 + $0x10] sm:$0xff]
        %v1089 = vld [vmem:[%s1085 + $0x18] sm:$0xff]
        %s1090 = scalar_lea.vmem %s2, 40
        %v1091 = vld [vmem:[%s1090] sm:$0xff]
        %v1092 = vld [vmem:[%s1090 + $0x8] sm:$0xff]
        %v1093 = vld [vmem:[%s1090 + $0x10] sm:$0xff]
        %v1094 = vld [vmem:[%s1090 + $0x18] sm:$0xff]
        %1096 = vset.pattern.permute.xlu0 0
        %1097 = vperm.xlu0 %1096, %v1091
        %v1098 = vpop.permute.xlu0 %1097
        %1101 = vset.pattern.permute.xlu0 0
        %1102 = vperm.xlu0 %1101, %v1092
        %v1103 = vpop.permute.xlu0 %1102
        %1106 = vset.pattern.permute.xlu0 0
        %1107 = vperm.xlu0 %1106, %v1093
        %v1108 = vpop.permute.xlu0 %1107
        %1111 = vset.pattern.permute.xlu0 0
        %1112 = vperm.xlu0 %1111, %v1094
        %v1113 = vpop.permute.xlu0 %1112
        %vm1115 = vcmask 261120
        %v1117 = vsel %vm1115, %v1086, 0
        %v1120 = vsel %vm1115, %v1087, 0
        %v1123 = vsel %vm1115, %v1088, 0
        %v1126 = vsel %vm1115, %v1089, 0
        %1128 = vmatprep.subr.mxu0 %v1022
        %1129 = vmatpush1.msra.mxu0 %v1021
        %1130 = vmatprep.subr.mxu0 %v1038
        %1131 = vmatpush1.msra.mxu0 %v1037
        %1132 = vmatprep.subr.mxu0 %v1054
        %1133 = vmatpush1.msra.mxu0 %v1053
        %1134 = vmatprep.subr.mxu0 %v1070
        %1135 = vmatpush1.msra.mxu0 %v1069
        %1136 = vmatprep.subr.mxu0 0.0
        %1137 = vmatpush1.msra.mxu0 0.0
        %1138 = vmatprep.subr.mxu0 0.0
        %1139 = vmatpush1.msra.mxu0 0.0
        %1140 = vmatprep.subr.mxu0 0.0
        %1141 = vmatpush1.msra.mxu0 0.0
        %1142 = vmatprep.subr.mxu0 0.0
        %1143 = vmatpush1.msra.mxu0 0.0
        %1144 = vmatprep.subr.mxu0 0.0
        %1145 = vmatpush1.msra.mxu0 0.0
        %1146 = vmatprep.subr.mxu0 0.0
        %1147 = vmatpush1.msra.mxu0 0.0
        %1148 = vmatprep.subr.mxu0 0.0
        %1149 = vmatpush1.msra.mxu0 0.0
        %1150 = vmatprep.subr.mxu0 0.0
        %1151 = vmatpush1.msra.mxu0 0.0
        %1152 = vmatprep.subr.mxu0 0.0
        %1153 = vmatpush1.msra.mxu0 0.0
        %1154 = vmatprep.subr.mxu0 0.0
        %1155 = vmatpush1.msra.mxu0 0.0
        %1156 = vmatprep.subr.mxu0 0.0
        %1157 = vmatpush1.msra.mxu0 0.0
        %1158 = vmatprep.subr.mxu0 0.0
        %1159 = vmatpush1.msra.mxu0 0.0
        %1160 = vmatprep.subr.mxu0 0.0
        %1161 = vmatpush1.msra.mxu0 0.0
        %1162 = vmatprep.subr.mxu0 0.0
        %1163 = vmatpush1.msra.mxu0 0.0
        %1164 = vmatprep.subr.mxu0 0.0
        %1165 = vmatpush1.msra.mxu0 0.0
        %1166 = vmatprep.subr.mxu0 0.0
        %1167 = vmatpush1.msra.mxu0 0.0
        %1168 = vmatprep.subr.mxu0 0.0
        %1169 = vmatpush1.msra.mxu0 0.0
        %1170 = vmatprep.subr.mxu0 0.0
        %1171 = vmatpush1.msra.mxu0 0.0
        %1172 = vmatprep.subr.mxu0 0.0
        %1173 = vmatpush1.msra.mxu0 0.0
        %1174 = vmatprep.subr.mxu0 0.0
        %1175 = vmatpush1.msra.mxu0 0.0
        %1176 = vmatprep.subr.mxu0 0.0
        %1177 = vmatpush1.msra.mxu0 0.0
        %1178 = vmatprep.subr.mxu0 0.0
        %1179 = vmatpush1.msra.mxu0 0.0
        %1180 = vmatprep.subr.mxu0 0.0
        %1181 = vmatpush1.msra.mxu0 0.0
        %1182 = vmatprep.subr.mxu0 0.0
        %1183 = vmatpush1.msra.mxu0 0.0
        %1184 = vmatprep.subr.mxu0 0.0
        %1185 = vmatpush1.msra.mxu0 0.0
        %1186 = vmatprep.subr.mxu0 0.0
        %1187 = vmatpush1.msra.mxu0 0.0
        %1188 = vmatprep.subr.mxu0 0.0
        %1189 = vmatpush1.msra.mxu0 0.0
        %1190 = vmatprep.subr.mxu0 0.0
        %1191 = vmatpush1.msra.mxu0 0.0
        %1192 = vmatprep.mubr.f32.mxu0 0.0
        %1193 = vmatmul.mubr.f32.gmra.mrb[0].mxu0 %v1117
        %v1194 = vpop.f32.mrb[0].mxu0
        %v1195 = vadd.f32 %v1098, %v1194
        %v1196 = vpop.f32.mrb[0].mxu0
        %v1197 = vadd.f32 %v1098, %v1196
        %1198 = vmatprep.mubr.f32.mxu0 0.0
        %1199 = vmatmul.mubr.f32.gmra.mrb[0].mxu0 %v1120
        %v1200 = vpop.f32.mrb[0].mxu0
        %v1201 = vadd.f32 %v1103, %v1200
        %v1202 = vpop.f32.mrb[0].mxu0
        %v1203 = vadd.f32 %v1103, %v1202
        %1204 = vmatprep.mubr.f32.mxu0 0.0
        %1205 = vmatmul.mubr.f32.gmra.mrb[0].mxu0 %v1123
        %v1206 = vpop.f32.mrb[0].mxu0
        %v1207 = vadd.f32 %v1108, %v1206
        %v1208 = vpop.f32.mrb[0].mxu0
        %v1209 = vadd.f32 %v1108, %v1208
        %1210 = vmatprep.mubr.f32.mxu0 0.0
        %1211 = vmatmul.mubr.f32.gmra.mrb[0].mxu0 %v1126
        %v1212 = vpop.f32.mrb[0].mxu0
        %v1213 = vadd.f32 %v1113, %v1212
        %v1214 = vpop.f32.mrb[0].mxu0
        %v1215 = vadd.f32 %v1113, %v1214
        %1216 = vdwg.mxu0
        %1217 = vmatprep.subr.mxu0 %v1024
        %1218 = vmatpush1.msra.mxu0 %v1023
        %1219 = vmatprep.subr.mxu0 %v1040
        %1220 = vmatpush1.msra.mxu0 %v1039
        %1221 = vmatprep.subr.mxu0 %v1056
        %1222 = vmatpush1.msra.mxu0 %v1055
        %1223 = vmatprep.subr.mxu0 %v1072
        %1224 = vmatpush1.msra.mxu0 %v1071
        %1225 = vmatprep.subr.mxu0 0.0
        %1226 = vmatpush1.msra.mxu0 0.0
        %1227 = vmatprep.subr.mxu0 0.0
        %1228 = vmatpush1.msra.mxu0 0.0
        %1229 = vmatprep.subr.mxu0 0.0
        %1230 = vmatpush1.msra.mxu0 0.0
        %1231 = vmatprep.subr.mxu0 0.0
        %1232 = vmatpush1.msra.mxu0 0.0
        %1233 = vmatprep.subr.mxu0 0.0
        %1234 = vmatpush1.msra.mxu0 0.0
        %1235 = vmatprep.subr.mxu0 0.0
        %1236 = vmatpush1.msra.mxu0 0.0
        %1237 = vmatprep.subr.mxu0 0.0
        %1238 = vmatpush1.msra.mxu0 0.0
        %1239 = vmatprep.subr.mxu0 0.0
        %1240 = vmatpush1.msra.mxu0 0.0
        %1241 = vmatprep.subr.mxu0 0.0
        %1242 = vmatpush1.msra.mxu0 0.0
        %1243 = vmatprep.subr.mxu0 0.0
        %1244 = vmatpush1.msra.mxu0 0.0
        %1245 = vmatprep.subr.mxu0 0.0
        %1246 = vmatpush1.msra.mxu0 0.0
        %1247 = vmatprep.subr.mxu0 0.0
        %1248 = vmatpush1.msra.mxu0 0.0
        %1249 = vmatprep.subr.mxu0 0.0
        %1250 = vmatpush1.msra.mxu0 0.0
        %1251 = vmatprep.subr.mxu0 0.0
        %1252 = vmatpush1.msra.mxu0 0.0
        %1253 = vmatprep.subr.mxu0 0.0
        %1254 = vmatpush1.msra.mxu0 0.0
        %1255 = vmatprep.subr.mxu0 0.0
        %1256 = vmatpush1.msra.mxu0 0.0
        %1257 = vmatprep.subr.mxu0 0.0
        %1258 = vmatpush1.msra.mxu0 0.0
        %1259 = vmatprep.subr.mxu0 0.0
        %1260 = vmatpush1.msra.mxu0 0.0
        %1261 = vmatprep.subr.mxu0 0.0
        %1262 = vmatpush1.msra.mxu0 0.0
        %1263 = vmatprep.subr.mxu0 0.0
        %1264 = vmatpush1.msra.mxu0 0.0
        %1265 = vmatprep.subr.mxu0 0.0
        %1266 = vmatpush1.msra.mxu0 0.0
        %1267 = vmatprep.subr.mxu0 0.0
        %1268 = vmatpush1.msra.mxu0 0.0
        %1269 = vmatprep.subr.mxu0 0.0
        %1270 = vmatpush1.msra.mxu0 0.0
        %1271 = vmatprep.subr.mxu0 0.0
        %1272 = vmatpush1.msra.mxu0 0.0
        %1273 = vmatprep.subr.mxu0 0.0
        %1274 = vmatpush1.msra.mxu0 0.0
        %1275 = vmatprep.subr.mxu0 0.0
        %1276 = vmatpush1.msra.mxu0 0.0
        %1277 = vmatprep.subr.mxu0 0.0
        %1278 = vmatpush1.msra.mxu0 0.0
        %1279 = vmatprep.subr.mxu0 0.0
        %1280 = vmatpush1.msra.mxu0 0.0
        %1281 = vmatprep.mubr.f32.mxu0 0.0
        %1282 = vmatmul.mubr.f32.gmra.mrb[0].mxu0 %v1117
        %v1283 = vpop.f32.mrb[0].mxu0
        %v1284 = vadd.f32 %v1098, %v1283
        %v1285 = vpop.f32.mrb[0].mxu0
        %v1286 = vadd.f32 %v1098, %v1285
        %1287 = vmatprep.mubr.f32.mxu0 0.0
        %1288 = vmatmul.mubr.f32.gmra.mrb[0].mxu0 %v1120
        %v1289 = vpop.f32.mrb[0].mxu0
        %v1290 = vadd.f32 %v1103, %v1289
        %v1291 = vpop.f32.mrb[0].mxu0
        %v1292 = vadd.f32 %v1103, %v1291
        %1293 = vmatprep.mubr.f32.mxu0 0.0
        %1294 = vmatmul.mubr.f32.gmra.mrb[0].mxu0 %v1123
        %v1295 = vpop.f32.mrb[0].mxu0
        %v1296 = vadd.f32 %v1108, %v1295
        %v1297 = vpop.f32.mrb[0].mxu0
        %v1298 = vadd.f32 %v1108, %v1297
        %1299 = vmatprep.mubr.f32.mxu0 0.0
        %1300 = vmatmul.mubr.f32.gmra.mrb[0].mxu0 %v1126
        %v1301 = vpop.f32.mrb[0].mxu0
        %v1302 = vadd.f32 %v1113, %v1301
        %v1303 = vpop.f32.mrb[0].mxu0
        %v1304 = vadd.f32 %v1113, %v1303
        %1305 = vdwg.mxu0
        %1306 = vmatprep.subr.mxu0 %v1026
        %1307 = vmatpush1.msra.mxu0 %v1025
        %1308 = vmatprep.subr.mxu0 %v1042
        %1309 = vmatpush1.msra.mxu0 %v1041
        %1310 = vmatprep.subr.mxu0 %v1058
        %1311 = vmatpush1.msra.mxu0 %v1057
        %1312 = vmatprep.subr.mxu0 %v1074
        %1313 = vmatpush1.msra.mxu0 %v1073
        %1314 = vmatprep.subr.mxu0 0.0
        %1315 = vmatpush1.msra.mxu0 0.0
        %1316 = vmatprep.subr.mxu0 0.0
        %1317 = vmatpush1.msra.mxu0 0.0
        %1318 = vmatprep.subr.mxu0 0.0
        %1319 = vmatpush1.msra.mxu0 0.0
        %1320 = vmatprep.subr.mxu0 0.0
        %1321 = vmatpush1.msra.mxu0 0.0
        %1322 = vmatprep.subr.mxu0 0.0
        %1323 = vmatpush1.msra.mxu0 0.0
        %1324 = vmatprep.subr.mxu0 0.0
        %1325 = vmatpush1.msra.mxu0 0.0
        %1326 = vmatprep.subr.mxu0 0.0
        %1327 = vmatpush1.msra.mxu0 0.0
        %1328 = vmatprep.subr.mxu0 0.0
        %1329 = vmatpush1.msra.mxu0 0.0
        %1330 = vmatprep.subr.mxu0 0.0
        %1331 = vmatpush1.msra.mxu0 0.0
        %1332 = vmatprep.subr.mxu0 0.0
        %1333 = vmatpush1.msra.mxu0 0.0
        %1334 = vmatprep.subr.mxu0 0.0
        %1335 = vmatpush1.msra.mxu0 0.0
        %1336 = vmatprep.subr.mxu0 0.0
        %1337 = vmatpush1.msra.mxu0 0.0
        %1338 = vmatprep.subr.mxu0 0.0
        %1339 = vmatpush1.msra.mxu0 0.0
        %1340 = vmatprep.subr.mxu0 0.0
        %1341 = vmatpush1.msra.mxu0 0.0
        %1342 = vmatprep.subr.mxu0 0.0
        %1343 = vmatpush1.msra.mxu0 0.0
        %1344 = vmatprep.subr.mxu0 0.0
        %1345 = vmatpush1.msra.mxu0 0.0
        %1346 = vmatprep.subr.mxu0 0.0
        %1347 = vmatpush1.msra.mxu0 0.0
        %1348 = vmatprep.subr.mxu0 0.0
        %1349 = vmatpush1.msra.mxu0 0.0
        %1350 = vmatprep.subr.mxu0 0.0
        %1351 = vmatpush1.msra.mxu0 0.0
        %1352 = vmatprep.subr.mxu0 0.0
        %1353 = vmatpush1.msra.mxu0 0.0
        %1354 = vmatprep.subr.mxu0 0.0
        %1355 = vmatpush1.msra.mxu0 0.0
        %1356 = vmatprep.subr.mxu0 0.0
        %1357 = vmatpush1.msra.mxu0 0.0
        %1358 = vmatprep.subr.mxu0 0.0
        %1359 = vmatpush1.msra.mxu0 0.0
        %1360 = vmatprep.subr.mxu0 0.0
        %1361 = vmatpush1.msra.mxu0 0.0
        %1362 = vmatprep.subr.mxu0 0.0
        %1363 = vmatpush1.msra.mxu0 0.0
        %1364 = vmatprep.subr.mxu0 0.0
        %1365 = vmatpush1.msra.mxu0 0.0
        %1366 = vmatprep.subr.mxu0 0.0
        %1367 = vmatpush1.msra.mxu0 0.0
        %1368 = vmatprep.subr.mxu0 0.0
        %1369 = vmatpush1.msra.mxu0 0.0
        %1370 = vmatprep.mubr.f32.mxu0 0.0
        %1371 = vmatmul.mubr.f32.gmra.mrb[0].mxu0 %v1117
        %v1372 = vpop.f32.mrb[0].mxu0
        %v1373 = vadd.f32 %v1098, %v1372
        %v1374 = vpop.f32.mrb[0].mxu0
        %v1375 = vadd.f32 %v1098, %v1374
        %1376 = vmatprep.mubr.f32.mxu0 0.0
        %1377 = vmatmul.mubr.f32.gmra.mrb[0].mxu0 %v1120
        %v1378 = vpop.f32.mrb[0].mxu0
        %v1379 = vadd.f32 %v1103, %v1378
        %v1380 = vpop.f32.mrb[0].mxu0
        %v1381 = vadd.f32 %v1103, %v1380
        %1382 = vmatprep.mubr.f32.mxu0 0.0
        %1383 = vmatmul.mubr.f32.gmra.mrb[0].mxu0 %v1123
        %v1384 = vpop.f32.mrb[0].mxu0
        %v1385 = vadd.f32 %v1108, %v1384
        %v1386 = vpop.f32.mrb[0].mxu0
        %v1387 = vadd.f32 %v1108, %v1386
        %1388 = vmatprep.mubr.f32.mxu0 0.0
        %1389 = vmatmul.mubr.f32.gmra.mrb[0].mxu0 %v1126
        %v1390 = vpop.f32.mrb[0].mxu0
        %v1391 = vadd.f32 %v1113, %v1390
        %v1392 = vpop.f32.mrb[0].mxu0
        %v1393 = vadd.f32 %v1113, %v1392
        %1394 = vdwg.mxu0
        %1395 = vmatprep.subr.mxu0 %v1028
        %1396 = vmatpush1.msra.mxu0 %v1027
        %1397 = vmatprep.subr.mxu0 %v1044
        %1398 = vmatpush1.msra.mxu0 %v1043
        %1399 = vmatprep.subr.mxu0 %v1060
        %1400 = vmatpush1.msra.mxu0 %v1059
        %1401 = vmatprep.subr.mxu0 %v1076
        %1402 = vmatpush1.msra.mxu0 %v1075
        %1403 = vmatprep.subr.mxu0 0.0
        %1404 = vmatpush1.msra.mxu0 0.0
        %1405 = vmatprep.subr.mxu0 0.0
        %1406 = vmatpush1.msra.mxu0 0.0
        %1407 = vmatprep.subr.mxu0 0.0
        %1408 = vmatpush1.msra.mxu0 0.0
        %1409 = vmatprep.subr.mxu0 0.0
        %1410 = vmatpush1.msra.mxu0 0.0
        %1411 = vmatprep.subr.mxu0 0.0
        %1412 = vmatpush1.msra.mxu0 0.0
        %1413 = vmatprep.subr.mxu0 0.0
        %1414 = vmatpush1.msra.mxu0 0.0
        %1415 = vmatprep.subr.mxu0 0.0
        %1416 = vmatpush1.msra.mxu0 0.0
        %1417 = vmatprep.subr.mxu0 0.0
        %1418 = vmatpush1.msra.mxu0 0.0
        %1419 = vmatprep.subr.mxu0 0.0
        %1420 = vmatpush1.msra.mxu0 0.0
        %1421 = vmatprep.subr.mxu0 0.0
        %1422 = vmatpush1.msra.mxu0 0.0
        %1423 = vmatprep.subr.mxu0 0.0
        %1424 = vmatpush1.msra.mxu0 0.0
        %1425 = vmatprep.subr.mxu0 0.0
        %1426 = vmatpush1.msra.mxu0 0.0
        %1427 = vmatprep.subr.mxu0 0.0
        %1428 = vmatpush1.msra.mxu0 0.0
        %1429 = vmatprep.subr.mxu0 0.0
        %1430 = vmatpush1.msra.mxu0 0.0
        %1431 = vmatprep.subr.mxu0 0.0
        %1432 = vmatpush1.msra.mxu0 0.0
        %1433 = vmatprep.subr.mxu0 0.0
        %1434 = vmatpush1.msra.mxu0 0.0
        %1435 = vmatprep.subr.mxu0 0.0
        %1436 = vmatpush1.msra.mxu0 0.0
        %1437 = vmatprep.subr.mxu0 0.0
        %1438 = vmatpush1.msra.mxu0 0.0
        %1439 = vmatprep.subr.mxu0 0.0
        %1440 = vmatpush1.msra.mxu0 0.0
        %1441 = vmatprep.subr.mxu0 0.0
        %1442 = vmatpush1.msra.mxu0 0.0
        %1443 = vmatprep.subr.mxu0 0.0
        %1444 = vmatpush1.msra.mxu0 0.0
        %1445 = vmatprep.subr.mxu0 0.0
        %1446 = vmatpush1.msra.mxu0 0.0
        %1447 = vmatprep.subr.mxu0 0.0
        %1448 = vmatpush1.msra.mxu0 0.0
        %1449 = vmatprep.subr.mxu0 0.0
        %1450 = vmatpush1.msra.mxu0 0.0
        %1451 = vmatprep.subr.mxu0 0.0
        %1452 = vmatpush1.msra.mxu0 0.0
        %1453 = vmatprep.subr.mxu0 0.0
        %1454 = vmatpush1.msra.mxu0 0.0
        %1455 = vmatprep.subr.mxu0 0.0
        %1456 = vmatpush1.msra.mxu0 0.0
        %1457 = vmatprep.subr.mxu0 0.0
        %1458 = vmatpush1.msra.mxu0 0.0
        %1459 = vmatprep.mubr.f32.mxu0 0.0
        %1460 = vmatmul.mubr.f32.gmra.mrb[0].mxu0 %v1117
        %v1461 = vpop.f32.mrb[0].mxu0
        %v1462 = vadd.f32 %v1098, %v1461
        %v1463 = vpop.f32.mrb[0].mxu0
        %v1464 = vadd.f32 %v1098, %v1463
        %1465 = vmatprep.mubr.f32.mxu0 0.0
        %1466 = vmatmul.mubr.f32.gmra.mrb[0].mxu0 %v1120
        %v1467 = vpop.f32.mrb[0].mxu0
        %v1468 = vadd.f32 %v1103, %v1467
        %v1469 = vpop.f32.mrb[0].mxu0
        %v1470 = vadd.f32 %v1103, %v1469
        %1471 = vmatprep.mubr.f32.mxu0 0.0
        %1472 = vmatmul.mubr.f32.gmra.mrb[0].mxu0 %v1123
        %v1473 = vpop.f32.mrb[0].mxu0
        %v1474 = vadd.f32 %v1108, %v1473
        %v1475 = vpop.f32.mrb[0].mxu0
        %v1476 = vadd.f32 %v1108, %v1475
        %1477 = vmatprep.mubr.f32.mxu0 0.0
        %1478 = vmatmul.mubr.f32.gmra.mrb[0].mxu0 %v1126
        %v1479 = vpop.f32.mrb[0].mxu0
        %v1480 = vadd.f32 %v1113, %v1479
        %v1481 = vpop.f32.mrb[0].mxu0
        %v1482 = vadd.f32 %v1113, %v1481
        %1483 = vdwg.mxu0
        %1484 = vmatprep.subr.mxu0 %v1030
        %1485 = vmatpush1.msra.mxu0 %v1029
        %1486 = vmatprep.subr.mxu0 %v1046
        %1487 = vmatpush1.msra.mxu0 %v1045
        %1488 = vmatprep.subr.mxu0 %v1062
        %1489 = vmatpush1.msra.mxu0 %v1061
        %1490 = vmatprep.subr.mxu0 %v1078
        %1491 = vmatpush1.msra.mxu0 %v1077
        %1492 = vmatprep.subr.mxu0 0.0
        %1493 = vmatpush1.msra.mxu0 0.0
        %1494 = vmatprep.subr.mxu0 0.0
        %1495 = vmatpush1.msra.mxu0 0.0
        %1496 = vmatprep.subr.mxu0 0.0
        %1497 = vmatpush1.msra.mxu0 0.0
        %1498 = vmatprep.subr.mxu0 0.0
        %1499 = vmatpush1.msra.mxu0 0.0
        %1500 = vmatprep.subr.mxu0 0.0
        %1501 = vmatpush1.msra.mxu0 0.0
        %1502 = vmatprep.subr.mxu0 0.0
        %1503 = vmatpush1.msra.mxu0 0.0
        %1504 = vmatprep.subr.mxu0 0.0
        %1505 = vmatpush1.msra.mxu0 0.0
        %1506 = vmatprep.subr.mxu0 0.0
        %1507 = vmatpush1.msra.mxu0 0.0
        %1508 = vmatprep.subr.mxu0 0.0
        %1509 = vmatpush1.msra.mxu0 0.0
        %1510 = vmatprep.subr.mxu0 0.0
        %1511 = vmatpush1.msra.mxu0 0.0
        %1512 = vmatprep.subr.mxu0 0.0
        %1513 = vmatpush1.msra.mxu0 0.0
        %1514 = vmatprep.subr.mxu0 0.0
        %1515 = vmatpush1.msra.mxu0 0.0
        %1516 = vmatprep.subr.mxu0 0.0
        %1517 = vmatpush1.msra.mxu0 0.0
        %1518 = vmatprep.subr.mxu0 0.0
        %1519 = vmatpush1.msra.mxu0 0.0
        %1520 = vmatprep.subr.mxu0 0.0
        %1521 = vmatpush1.msra.mxu0 0.0
        %1522 = vmatprep.subr.mxu0 0.0
        %1523 = vmatpush1.msra.mxu0 0.0
        %1524 = vmatprep.subr.mxu0 0.0
        %1525 = vmatpush1.msra.mxu0 0.0
        %1526 = vmatprep.subr.mxu0 0.0
        %1527 = vmatpush1.msra.mxu0 0.0
        %1528 = vmatprep.subr.mxu0 0.0
        %1529 = vmatpush1.msra.mxu0 0.0
        %1530 = vmatprep.subr.mxu0 0.0
        %1531 = vmatpush1.msra.mxu0 0.0
        %1532 = vmatprep.subr.mxu0 0.0
        %1533 = vmatpush1.msra.mxu0 0.0
        %1534 = vmatprep.subr.mxu0 0.0
        %1535 = vmatpush1.msra.mxu0 0.0
        %1536 = vmatprep.subr.mxu0 0.0
        %1537 = vmatpush1.msra.mxu0 0.0
        %1538 = vmatprep.subr.mxu0 0.0
        %1539 = vmatpush1.msra.mxu0 0.0
        %1540 = vmatprep.subr.mxu0 0.0
        %1541 = vmatpush1.msra.mxu0 0.0
        %1542 = vmatprep.subr.mxu0 0.0
        %1543 = vmatpush1.msra.mxu0 0.0
        %1544 = vmatprep.subr.mxu0 0.0
        %1545 = vmatpush1.msra.mxu0 0.0
        %1546 = vmatprep.subr.mxu0 0.0
        %1547 = vmatpush1.msra.mxu0 0.0
        %1548 = vmatprep.mubr.f32.mxu0 0.0
        %1549 = vmatmul.mubr.f32.gmra.mrb[0].mxu0 %v1117
        %v1550 = vpop.f32.mrb[0].mxu0
        %v1551 = vadd.f32 %v1098, %v1550
        %v1552 = vpop.f32.mrb[0].mxu0
        %v1553 = vadd.f32 %v1098, %v1552
        %1554 = vmatprep.mubr.f32.mxu0 0.0
        %1555 = vmatmul.mubr.f32.gmra.mrb[0].mxu0 %v1120
        %v1556 = vpop.f32.mrb[0].mxu0
        %v1557 = vadd.f32 %v1103, %v1556
        %v1558 = vpop.f32.mrb[0].mxu0
        %v1559 = vadd.f32 %v1103, %v1558
        %1560 = vmatprep.mubr.f32.mxu0 0.0
        %1561 = vmatmul.mubr.f32.gmra.mrb[0].mxu0 %v1123
        %v1562 = vpop.f32.mrb[0].mxu0
        %v1563 = vadd.f32 %v1108, %v1562
        %v1564 = vpop.f32.mrb[0].mxu0
        %v1565 = vadd.f32 %v1108, %v1564
        %1566 = vmatprep.mubr.f32.mxu0 0.0
        %1567 = vmatmul.mubr.f32.gmra.mrb[0].mxu0 %v1126
        %v1568 = vpop.f32.mrb[0].mxu0
        %v1569 = vadd.f32 %v1113, %v1568
        %v1570 = vpop.f32.mrb[0].mxu0
        %v1571 = vadd.f32 %v1113, %v1570
        %1572 = vdwg.mxu0
        %1573 = vmatprep.subr.mxu0 %v1032
        %1574 = vmatpush1.msra.mxu0 %v1031
        %1575 = vmatprep.subr.mxu0 %v1048
        %1576 = vmatpush1.msra.mxu0 %v1047
        %1577 = vmatprep.subr.mxu0 %v1064
        %1578 = vmatpush1.msra.mxu0 %v1063
        %1579 = vmatprep.subr.mxu0 %v1080
        %1580 = vmatpush1.msra.mxu0 %v1079
        %1581 = vmatprep.subr.mxu0 0.0
        %1582 = vmatpush1.msra.mxu0 0.0
        %1583 = vmatprep.subr.mxu0 0.0
        %1584 = vmatpush1.msra.mxu0 0.0
        %1585 = vmatprep.subr.mxu0 0.0
        %1586 = vmatpush1.msra.mxu0 0.0
        %1587 = vmatprep.subr.mxu0 0.0
        %1588 = vmatpush1.msra.mxu0 0.0
        %1589 = vmatprep.subr.mxu0 0.0
        %1590 = vmatpush1.msra.mxu0 0.0
        %1591 = vmatprep.subr.mxu0 0.0
        %1592 = vmatpush1.msra.mxu0 0.0
        %1593 = vmatprep.subr.mxu0 0.0
        %1594 = vmatpush1.msra.mxu0 0.0
        %1595 = vmatprep.subr.mxu0 0.0
        %1596 = vmatpush1.msra.mxu0 0.0
        %1597 = vmatprep.subr.mxu0 0.0
        %1598 = vmatpush1.msra.mxu0 0.0
        %1599 = vmatprep.subr.mxu0 0.0
        %1600 = vmatpush1.msra.mxu0 0.0
        %1601 = vmatprep.subr.mxu0 0.0
        %1602 = vmatpush1.msra.mxu0 0.0
        %1603 = vmatprep.subr.mxu0 0.0
        %1604 = vmatpush1.msra.mxu0 0.0
        %1605 = vmatprep.subr.mxu0 0.0
        %1606 = vmatpush1.msra.mxu0 0.0
        %1607 = vmatprep.subr.mxu0 0.0
        %1608 = vmatpush1.msra.mxu0 0.0
        %1609 = vmatprep.subr.mxu0 0.0
        %1610 = vmatpush1.msra.mxu0 0.0
        %1611 = vmatprep.subr.mxu0 0.0
        %1612 = vmatpush1.msra.mxu0 0.0
        %1613 = vmatprep.subr.mxu0 0.0
        %1614 = vmatpush1.msra.mxu0 0.0
        %1615 = vmatprep.subr.mxu0 0.0
        %1616 = vmatpush1.msra.mxu0 0.0
        %1617 = vmatprep.subr.mxu0 0.0
        %1618 = vmatpush1.msra.mxu0 0.0
        %1619 = vmatprep.subr.mxu0 0.0
        %1620 = vmatpush1.msra.mxu0 0.0
        %1621 = vmatprep.subr.mxu0 0.0
        %1622 = vmatpush1.msra.mxu0 0.0
        %1623 = vmatprep.subr.mxu0 0.0
        %1624 = vmatpush1.msra.mxu0 0.0
        %1625 = vmatprep.subr.mxu0 0.0
        %1626 = vmatpush1.msra.mxu0 0.0
        %1627 = vmatprep.subr.mxu0 0.0
        %1628 = vmatpush1.msra.mxu0 0.0
        %1629 = vmatprep.subr.mxu0 0.0
        %1630 = vmatpush1.msra.mxu0 0.0
        %1631 = vmatprep.subr.mxu0 0.0
        %1632 = vmatpush1.msra.mxu0 0.0
        %1633 = vmatprep.subr.mxu0 0.0
        %1634 = vmatpush1.msra.mxu0 0.0
        %1635 = vmatprep.subr.mxu0 0.0
        %1636 = vmatpush1.msra.mxu0 0.0
        %1637 = vmatprep.mubr.f32.mxu0 0.0
        %1638 = vmatmul.mubr.f32.gmra.mrb[0].mxu0 %v1117
        %v1639 = vpop.f32.mrb[0].mxu0
        %v1640 = vadd.f32 %v1098, %v1639
        %v1641 = vpop.f32.mrb[0].mxu0
        %v1642 = vadd.f32 %v1098, %v1641
        %1643 = vmatprep.mubr.f32.mxu0 0.0
        %1644 = vmatmul.mubr.f32.gmra.mrb[0].mxu0 %v1120
        %v1645 = vpop.f32.mrb[0].mxu0
        %v1646 = vadd.f32 %v1103, %v1645
        %v1647 = vpop.f32.mrb[0].mxu0
        %v1648 = vadd.f32 %v1103, %v1647
        %1649 = vmatprep.mubr.f32.mxu0 0.0
        %1650 = vmatmul.mubr.f32.gmra.mrb[0].mxu0 %v1123
        %v1651 = vpop.f32.mrb[0].mxu0
        %v1652 = vadd.f32 %v1108, %v1651
        %v1653 = vpop.f32.mrb[0].mxu0
        %v1654 = vadd.f32 %v1108, %v1653
        %1655 = vmatprep.mubr.f32.mxu0 0.0
        %1656 = vmatmul.mubr.f32.gmra.mrb[0].mxu0 %v1126
        %v1657 = vpop.f32.mrb[0].mxu0
        %v1658 = vadd.f32 %v1113, %v1657
        %v1659 = vpop.f32.mrb[0].mxu0
        %v1660 = vadd.f32 %v1113, %v1659
        %1661 = vdwg.mxu0
        %1662 = vmatprep.subr.mxu0 %v1034
        %1663 = vmatpush1.msra.mxu0 %v1033
        %1664 = vmatprep.subr.mxu0 %v1050
        %1665 = vmatpush1.msra.mxu0 %v1049
        %1666 = vmatprep.subr.mxu0 %v1066
        %1667 = vmatpush1.msra.mxu0 %v1065
        %1668 = vmatprep.subr.mxu0 %v1082
        %1669 = vmatpush1.msra.mxu0 %v1081
        %1670 = vmatprep.subr.mxu0 0.0
        %1671 = vmatpush1.msra.mxu0 0.0
        %1672 = vmatprep.subr.mxu0 0.0
        %1673 = vmatpush1.msra.mxu0 0.0
        %1674 = vmatprep.subr.mxu0 0.0
        %1675 = vmatpush1.msra.mxu0 0.0
        %1676 = vmatprep.subr.mxu0 0.0
        %1677 = vmatpush1.msra.mxu0 0.0
        %1678 = vmatprep.subr.mxu0 0.0
        %1679 = vmatpush1.msra.mxu0 0.0
        %1680 = vmatprep.subr.mxu0 0.0
        %1681 = vmatpush1.msra.mxu0 0.0
        %1682 = vmatprep.subr.mxu0 0.0
        %1683 = vmatpush1.msra.mxu0 0.0
        %1684 = vmatprep.subr.mxu0 0.0
        %1685 = vmatpush1.msra.mxu0 0.0
        %1686 = vmatprep.subr.mxu0 0.0
        %1687 = vmatpush1.msra.mxu0 0.0
        %1688 = vmatprep.subr.mxu0 0.0
        %1689 = vmatpush1.msra.mxu0 0.0
        %1690 = vmatprep.subr.mxu0 0.0
        %1691 = vmatpush1.msra.mxu0 0.0
        %1692 = vmatprep.subr.mxu0 0.0
        %1693 = vmatpush1.msra.mxu0 0.0
        %1694 = vmatprep.subr.mxu0 0.0
        %1695 = vmatpush1.msra.mxu0 0.0
        %1696 = vmatprep.subr.mxu0 0.0
        %1697 = vmatpush1.msra.mxu0 0.0
        %1698 = vmatprep.subr.mxu0 0.0
        %1699 = vmatpush1.msra.mxu0 0.0
        %1700 = vmatprep.subr.mxu0 0.0
        %1701 = vmatpush1.msra.mxu0 0.0
        %1702 = vmatprep.subr.mxu0 0.0
        %1703 = vmatpush1.msra.mxu0 0.0
        %1704 = vmatprep.subr.mxu0 0.0
        %1705 = vmatpush1.msra.mxu0 0.0
        %1706 = vmatprep.subr.mxu0 0.0
        %1707 = vmatpush1.msra.mxu0 0.0
        %1708 = vmatprep.subr.mxu0 0.0
        %1709 = vmatpush1.msra.mxu0 0.0
        %1710 = vmatprep.subr.mxu0 0.0
        %1711 = vmatpush1.msra.mxu0 0.0
        %1712 = vmatprep.subr.mxu0 0.0
        %1713 = vmatpush1.msra.mxu0 0.0
        %1714 = vmatprep.subr.mxu0 0.0
        %1715 = vmatpush1.msra.mxu0 0.0
        %1716 = vmatprep.subr.mxu0 0.0
        %1717 = vmatpush1.msra.mxu0 0.0
        %1718 = vmatprep.subr.mxu0 0.0
        %1719 = vmatpush1.msra.mxu0 0.0
        %1720 = vmatprep.subr.mxu0 0.0
        %1721 = vmatpush1.msra.mxu0 0.0
        %1722 = vmatprep.subr.mxu0 0.0
        %1723 = vmatpush1.msra.mxu0 0.0
        %1724 = vmatprep.subr.mxu0 0.0
        %1725 = vmatpush1.msra.mxu0 0.0
        %1726 = vmatprep.mubr.f32.mxu0 0.0
        %1727 = vmatmul.mubr.f32.gmra.mrb[0].mxu0 %v1117
        %v1728 = vpop.f32.mrb[0].mxu0
        %v1729 = vadd.f32 %v1098, %v1728
        %v1730 = vpop.f32.mrb[0].mxu0
        %v1731 = vadd.f32 %v1098, %v1730
        %1732 = vmatprep.mubr.f32.mxu0 0.0
        %1733 = vmatmul.mubr.f32.gmra.mrb[0].mxu0 %v1120
        %v1734 = vpop.f32.mrb[0].mxu0
        %v1735 = vadd.f32 %v1103, %v1734
        %v1736 = vpop.f32.mrb[0].mxu0
        %v1737 = vadd.f32 %v1103, %v1736
        %1738 = vmatprep.mubr.f32.mxu0 0.0
        %1739 = vmatmul.mubr.f32.gmra.mrb[0].mxu0 %v1123
        %v1740 = vpop.f32.mrb[0].mxu0
        %v1741 = vadd.f32 %v1108, %v1740
        %v1742 = vpop.f32.mrb[0].mxu0
        %v1743 = vadd.f32 %v1108, %v1742
        %1744 = vmatprep.mubr.f32.mxu0 0.0
        %1745 = vmatmul.mubr.f32.gmra.mrb[0].mxu0 %v1126
        %v1746 = vpop.f32.mrb[0].mxu0
        %v1747 = vadd.f32 %v1113, %v1746
        %v1748 = vpop.f32.mrb[0].mxu0
        %v1749 = vadd.f32 %v1113, %v1748
        %1750 = vdwg.mxu0
        %1751 = vmatprep.subr.mxu0 %v1036
        %1752 = vmatpush1.msra.mxu0 %v1035
        %1753 = vmatprep.subr.mxu0 %v1052
        %1754 = vmatpush1.msra.mxu0 %v1051
        %1755 = vmatprep.subr.mxu0 %v1068
        %1756 = vmatpush1.msra.mxu0 %v1067
        %1757 = vmatprep.subr.mxu0 %v1084
        %1758 = vmatpush1.msra.mxu0 %v1083
        %1759 = vmatprep.subr.mxu0 0.0
        %1760 = vmatpush1.msra.mxu0 0.0
        %1761 = vmatprep.subr.mxu0 0.0
        %1762 = vmatpush1.msra.mxu0 0.0
        %1763 = vmatprep.subr.mxu0 0.0
        %1764 = vmatpush1.msra.mxu0 0.0
        %1765 = vmatprep.subr.mxu0 0.0
        %1766 = vmatpush1.msra.mxu0 0.0
        %1767 = vmatprep.subr.mxu0 0.0
        %1768 = vmatpush1.msra.mxu0 0.0
        %1769 = vmatprep.subr.mxu0 0.0
        %1770 = vmatpush1.msra.mxu0 0.0
        %1771 = vmatprep.subr.mxu0 0.0
        %1772 = vmatpush1.msra.mxu0 0.0
        %1773 = vmatprep.subr.mxu0 0.0
        %1774 = vmatpush1.msra.mxu0 0.0
        %1775 = vmatprep.subr.mxu0 0.0
        %1776 = vmatpush1.msra.mxu0 0.0
        %1777 = vmatprep.subr.mxu0 0.0
        %1778 = vmatpush1.msra.mxu0 0.0
        %1779 = vmatprep.subr.mxu0 0.0
        %1780 = vmatpush1.msra.mxu0 0.0
        %1781 = vmatprep.subr.mxu0 0.0
        %1782 = vmatpush1.msra.mxu0 0.0
        %1783 = vmatprep.subr.mxu0 0.0
        %1784 = vmatpush1.msra.mxu0 0.0
        %1785 = vmatprep.subr.mxu0 0.0
        %1786 = vmatpush1.msra.mxu0 0.0
        %1787 = vmatprep.subr.mxu0 0.0
        %1788 = vmatpush1.msra.mxu0 0.0
        %1789 = vmatprep.subr.mxu0 0.0
        %1790 = vmatpush1.msra.mxu0 0.0
        %1791 = vmatprep.subr.mxu0 0.0
        %1792 = vmatpush1.msra.mxu0 0.0
        %1793 = vmatprep.subr.mxu0 0.0
        %1794 = vmatpush1.msra.mxu0 0.0
        %1795 = vmatprep.subr.mxu0 0.0
        %1796 = vmatpush1.msra.mxu0 0.0
        %1797 = vmatprep.subr.mxu0 0.0
        %1798 = vmatpush1.msra.mxu0 0.0
        %1799 = vmatprep.subr.mxu0 0.0
        %1800 = vmatpush1.msra.mxu0 0.0
        %1801 = vmatprep.subr.mxu0 0.0
        %1802 = vmatpush1.msra.mxu0 0.0
        %1803 = vmatprep.subr.mxu0 0.0
        %1804 = vmatpush1.msra.mxu0 0.0
        %1805 = vmatprep.subr.mxu0 0.0
        %1806 = vmatpush1.msra.mxu0 0.0
        %1807 = vmatprep.subr.mxu0 0.0
        %1808 = vmatpush1.msra.mxu0 0.0
        %1809 = vmatprep.subr.mxu0 0.0
        %1810 = vmatpush1.msra.mxu0 0.0
        %1811 = vmatprep.subr.mxu0 0.0
        %1812 = vmatpush1.msra.mxu0 0.0
        %1813 = vmatprep.subr.mxu0 0.0
        %1814 = vmatpush1.msra.mxu0 0.0
        %1815 = vmatprep.mubr.f32.mxu0 0.0
        %1816 = vmatmul.mubr.f32.gmra.mrb[0].mxu0 %v1117
        %v1817 = vpop.f32.mrb[0].mxu0
        %v1818 = vadd.f32 %v1098, %v1817
        %v1819 = vpop.f32.mrb[0].mxu0
        %v1820 = vadd.f32 %v1098, %v1819
        %1821 = vmatprep.mubr.f32.mxu0 0.0
        %1822 = vmatmul.mubr.f32.gmra.mrb[0].mxu0 %v1120
        %v1823 = vpop.f32.mrb[0].mxu0
        %v1824 = vadd.f32 %v1103, %v1823
        %v1825 = vpop.f32.mrb[0].mxu0
        %v1826 = vadd.f32 %v1103, %v1825
        %1827 = vmatprep.mubr.f32.mxu0 0.0
        %1828 = vmatmul.mubr.f32.gmra.mrb[0].mxu0 %v1123
        %v1829 = vpop.f32.mrb[0].mxu0
        %v1830 = vadd.f32 %v1108, %v1829
        %v1831 = vpop.f32.mrb[0].mxu0
        %v1832 = vadd.f32 %v1108, %v1831
        %1833 = vmatprep.mubr.f32.mxu0 0.0
        %1834 = vmatmul.mubr.f32.gmra.mrb[0].mxu0 %v1126
        %v1835 = vpop.f32.mrb[0].mxu0
        %v1836 = vadd.f32 %v1113, %v1835
        %v1837 = vpop.f32.mrb[0].mxu0
        %v1838 = vadd.f32 %v1113, %v1837
        %1839 = vdwg.mxu0
        %v1840 = vmax.f32 %v1195, 0.0
        %v1841 = vmax.f32 %v1197, 0.0
        %v1842 = vmax.f32 %v1284, 0.0
        %v1843 = vmax.f32 %v1286, 0.0
        %v1844 = vmax.f32 %v1373, 0.0
        %v1845 = vmax.f32 %v1375, 0.0
        %v1846 = vmax.f32 %v1462, 0.0
        %v1847 = vmax.f32 %v1464, 0.0
        %v1848 = vmax.f32 %v1551, 0.0
        %v1849 = vmax.f32 %v1553, 0.0
        %v1850 = vmax.f32 %v1640, 0.0
        %v1851 = vmax.f32 %v1642, 0.0
        %v1852 = vmax.f32 %v1729, 0.0
        %v1853 = vmax.f32 %v1731, 0.0
        %v1854 = vmax.f32 %v1818, 0.0
        %v1855 = vmax.f32 %v1820, 0.0
        %v1856 = vmax.f32 %v1201, 0.0
        %v1857 = vmax.f32 %v1203, 0.0
        %v1858 = vmax.f32 %v1290, 0.0
        %v1859 = vmax.f32 %v1292, 0.0
        %v1860 = vmax.f32 %v1379, 0.0
        %v1861 = vmax.f32 %v1381, 0.0
        %v1862 = vmax.f32 %v1468, 0.0
        %v1863 = vmax.f32 %v1470, 0.0
        %v1864 = vmax.f32 %v1557, 0.0
        %v1865 = vmax.f32 %v1559, 0.0
        %v1866 = vmax.f32 %v1646, 0.0
        %v1867 = vmax.f32 %v1648, 0.0
        %v1868 = vmax.f32 %v1735, 0.0
        %v1869 = vmax.f32 %v1737, 0.0
        %v1870 = vmax.f32 %v1824, 0.0
        %v1871 = vmax.f32 %v1826, 0.0
        %v1872 = vmax.f32 %v1207, 0.0
        %v1873 = vmax.f32 %v1209, 0.0
        %v1874 = vmax.f32 %v1296, 0.0
        %v1875 = vmax.f32 %v1298, 0.0
        %v1876 = vmax.f32 %v1385, 0.0
        %v1877 = vmax.f32 %v1387, 0.0
        %v1878 = vmax.f32 %v1474, 0.0
        %v1879 = vmax.f32 %v1476, 0.0
        %v1880 = vmax.f32 %v1563, 0.0
        %v1881 = vmax.f32 %v1565, 0.0
        %v1882 = vmax.f32 %v1652, 0.0
        %v1883 = vmax.f32 %v1654, 0.0
        %v1884 = vmax.f32 %v1741, 0.0
        %v1885 = vmax.f32 %v1743, 0.0
        %v1886 = vmax.f32 %v1830, 0.0
        %v1887 = vmax.f32 %v1832, 0.0
        %v1888 = vmax.f32 %v1213, 0.0
        %v1889 = vmax.f32 %v1215, 0.0
        %v1890 = vmax.f32 %v1302, 0.0
        %v1891 = vmax.f32 %v1304, 0.0
        %v1892 = vmax.f32 %v1391, 0.0
        %v1893 = vmax.f32 %v1393, 0.0
        %v1894 = vmax.f32 %v1480, 0.0
        %v1895 = vmax.f32 %v1482, 0.0
        %v1896 = vmax.f32 %v1569, 0.0
        %v1897 = vmax.f32 %v1571, 0.0
        %v1898 = vmax.f32 %v1658, 0.0
        %v1899 = vmax.f32 %v1660, 0.0
        %v1900 = vmax.f32 %v1747, 0.0
        %v1901 = vmax.f32 %v1749, 0.0
        %v1902 = vmax.f32 %v1836, 0.0
        %v1903 = vmax.f32 %v1838, 0.0
        %s1904 = scalar_lea.vmem %s1, 80
        %v1905 = vld [vmem:[%s1904] sm:$0xff]
        %v1906 = vld [vmem:[%s1904 + $0x8] sm:$0xff]
        %v1907 = vld [vmem:[%s1904 + $0x10] sm:$0xff]
        %v1908 = vld [vmem:[%s1904 + $0x18] sm:$0xff]
        %s1909 = scalar_lea.vmem %s2, 80
        %v1910 = vld [vmem:[%s1909] sm:$0xff]
        %v1911 = vld [vmem:[%s1909 + $0x8] sm:$0xff]
        %v1912 = vld [vmem:[%s1909 + $0x10] sm:$0xff]
        %v1913 = vld [vmem:[%s1909 + $0x18] sm:$0xff]
        %1918 = vrot.lane.b32.xlu0 %v1905, 96
        %v1919 = vpop.permute.xlu0 %1918
        %1920 = vrot.lane.b32.xlu0 %v1906, 96
        %v1921 = vpop.permute.xlu0 %1920
        %1922 = vrot.lane.b32.xlu0 %v1907, 96
        %v1923 = vpop.permute.xlu0 %1922
        %1924 = vrot.lane.b32.xlu0 %v1908, 96
        %v1925 = vpop.permute.xlu0 %1924
        %v1926 = vsel %vm263, %v1919, 0
        %v1928 = vsel %vm263, %v1921, 0
        %v1930 = vsel %vm263, %v1923, 0
        %v1932 = vsel %vm263, %v1925, 0
        %1934 = vmatprep.subr.mxu0 %v279
        %1935 = vmatpush1.msra.mxu0 %v277
        %1936 = vmatprep.subr.mxu0 0.0
        %1937 = vmatpush1.msra.mxu0 0.0
        %1938 = vmatprep.subr.mxu0 0.0
        %1939 = vmatpush1.msra.mxu0 0.0
        %1940 = vmatprep.subr.mxu0 0.0
        %1941 = vmatpush1.msra.mxu0 0.0
        %1942 = vmatprep.subr.mxu0 0.0
        %1943 = vmatpush1.msra.mxu0 0.0
        %1944 = vmatprep.subr.mxu0 0.0
        %1945 = vmatpush1.msra.mxu0 0.0
        %1946 = vmatprep.subr.mxu0 0.0
        %1947 = vmatpush1.msra.mxu0 0.0
        %1948 = vmatprep.subr.mxu0 0.0
        %1949 = vmatpush1.msra.mxu0 0.0
        %1950 = vmatprep.subr.mxu0 0.0
        %1951 = vmatpush1.msra.mxu0 0.0
        %1952 = vmatprep.subr.mxu0 0.0
        %1953 = vmatpush1.msra.mxu0 0.0
        %1954 = vmatprep.subr.mxu0 0.0
        %1955 = vmatpush1.msra.mxu0 0.0
        %1956 = vmatprep.subr.mxu0 0.0
        %1957 = vmatpush1.msra.mxu0 0.0
        %1958 = vmatprep.subr.mxu0 0.0
        %1959 = vmatpush1.msra.mxu0 0.0
        %1960 = vmatprep.subr.mxu0 0.0
        %1961 = vmatpush1.msra.mxu0 0.0
        %1962 = vmatprep.subr.mxu0 0.0
        %1963 = vmatpush1.msra.mxu0 0.0
        %1964 = vmatprep.subr.mxu0 0.0
        %1965 = vmatpush1.msra.mxu0 0.0
        %1966 = vmatprep.subr.mxu0 0.0
        %1967 = vmatpush1.msra.mxu0 0.0
        %1968 = vmatprep.subr.mxu0 0.0
        %1969 = vmatpush1.msra.mxu0 0.0
        %1970 = vmatprep.subr.mxu0 0.0
        %1971 = vmatpush1.msra.mxu0 0.0
        %1972 = vmatprep.subr.mxu0 0.0
        %1973 = vmatpush1.msra.mxu0 0.0
        %1974 = vmatprep.subr.mxu0 0.0
        %1975 = vmatpush1.msra.mxu0 0.0
        %1976 = vmatprep.subr.mxu0 0.0
        %1977 = vmatpush1.msra.mxu0 0.0
        %1978 = vmatprep.subr.mxu0 0.0
        %1979 = vmatpush1.msra.mxu0 0.0
        %1980 = vmatprep.subr.mxu0 0.0
        %1981 = vmatpush1.msra.mxu0 0.0
        %1982 = vmatprep.subr.mxu0 0.0
        %1983 = vmatpush1.msra.mxu0 0.0
        %1984 = vmatprep.subr.mxu0 0.0
        %1985 = vmatpush1.msra.mxu0 0.0
        %1986 = vmatprep.subr.mxu0 0.0
        %1987 = vmatpush1.msra.mxu0 0.0
        %1988 = vmatprep.subr.mxu0 0.0
        %1989 = vmatpush1.msra.mxu0 0.0
        %1990 = vmatprep.subr.mxu0 0.0
        %1991 = vmatpush1.msra.mxu0 0.0
        %1992 = vmatprep.subr.mxu0 0.0
        %1993 = vmatpush1.msra.mxu0 0.0
        %1994 = vmatprep.subr.mxu0 0.0
        %1995 = vmatpush1.msra.mxu0 0.0
        %1996 = vmatprep.subr.mxu0 0.0
        %1997 = vmatpush1.msra.mxu0 0.0
        %1998 = vmatprep.mubr.f32.mxu0 0.0
        %1999 = vmatmul.mubr.f32.gmra.mrb[0].mxu0 %v1926
        %v2000 = vpop.f32.mrb[0].mxu0
        %v2001 = vadd.f32 0.0, %v2000
        %v2002 = vpop.f32.mrb[0].mxu0
        %v2003 = vadd.f32 0.0, %v2002
        %2004 = vmatprep.mubr.f32.mxu0 0.0
        %2005 = vmatmul.mubr.f32.gmra.mrb[0].mxu0 %v1928
        %v2006 = vpop.f32.mrb[0].mxu0
        %v2007 = vadd.f32 0.0, %v2006
        %v2008 = vpop.f32.mrb[0].mxu0
        %v2009 = vadd.f32 0.0, %v2008
        %2010 = vmatprep.mubr.f32.mxu0 0.0
        %2011 = vmatmul.mubr.f32.gmra.mrb[0].mxu0 %v1930
        %v2012 = vpop.f32.mrb[0].mxu0
        %v2013 = vadd.f32 0.0, %v2012
        %v2014 = vpop.f32.mrb[0].mxu0
        %v2015 = vadd.f32 0.0, %v2014
        %2016 = vmatprep.mubr.f32.mxu0 0.0
        %2017 = vmatmul.mubr.f32.gmra.mrb[0].mxu0 %v1932
        %v2018 = vpop.f32.mrb[0].mxu0
        %v2019 = vadd.f32 0.0, %v2018
        %v2020 = vpop.f32.mrb[0].mxu0
        %v2021 = vadd.f32 0.0, %v2020
        %2022 = vdwg.mxu0
        %2023 = vmatprep.subr.mxu0 %v283
        %2024 = vmatpush1.msra.mxu0 %v281
        %2025 = vmatprep.subr.mxu0 0.0
        %2026 = vmatpush1.msra.mxu0 0.0
        %2027 = vmatprep.subr.mxu0 0.0
        %2028 = vmatpush1.msra.mxu0 0.0
        %2029 = vmatprep.subr.mxu0 0.0
        %2030 = vmatpush1.msra.mxu0 0.0
        %2031 = vmatprep.subr.mxu0 0.0
        %2032 = vmatpush1.msra.mxu0 0.0
        %2033 = vmatprep.subr.mxu0 0.0
        %2034 = vmatpush1.msra.mxu0 0.0
        %2035 = vmatprep.subr.mxu0 0.0
        %2036 = vmatpush1.msra.mxu0 0.0
        %2037 = vmatprep.subr.mxu0 0.0
        %2038 = vmatpush1.msra.mxu0 0.0
        %2039 = vmatprep.subr.mxu0 0.0
        %2040 = vmatpush1.msra.mxu0 0.0
        %2041 = vmatprep.subr.mxu0 0.0
        %2042 = vmatpush1.msra.mxu0 0.0
        %2043 = vmatprep.subr.mxu0 0.0
        %2044 = vmatpush1.msra.mxu0 0.0
        %2045 = vmatprep.subr.mxu0 0.0
        %2046 = vmatpush1.msra.mxu0 0.0
        %2047 = vmatprep.subr.mxu0 0.0
        %2048 = vmatpush1.msra.mxu0 0.0
        %2049 = vmatprep.subr.mxu0 0.0
        %2050 = vmatpush1.msra.mxu0 0.0
        %2051 = vmatprep.subr.mxu0 0.0
        %2052 = vmatpush1.msra.mxu0 0.0
        %2053 = vmatprep.subr.mxu0 0.0
        %2054 = vmatpush1.msra.mxu0 0.0
        %2055 = vmatprep.subr.mxu0 0.0
        %2056 = vmatpush1.msra.mxu0 0.0
        %2057 = vmatprep.subr.mxu0 0.0
        %2058 = vmatpush1.msra.mxu0 0.0
        %2059 = vmatprep.subr.mxu0 0.0
        %2060 = vmatpush1.msra.mxu0 0.0
        %2061 = vmatprep.subr.mxu0 0.0
        %2062 = vmatpush1.msra.mxu0 0.0
        %2063 = vmatprep.subr.mxu0 0.0
        %2064 = vmatpush1.msra.mxu0 0.0
        %2065 = vmatprep.subr.mxu0 0.0
        %2066 = vmatpush1.msra.mxu0 0.0
        %2067 = vmatprep.subr.mxu0 0.0
        %2068 = vmatpush1.msra.mxu0 0.0
        %2069 = vmatprep.subr.mxu0 0.0
        %2070 = vmatpush1.msra.mxu0 0.0
        %2071 = vmatprep.subr.mxu0 0.0
        %2072 = vmatpush1.msra.mxu0 0.0
        %2073 = vmatprep.subr.mxu0 0.0
        %2074 = vmatpush1.msra.mxu0 0.0
        %2075 = vmatprep.subr.mxu0 0.0
        %2076 = vmatpush1.msra.mxu0 0.0
        %2077 = vmatprep.subr.mxu0 0.0
        %2078 = vmatpush1.msra.mxu0 0.0
        %2079 = vmatprep.subr.mxu0 0.0
        %2080 = vmatpush1.msra.mxu0 0.0
        %2081 = vmatprep.subr.mxu0 0.0
        %2082 = vmatpush1.msra.mxu0 0.0
        %2083 = vmatprep.subr.mxu0 0.0
        %2084 = vmatpush1.msra.mxu0 0.0
        %2085 = vmatprep.subr.mxu0 0.0
        %2086 = vmatpush1.msra.mxu0 0.0
        %2087 = vmatprep.mubr.f32.mxu0 0.0
        %2088 = vmatmul.mubr.f32.gmra.mrb[0].mxu0 %v1926
        %v2089 = vpop.f32.mrb[0].mxu0
        %v2090 = vadd.f32 0.0, %v2089
        %v2091 = vpop.f32.mrb[0].mxu0
        %v2092 = vadd.f32 0.0, %v2091
        %2093 = vmatprep.mubr.f32.mxu0 0.0
        %2094 = vmatmul.mubr.f32.gmra.mrb[0].mxu0 %v1928
        %v2095 = vpop.f32.mrb[0].mxu0
        %v2096 = vadd.f32 0.0, %v2095
        %v2097 = vpop.f32.mrb[0].mxu0
        %v2098 = vadd.f32 0.0, %v2097
        %2099 = vmatprep.mubr.f32.mxu0 0.0
        %2100 = vmatmul.mubr.f32.gmra.mrb[0].mxu0 %v1930
        %v2101 = vpop.f32.mrb[0].mxu0
        %v2102 = vadd.f32 0.0, %v2101
        %v2103 = vpop.f32.mrb[0].mxu0
        %v2104 = vadd.f32 0.0, %v2103
        %2105 = vmatprep.mubr.f32.mxu0 0.0
        %2106 = vmatmul.mubr.f32.gmra.mrb[0].mxu0 %v1932
        %v2107 = vpop.f32.mrb[0].mxu0
        %v2108 = vadd.f32 0.0, %v2107
        %v2109 = vpop.f32.mrb[0].mxu0
        %v2110 = vadd.f32 0.0, %v2109
        %2111 = vdwg.mxu0
        %2112 = vmatprep.subr.mxu0 %v287
        %2113 = vmatpush1.msra.mxu0 %v285
        %2114 = vmatprep.subr.mxu0 0.0
        %2115 = vmatpush1.msra.mxu0 0.0
        %2116 = vmatprep.subr.mxu0 0.0
        %2117 = vmatpush1.msra.mxu0 0.0
        %2118 = vmatprep.subr.mxu0 0.0
        %2119 = vmatpush1.msra.mxu0 0.0
        %2120 = vmatprep.subr.mxu0 0.0
        %2121 = vmatpush1.msra.mxu0 0.0
        %2122 = vmatprep.subr.mxu0 0.0
        %2123 = vmatpush1.msra.mxu0 0.0
        %2124 = vmatprep.subr.mxu0 0.0
        %2125 = vmatpush1.msra.mxu0 0.0
        %2126 = vmatprep.subr.mxu0 0.0
        %2127 = vmatpush1.msra.mxu0 0.0
        %2128 = vmatprep.subr.mxu0 0.0
        %2129 = vmatpush1.msra.mxu0 0.0
        %2130 = vmatprep.subr.mxu0 0.0
        %2131 = vmatpush1.msra.mxu0 0.0
        %2132 = vmatprep.subr.mxu0 0.0
        %2133 = vmatpush1.msra.mxu0 0.0
        %2134 = vmatprep.subr.mxu0 0.0
        %2135 = vmatpush1.msra.mxu0 0.0
        %2136 = vmatprep.subr.mxu0 0.0
        %2137 = vmatpush1.msra.mxu0 0.0
        %2138 = vmatprep.subr.mxu0 0.0
        %2139 = vmatpush1.msra.mxu0 0.0
        %2140 = vmatprep.subr.mxu0 0.0
        %2141 = vmatpush1.msra.mxu0 0.0
        %2142 = vmatprep.subr.mxu0 0.0
        %2143 = vmatpush1.msra.mxu0 0.0
        %2144 = vmatprep.subr.mxu0 0.0
        %2145 = vmatpush1.msra.mxu0 0.0
        %2146 = vmatprep.subr.mxu0 0.0
        %2147 = vmatpush1.msra.mxu0 0.0
        %2148 = vmatprep.subr.mxu0 0.0
        %2149 = vmatpush1.msra.mxu0 0.0
        %2150 = vmatprep.subr.mxu0 0.0
        %2151 = vmatpush1.msra.mxu0 0.0
        %2152 = vmatprep.subr.mxu0 0.0
        %2153 = vmatpush1.msra.mxu0 0.0
        %2154 = vmatprep.subr.mxu0 0.0
        %2155 = vmatpush1.msra.mxu0 0.0
        %2156 = vmatprep.subr.mxu0 0.0
        %2157 = vmatpush1.msra.mxu0 0.0
        %2158 = vmatprep.subr.mxu0 0.0
        %2159 = vmatpush1.msra.mxu0 0.0
        %2160 = vmatprep.subr.mxu0 0.0
        %2161 = vmatpush1.msra.mxu0 0.0
        %2162 = vmatprep.subr.mxu0 0.0
        %2163 = vmatpush1.msra.mxu0 0.0
        %2164 = vmatprep.subr.mxu0 0.0
        %2165 = vmatpush1.msra.mxu0 0.0
        %2166 = vmatprep.subr.mxu0 0.0
        %2167 = vmatpush1.msra.mxu0 0.0
        %2168 = vmatprep.subr.mxu0 0.0
        %2169 = vmatpush1.msra.mxu0 0.0
        %2170 = vmatprep.subr.mxu0 0.0
        %2171 = vmatpush1.msra.mxu0 0.0
        %2172 = vmatprep.subr.mxu0 0.0
        %2173 = vmatpush1.msra.mxu0 0.0
        %2174 = vmatprep.subr.mxu0 0.0
        %2175 = vmatpush1.msra.mxu0 0.0
        %2176 = vmatprep.mubr.f32.mxu0 0.0
        %2177 = vmatmul.mubr.f32.gmra.mrb[0].mxu0 %v1926
        %v2178 = vpop.f32.mrb[0].mxu0
        %v2179 = vadd.f32 0.0, %v2178
        %v2180 = vpop.f32.mrb[0].mxu0
        %v2181 = vadd.f32 0.0, %v2180
        %2182 = vmatprep.mubr.f32.mxu0 0.0
        %2183 = vmatmul.mubr.f32.gmra.mrb[0].mxu0 %v1928
        %v2184 = vpop.f32.mrb[0].mxu0
        %v2185 = vadd.f32 0.0, %v2184
        %v2186 = vpop.f32.mrb[0].mxu0
        %v2187 = vadd.f32 0.0, %v2186
        %2188 = vmatprep.mubr.f32.mxu0 0.0
        %2189 = vmatmul.mubr.f32.gmra.mrb[0].mxu0 %v1930
        %v2190 = vpop.f32.mrb[0].mxu0
        %v2191 = vadd.f32 0.0, %v2190
        %v2192 = vpop.f32.mrb[0].mxu0
        %v2193 = vadd.f32 0.0, %v2192
        %2194 = vmatprep.mubr.f32.mxu0 0.0
        %2195 = vmatmul.mubr.f32.gmra.mrb[0].mxu0 %v1932
        %v2196 = vpop.f32.mrb[0].mxu0
        %v2197 = vadd.f32 0.0, %v2196
        %v2198 = vpop.f32.mrb[0].mxu0
        %v2199 = vadd.f32 0.0, %v2198
        %2200 = vdwg.mxu0
        %2201 = vmatprep.subr.mxu0 %v291
        %2202 = vmatpush1.msra.mxu0 %v289
        %2203 = vmatprep.subr.mxu0 0.0
        %2204 = vmatpush1.msra.mxu0 0.0
        %2205 = vmatprep.subr.mxu0 0.0
        %2206 = vmatpush1.msra.mxu0 0.0
        %2207 = vmatprep.subr.mxu0 0.0
        %2208 = vmatpush1.msra.mxu0 0.0
        %2209 = vmatprep.subr.mxu0 0.0
        %2210 = vmatpush1.msra.mxu0 0.0
        %2211 = vmatprep.subr.mxu0 0.0
        %2212 = vmatpush1.msra.mxu0 0.0
        %2213 = vmatprep.subr.mxu0 0.0
        %2214 = vmatpush1.msra.mxu0 0.0
        %2215 = vmatprep.subr.mxu0 0.0
        %2216 = vmatpush1.msra.mxu0 0.0
        %2217 = vmatprep.subr.mxu0 0.0
        %2218 = vmatpush1.msra.mxu0 0.0
        %2219 = vmatprep.subr.mxu0 0.0
        %2220 = vmatpush1.msra.mxu0 0.0
        %2221 = vmatprep.subr.mxu0 0.0
        %2222 = vmatpush1.msra.mxu0 0.0
        %2223 = vmatprep.subr.mxu0 0.0
        %2224 = vmatpush1.msra.mxu0 0.0
        %2225 = vmatprep.subr.mxu0 0.0
        %2226 = vmatpush1.msra.mxu0 0.0
        %2227 = vmatprep.subr.mxu0 0.0
        %2228 = vmatpush1.msra.mxu0 0.0
        %2229 = vmatprep.subr.mxu0 0.0
        %2230 = vmatpush1.msra.mxu0 0.0
        %2231 = vmatprep.subr.mxu0 0.0
        %2232 = vmatpush1.msra.mxu0 0.0
        %2233 = vmatprep.subr.mxu0 0.0
        %2234 = vmatpush1.msra.mxu0 0.0
        %2235 = vmatprep.subr.mxu0 0.0
        %2236 = vmatpush1.msra.mxu0 0.0
        %2237 = vmatprep.subr.mxu0 0.0
        %2238 = vmatpush1.msra.mxu0 0.0
        %2239 = vmatprep.subr.mxu0 0.0
        %2240 = vmatpush1.msra.mxu0 0.0
        %2241 = vmatprep.subr.mxu0 0.0
        %2242 = vmatpush1.msra.mxu0 0.0
        %2243 = vmatprep.subr.mxu0 0.0
        %2244 = vmatpush1.msra.mxu0 0.0
        %2245 = vmatprep.subr.mxu0 0.0
        %2246 = vmatpush1.msra.mxu0 0.0
        %2247 = vmatprep.subr.mxu0 0.0
        %2248 = vmatpush1.msra.mxu0 0.0
        %2249 = vmatprep.subr.mxu0 0.0
        %2250 = vmatpush1.msra.mxu0 0.0
        %2251 = vmatprep.subr.mxu0 0.0
        %2252 = vmatpush1.msra.mxu0 0.0
        %2253 = vmatprep.subr.mxu0 0.0
        %2254 = vmatpush1.msra.mxu0 0.0
        %2255 = vmatprep.subr.mxu0 0.0
        %2256 = vmatpush1.msra.mxu0 0.0
        %2257 = vmatprep.subr.mxu0 0.0
        %2258 = vmatpush1.msra.mxu0 0.0
        %2259 = vmatprep.subr.mxu0 0.0
        %2260 = vmatpush1.msra.mxu0 0.0
        %2261 = vmatprep.subr.mxu0 0.0
        %2262 = vmatpush1.msra.mxu0 0.0
        %2263 = vmatprep.subr.mxu0 0.0
        %2264 = vmatpush1.msra.mxu0 0.0
        %2265 = vmatprep.mubr.f32.mxu0 0.0
        %2266 = vmatmul.mubr.f32.gmra.mrb[0].mxu0 %v1926
        %v2267 = vpop.f32.mrb[0].mxu0
        %v2268 = vadd.f32 0.0, %v2267
        %v2269 = vpop.f32.mrb[0].mxu0
        %v2270 = vadd.f32 0.0, %v2269
        %2271 = vmatprep.mubr.f32.mxu0 0.0
        %2272 = vmatmul.mubr.f32.gmra.mrb[0].mxu0 %v1928
        %v2273 = vpop.f32.mrb[0].mxu0
        %v2274 = vadd.f32 0.0, %v2273
        %v2275 = vpop.f32.mrb[0].mxu0
        %v2276 = vadd.f32 0.0, %v2275
        %2277 = vmatprep.mubr.f32.mxu0 0.0
        %2278 = vmatmul.mubr.f32.gmra.mrb[0].mxu0 %v1930
        %v2279 = vpop.f32.mrb[0].mxu0
        %v2280 = vadd.f32 0.0, %v2279
        %v2281 = vpop.f32.mrb[0].mxu0
        %v2282 = vadd.f32 0.0, %v2281
        %2283 = vmatprep.mubr.f32.mxu0 0.0
        %2284 = vmatmul.mubr.f32.gmra.mrb[0].mxu0 %v1932
        %v2285 = vpop.f32.mrb[0].mxu0
        %v2286 = vadd.f32 0.0, %v2285
        %v2287 = vpop.f32.mrb[0].mxu0
        %v2288 = vadd.f32 0.0, %v2287
        %2289 = vdwg.mxu0
        %2290 = vmatprep.subr.mxu0 %v295
        %2291 = vmatpush1.msra.mxu0 %v293
        %2292 = vmatprep.subr.mxu0 0.0
        %2293 = vmatpush1.msra.mxu0 0.0
        %2294 = vmatprep.subr.mxu0 0.0
        %2295 = vmatpush1.msra.mxu0 0.0
        %2296 = vmatprep.subr.mxu0 0.0
        %2297 = vmatpush1.msra.mxu0 0.0
        %2298 = vmatprep.subr.mxu0 0.0
        %2299 = vmatpush1.msra.mxu0 0.0
        %2300 = vmatprep.subr.mxu0 0.0
        %2301 = vmatpush1.msra.mxu0 0.0
        %2302 = vmatprep.subr.mxu0 0.0
        %2303 = vmatpush1.msra.mxu0 0.0
        %2304 = vmatprep.subr.mxu0 0.0
        %2305 = vmatpush1.msra.mxu0 0.0
        %2306 = vmatprep.subr.mxu0 0.0
        %2307 = vmatpush1.msra.mxu0 0.0
        %2308 = vmatprep.subr.mxu0 0.0
        %2309 = vmatpush1.msra.mxu0 0.0
        %2310 = vmatprep.subr.mxu0 0.0
        %2311 = vmatpush1.msra.mxu0 0.0
        %2312 = vmatprep.subr.mxu0 0.0
        %2313 = vmatpush1.msra.mxu0 0.0
        %2314 = vmatprep.subr.mxu0 0.0
        %2315 = vmatpush1.msra.mxu0 0.0
        %2316 = vmatprep.subr.mxu0 0.0
        %2317 = vmatpush1.msra.mxu0 0.0
        %2318 = vmatprep.subr.mxu0 0.0
        %2319 = vmatpush1.msra.mxu0 0.0
        %2320 = vmatprep.subr.mxu0 0.0
        %2321 = vmatpush1.msra.mxu0 0.0
        %2322 = vmatprep.subr.mxu0 0.0
        %2323 = vmatpush1.msra.mxu0 0.0
        %2324 = vmatprep.subr.mxu0 0.0
        %2325 = vmatpush1.msra.mxu0 0.0
        %2326 = vmatprep.subr.mxu0 0.0
        %2327 = vmatpush1.msra.mxu0 0.0
        %2328 = vmatprep.subr.mxu0 0.0
        %2329 = vmatpush1.msra.mxu0 0.0
        %2330 = vmatprep.subr.mxu0 0.0
        %2331 = vmatpush1.msra.mxu0 0.0
        %2332 = vmatprep.subr.mxu0 0.0
        %2333 = vmatpush1.msra.mxu0 0.0
        %2334 = vmatprep.subr.mxu0 0.0
        %2335 = vmatpush1.msra.mxu0 0.0
        %2336 = vmatprep.subr.mxu0 0.0
        %2337 = vmatpush1.msra.mxu0 0.0
        %2338 = vmatprep.subr.mxu0 0.0
        %2339 = vmatpush1.msra.mxu0 0.0
        %2340 = vmatprep.subr.mxu0 0.0
        %2341 = vmatpush1.msra.mxu0 0.0
        %2342 = vmatprep.subr.mxu0 0.0
        %2343 = vmatpush1.msra.mxu0 0.0
        %2344 = vmatprep.subr.mxu0 0.0
        %2345 = vmatpush1.msra.mxu0 0.0
        %2346 = vmatprep.subr.mxu0 0.0
        %2347 = vmatpush1.msra.mxu0 0.0
        %2348 = vmatprep.subr.mxu0 0.0
        %2349 = vmatpush1.msra.mxu0 0.0
        %2350 = vmatprep.subr.mxu0 0.0
        %2351 = vmatpush1.msra.mxu0 0.0
        %2352 = vmatprep.subr.mxu0 0.0
        %2353 = vmatpush1.msra.mxu0 0.0
        %2354 = vmatprep.mubr.f32.mxu0 0.0
        %2355 = vmatmul.mubr.f32.gmra.mrb[0].mxu0 %v1926
        %v2356 = vpop.f32.mrb[0].mxu0
        %v2357 = vadd.f32 0.0, %v2356
        %v2358 = vpop.f32.mrb[0].mxu0
        %v2359 = vadd.f32 0.0, %v2358
        %2360 = vmatprep.mubr.f32.mxu0 0.0
        %2361 = vmatmul.mubr.f32.gmra.mrb[0].mxu0 %v1928
        %v2362 = vpop.f32.mrb[0].mxu0
        %v2363 = vadd.f32 0.0, %v2362
        %v2364 = vpop.f32.mrb[0].mxu0
        %v2365 = vadd.f32 0.0, %v2364
        %2366 = vmatprep.mubr.f32.mxu0 0.0
        %2367 = vmatmul.mubr.f32.gmra.mrb[0].mxu0 %v1930
        %v2368 = vpop.f32.mrb[0].mxu0
        %v2369 = vadd.f32 0.0, %v2368
        %v2370 = vpop.f32.mrb[0].mxu0
        %v2371 = vadd.f32 0.0, %v2370
        %2372 = vmatprep.mubr.f32.mxu0 0.0
        %2373 = vmatmul.mubr.f32.gmra.mrb[0].mxu0 %v1932
        %v2374 = vpop.f32.mrb[0].mxu0
        %v2375 = vadd.f32 0.0, %v2374
        %v2376 = vpop.f32.mrb[0].mxu0
        %v2377 = vadd.f32 0.0, %v2376
        %2378 = vdwg.mxu0
        %2379 = vmatprep.subr.mxu0 %v299
        %2380 = vmatpush1.msra.mxu0 %v297
        %2381 = vmatprep.subr.mxu0 0.0
        %2382 = vmatpush1.msra.mxu0 0.0
        %2383 = vmatprep.subr.mxu0 0.0
        %2384 = vmatpush1.msra.mxu0 0.0
        %2385 = vmatprep.subr.mxu0 0.0
        %2386 = vmatpush1.msra.mxu0 0.0
        %2387 = vmatprep.subr.mxu0 0.0
        %2388 = vmatpush1.msra.mxu0 0.0
        %2389 = vmatprep.subr.mxu0 0.0
        %2390 = vmatpush1.msra.mxu0 0.0
        %2391 = vmatprep.subr.mxu0 0.0
        %2392 = vmatpush1.msra.mxu0 0.0
        %2393 = vmatprep.subr.mxu0 0.0
        %2394 = vmatpush1.msra.mxu0 0.0
        %2395 = vmatprep.subr.mxu0 0.0
        %2396 = vmatpush1.msra.mxu0 0.0
        %2397 = vmatprep.subr.mxu0 0.0
        %2398 = vmatpush1.msra.mxu0 0.0
        %2399 = vmatprep.subr.mxu0 0.0
        %2400 = vmatpush1.msra.mxu0 0.0
        %2401 = vmatprep.subr.mxu0 0.0
        %2402 = vmatpush1.msra.mxu0 0.0
        %2403 = vmatprep.subr.mxu0 0.0
        %2404 = vmatpush1.msra.mxu0 0.0
        %2405 = vmatprep.subr.mxu0 0.0
        %2406 = vmatpush1.msra.mxu0 0.0
        %2407 = vmatprep.subr.mxu0 0.0
        %2408 = vmatpush1.msra.mxu0 0.0
        %2409 = vmatprep.subr.mxu0 0.0
        %2410 = vmatpush1.msra.mxu0 0.0
        %2411 = vmatprep.subr.mxu0 0.0
        %2412 = vmatpush1.msra.mxu0 0.0
        %2413 = vmatprep.subr.mxu0 0.0
        %2414 = vmatpush1.msra.mxu0 0.0
        %2415 = vmatprep.subr.mxu0 0.0
        %2416 = vmatpush1.msra.mxu0 0.0
        %2417 = vmatprep.subr.mxu0 0.0
        %2418 = vmatpush1.msra.mxu0 0.0
        %2419 = vmatprep.subr.mxu0 0.0
        %2420 = vmatpush1.msra.mxu0 0.0
        %2421 = vmatprep.subr.mxu0 0.0
        %2422 = vmatpush1.msra.mxu0 0.0
        %2423 = vmatprep.subr.mxu0 0.0
        %2424 = vmatpush1.msra.mxu0 0.0
        %2425 = vmatprep.subr.mxu0 0.0
        %2426 = vmatpush1.msra.mxu0 0.0
        %2427 = vmatprep.subr.mxu0 0.0
        %2428 = vmatpush1.msra.mxu0 0.0
        %2429 = vmatprep.subr.mxu0 0.0
        %2430 = vmatpush1.msra.mxu0 0.0
        %2431 = vmatprep.subr.mxu0 0.0
        %2432 = vmatpush1.msra.mxu0 0.0
        %2433 = vmatprep.subr.mxu0 0.0
        %2434 = vmatpush1.msra.mxu0 0.0
        %2435 = vmatprep.subr.mxu0 0.0
        %2436 = vmatpush1.msra.mxu0 0.0
        %2437 = vmatprep.subr.mxu0 0.0
        %2438 = vmatpush1.msra.mxu0 0.0
        %2439 = vmatprep.subr.mxu0 0.0
        %2440 = vmatpush1.msra.mxu0 0.0
        %2441 = vmatprep.subr.mxu0 0.0
        %2442 = vmatpush1.msra.mxu0 0.0
        %2443 = vmatprep.mubr.f32.mxu0 0.0
        %2444 = vmatmul.mubr.f32.gmra.mrb[0].mxu0 %v1926
        %v2445 = vpop.f32.mrb[0].mxu0
        %v2446 = vadd.f32 0.0, %v2445
        %v2447 = vpop.f32.mrb[0].mxu0
        %v2448 = vadd.f32 0.0, %v2447
        %2449 = vmatprep.mubr.f32.mxu0 0.0
        %2450 = vmatmul.mubr.f32.gmra.mrb[0].mxu0 %v1928
        %v2451 = vpop.f32.mrb[0].mxu0
        %v2452 = vadd.f32 0.0, %v2451
        %v2453 = vpop.f32.mrb[0].mxu0
        %v2454 = vadd.f32 0.0, %v2453
        %2455 = vmatprep.mubr.f32.mxu0 0.0
        %2456 = vmatmul.mubr.f32.gmra.mrb[0].mxu0 %v1930
        %v2457 = vpop.f32.mrb[0].mxu0
        %v2458 = vadd.f32 0.0, %v2457
        %v2459 = vpop.f32.mrb[0].mxu0
        %v2460 = vadd.f32 0.0, %v2459
        %2461 = vmatprep.mubr.f32.mxu0 0.0
        %2462 = vmatmul.mubr.f32.gmra.mrb[0].mxu0 %v1932
        %v2463 = vpop.f32.mrb[0].mxu0
        %v2464 = vadd.f32 0.0, %v2463
        %v2465 = vpop.f32.mrb[0].mxu0
        %v2466 = vadd.f32 0.0, %v2465
        %2467 = vdwg.mxu0
        %2468 = vmatprep.subr.mxu0 %v303
        %2469 = vmatpush1.msra.mxu0 %v301
        %2470 = vmatprep.subr.mxu0 0.0
        %2471 = vmatpush1.msra.mxu0 0.0
        %2472 = vmatprep.subr.mxu0 0.0
        %2473 = vmatpush1.msra.mxu0 0.0
        %2474 = vmatprep.subr.mxu0 0.0
        %2475 = vmatpush1.msra.mxu0 0.0
        %2476 = vmatprep.subr.mxu0 0.0
        %2477 = vmatpush1.msra.mxu0 0.0
        %2478 = vmatprep.subr.mxu0 0.0
        %2479 = vmatpush1.msra.mxu0 0.0
        %2480 = vmatprep.subr.mxu0 0.0
        %2481 = vmatpush1.msra.mxu0 0.0
        %2482 = vmatprep.subr.mxu0 0.0
        %2483 = vmatpush1.msra.mxu0 0.0
        %2484 = vmatprep.subr.mxu0 0.0
        %2485 = vmatpush1.msra.mxu0 0.0
        %2486 = vmatprep.subr.mxu0 0.0
        %2487 = vmatpush1.msra.mxu0 0.0
        %2488 = vmatprep.subr.mxu0 0.0
        %2489 = vmatpush1.msra.mxu0 0.0
        %2490 = vmatprep.subr.mxu0 0.0
        %2491 = vmatpush1.msra.mxu0 0.0
        %2492 = vmatprep.subr.mxu0 0.0
        %2493 = vmatpush1.msra.mxu0 0.0
        %2494 = vmatprep.subr.mxu0 0.0
        %2495 = vmatpush1.msra.mxu0 0.0
        %2496 = vmatprep.subr.mxu0 0.0
        %2497 = vmatpush1.msra.mxu0 0.0
        %2498 = vmatprep.subr.mxu0 0.0
        %2499 = vmatpush1.msra.mxu0 0.0
        %2500 = vmatprep.subr.mxu0 0.0
        %2501 = vmatpush1.msra.mxu0 0.0
        %2502 = vmatprep.subr.mxu0 0.0
        %2503 = vmatpush1.msra.mxu0 0.0
        %2504 = vmatprep.subr.mxu0 0.0
        %2505 = vmatpush1.msra.mxu0 0.0
        %2506 = vmatprep.subr.mxu0 0.0
        %2507 = vmatpush1.msra.mxu0 0.0
        %2508 = vmatprep.subr.mxu0 0.0
        %2509 = vmatpush1.msra.mxu0 0.0
        %2510 = vmatprep.subr.mxu0 0.0
        %2511 = vmatpush1.msra.mxu0 0.0
        %2512 = vmatprep.subr.mxu0 0.0
        %2513 = vmatpush1.msra.mxu0 0.0
        %2514 = vmatprep.subr.mxu0 0.0
        %2515 = vmatpush1.msra.mxu0 0.0
        %2516 = vmatprep.subr.mxu0 0.0
        %2517 = vmatpush1.msra.mxu0 0.0
        %2518 = vmatprep.subr.mxu0 0.0
        %2519 = vmatpush1.msra.mxu0 0.0
        %2520 = vmatprep.subr.mxu0 0.0
        %2521 = vmatpush1.msra.mxu0 0.0
        %2522 = vmatprep.subr.mxu0 0.0
        %2523 = vmatpush1.msra.mxu0 0.0
        %2524 = vmatprep.subr.mxu0 0.0
        %2525 = vmatpush1.msra.mxu0 0.0
        %2526 = vmatprep.subr.mxu0 0.0
        %2527 = vmatpush1.msra.mxu0 0.0
        %2528 = vmatprep.subr.mxu0 0.0
        %2529 = vmatpush1.msra.mxu0 0.0
        %2530 = vmatprep.subr.mxu0 0.0
        %2531 = vmatpush1.msra.mxu0 0.0
        %2532 = vmatprep.mubr.f32.mxu0 0.0
        %2533 = vmatmul.mubr.f32.gmra.mrb[0].mxu0 %v1926
        %v2534 = vpop.f32.mrb[0].mxu0
        %v2535 = vadd.f32 0.0, %v2534
        %v2536 = vpop.f32.mrb[0].mxu0
        %v2537 = vadd.f32 0.0, %v2536
        %2538 = vmatprep.mubr.f32.mxu0 0.0
        %2539 = vmatmul.mubr.f32.gmra.mrb[0].mxu0 %v1928
        %v2540 = vpop.f32.mrb[0].mxu0
        %v2541 = vadd.f32 0.0, %v2540
        %v2542 = vpop.f32.mrb[0].mxu0
        %v2543 = vadd.f32 0.0, %v2542
        %2544 = vmatprep.mubr.f32.mxu0 0.0
        %2545 = vmatmul.mubr.f32.gmra.mrb[0].mxu0 %v1930
        %v2546 = vpop.f32.mrb[0].mxu0
        %v2547 = vadd.f32 0.0, %v2546
        %v2548 = vpop.f32.mrb[0].mxu0
        %v2549 = vadd.f32 0.0, %v2548
        %2550 = vmatprep.mubr.f32.mxu0 0.0
        %2551 = vmatmul.mubr.f32.gmra.mrb[0].mxu0 %v1932
        %v2552 = vpop.f32.mrb[0].mxu0
        %v2553 = vadd.f32 0.0, %v2552
        %v2554 = vpop.f32.mrb[0].mxu0
        %v2555 = vadd.f32 0.0, %v2554
        %2556 = vdwg.mxu0
        %2557 = vmatprep.subr.mxu0 %v307
        %2558 = vmatpush1.msra.mxu0 %v305
        %2559 = vmatprep.subr.mxu0 0.0
        %2560 = vmatpush1.msra.mxu0 0.0
        %2561 = vmatprep.subr.mxu0 0.0
        %2562 = vmatpush1.msra.mxu0 0.0
        %2563 = vmatprep.subr.mxu0 0.0
        %2564 = vmatpush1.msra.mxu0 0.0
        %2565 = vmatprep.subr.mxu0 0.0
        %2566 = vmatpush1.msra.mxu0 0.0
        %2567 = vmatprep.subr.mxu0 0.0
        %2568 = vmatpush1.msra.mxu0 0.0
        %2569 = vmatprep.subr.mxu0 0.0
        %2570 = vmatpush1.msra.mxu0 0.0
        %2571 = vmatprep.subr.mxu0 0.0
        %2572 = vmatpush1.msra.mxu0 0.0
        %2573 = vmatprep.subr.mxu0 0.0
        %2574 = vmatpush1.msra.mxu0 0.0
        %2575 = vmatprep.subr.mxu0 0.0
        %2576 = vmatpush1.msra.mxu0 0.0
        %2577 = vmatprep.subr.mxu0 0.0
        %2578 = vmatpush1.msra.mxu0 0.0
        %2579 = vmatprep.subr.mxu0 0.0
        %2580 = vmatpush1.msra.mxu0 0.0
        %2581 = vmatprep.subr.mxu0 0.0
        %2582 = vmatpush1.msra.mxu0 0.0
        %2583 = vmatprep.subr.mxu0 0.0
        %2584 = vmatpush1.msra.mxu0 0.0
        %2585 = vmatprep.subr.mxu0 0.0
        %2586 = vmatpush1.msra.mxu0 0.0
        %2587 = vmatprep.subr.mxu0 0.0
        %2588 = vmatpush1.msra.mxu0 0.0
        %2589 = vmatprep.subr.mxu0 0.0
        %2590 = vmatpush1.msra.mxu0 0.0
        %2591 = vmatprep.subr.mxu0 0.0
        %2592 = vmatpush1.msra.mxu0 0.0
        %2593 = vmatprep.subr.mxu0 0.0
        %2594 = vmatpush1.msra.mxu0 0.0
        %2595 = vmatprep.subr.mxu0 0.0
        %2596 = vmatpush1.msra.mxu0 0.0
        %2597 = vmatprep.subr.mxu0 0.0
        %2598 = vmatpush1.msra.mxu0 0.0
        %2599 = vmatprep.subr.mxu0 0.0
        %2600 = vmatpush1.msra.mxu0 0.0
        %2601 = vmatprep.subr.mxu0 0.0
        %2602 = vmatpush1.msra.mxu0 0.0
        %2603 = vmatprep.subr.mxu0 0.0
        %2604 = vmatpush1.msra.mxu0 0.0
        %2605 = vmatprep.subr.mxu0 0.0
        %2606 = vmatpush1.msra.mxu0 0.0
        %2607 = vmatprep.subr.mxu0 0.0
        %2608 = vmatpush1.msra.mxu0 0.0
        %2609 = vmatprep.subr.mxu0 0.0
        %2610 = vmatpush1.msra.mxu0 0.0
        %2611 = vmatprep.subr.mxu0 0.0
        %2612 = vmatpush1.msra.mxu0 0.0
        %2613 = vmatprep.subr.mxu0 0.0
        %2614 = vmatpush1.msra.mxu0 0.0
        %2615 = vmatprep.subr.mxu0 0.0
        %2616 = vmatpush1.msra.mxu0 0.0
        %2617 = vmatprep.subr.mxu0 0.0
        %2618 = vmatpush1.msra.mxu0 0.0
        %2619 = vmatprep.subr.mxu0 0.0
        %2620 = vmatpush1.msra.mxu0 0.0
        %2621 = vmatprep.mubr.f32.mxu0 0.0
        %2622 = vmatmul.mubr.f32.gmra.mrb[0].mxu0 %v1926
        %v2623 = vpop.f32.mrb[0].mxu0
        %v2624 = vadd.f32 0.0, %v2623
        %v2625 = vpop.f32.mrb[0].mxu0
        %v2626 = vadd.f32 0.0, %v2625
        %2627 = vmatprep.mubr.f32.mxu0 0.0
        %2628 = vmatmul.mubr.f32.gmra.mrb[0].mxu0 %v1928
        %v2629 = vpop.f32.mrb[0].mxu0
        %v2630 = vadd.f32 0.0, %v2629
        %v2631 = vpop.f32.mrb[0].mxu0
        %v2632 = vadd.f32 0.0, %v2631
        %2633 = vmatprep.mubr.f32.mxu0 0.0
        %2634 = vmatmul.mubr.f32.gmra.mrb[0].mxu0 %v1930
        %v2635 = vpop.f32.mrb[0].mxu0
        %v2636 = vadd.f32 0.0, %v2635
        %v2637 = vpop.f32.mrb[0].mxu0
        %v2638 = vadd.f32 0.0, %v2637
        %2639 = vmatprep.mubr.f32.mxu0 0.0
        %2640 = vmatmul.mubr.f32.gmra.mrb[0].mxu0 %v1932
        %v2641 = vpop.f32.mrb[0].mxu0
        %v2642 = vadd.f32 0.0, %v2641
        %v2643 = vpop.f32.mrb[0].mxu0
        %v2644 = vadd.f32 0.0, %v2643
        %2645 = vdwg.mxu0
        %v2646 = vsel %vm1115, %v1905, 0
        %v2648 = vsel %vm1115, %v1906, 0
        %v2650 = vsel %vm1115, %v1907, 0
        %v2652 = vsel %vm1115, %v1908, 0
        %2654 = vmatprep.subr.mxu0 %v1841
        %2655 = vmatpush1.msra.mxu0 %v1840
        %2656 = vmatprep.subr.mxu0 %v1857
        %2657 = vmatpush1.msra.mxu0 %v1856
        %2658 = vmatprep.subr.mxu0 %v1873
        %2659 = vmatpush1.msra.mxu0 %v1872
        %2660 = vmatprep.subr.mxu0 %v1889
        %2661 = vmatpush1.msra.mxu0 %v1888
        %2662 = vmatprep.subr.mxu0 0.0
        %2663 = vmatpush1.msra.mxu0 0.0
        %2664 = vmatprep.subr.mxu0 0.0
        %2665 = vmatpush1.msra.mxu0 0.0
        %2666 = vmatprep.subr.mxu0 0.0
        %2667 = vmatpush1.msra.mxu0 0.0
        %2668 = vmatprep.subr.mxu0 0.0
        %2669 = vmatpush1.msra.mxu0 0.0
        %2670 = vmatprep.subr.mxu0 0.0
        %2671 = vmatpush1.msra.mxu0 0.0
        %2672 = vmatprep.subr.mxu0 0.0
        %2673 = vmatpush1.msra.mxu0 0.0
        %2674 = vmatprep.subr.mxu0 0.0
        %2675 = vmatpush1.msra.mxu0 0.0
        %2676 = vmatprep.subr.mxu0 0.0
        %2677 = vmatpush1.msra.mxu0 0.0
        %2678 = vmatprep.subr.mxu0 0.0
        %2679 = vmatpush1.msra.mxu0 0.0
        %2680 = vmatprep.subr.mxu0 0.0
        %2681 = vmatpush1.msra.mxu0 0.0
        %2682 = vmatprep.subr.mxu0 0.0
        %2683 = vmatpush1.msra.mxu0 0.0
        %2684 = vmatprep.subr.mxu0 0.0
        %2685 = vmatpush1.msra.mxu0 0.0
        %2686 = vmatprep.subr.mxu0 0.0
        %2687 = vmatpush1.msra.mxu0 0.0
        %2688 = vmatprep.subr.mxu0 0.0
        %2689 = vmatpush1.msra.mxu0 0.0
        %2690 = vmatprep.subr.mxu0 0.0
        %2691 = vmatpush1.msra.mxu0 0.0
        %2692 = vmatprep.subr.mxu0 0.0
        %2693 = vmatpush1.msra.mxu0 0.0
        %2694 = vmatprep.subr.mxu0 0.0
        %2695 = vmatpush1.msra.mxu0 0.0
        %2696 = vmatprep.subr.mxu0 0.0
        %2697 = vmatpush1.msra.mxu0 0.0
        %2698 = vmatprep.subr.mxu0 0.0
        %2699 = vmatpush1.msra.mxu0 0.0
        %2700 = vmatprep.subr.mxu0 0.0
        %2701 = vmatpush1.msra.mxu0 0.0
        %2702 = vmatprep.subr.mxu0 0.0
        %2703 = vmatpush1.msra.mxu0 0.0
        %2704 = vmatprep.subr.mxu0 0.0
        %2705 = vmatpush1.msra.mxu0 0.0
        %2706 = vmatprep.subr.mxu0 0.0
        %2707 = vmatpush1.msra.mxu0 0.0
        %2708 = vmatprep.subr.mxu0 0.0
        %2709 = vmatpush1.msra.mxu0 0.0
        %2710 = vmatprep.subr.mxu0 0.0
        %2711 = vmatpush1.msra.mxu0 0.0
        %2712 = vmatprep.subr.mxu0 0.0
        %2713 = vmatpush1.msra.mxu0 0.0
        %2714 = vmatprep.subr.mxu0 0.0
        %2715 = vmatpush1.msra.mxu0 0.0
        %2716 = vmatprep.subr.mxu0 0.0
        %2717 = vmatpush1.msra.mxu0 0.0
        %2718 = vmatprep.mubr.f32.mxu0 0.0
        %2719 = vmatmul.mubr.f32.gmra.mrb[0].mxu0 %v2646
        %v2720 = vpop.f32.mrb[0].mxu0
        %v2721 = vadd.f32 %v2001, %v2720
        %v2722 = vpop.f32.mrb[0].mxu0
        %v2723 = vadd.f32 %v2003, %v2722
        %2724 = vmatprep.mubr.f32.mxu0 0.0
        %2725 = vmatmul.mubr.f32.gmra.mrb[0].mxu0 %v2648
        %v2726 = vpop.f32.mrb[0].mxu0
        %v2727 = vadd.f32 %v2007, %v2726
        %v2728 = vpop.f32.mrb[0].mxu0
        %v2729 = vadd.f32 %v2009, %v2728
        %2730 = vmatprep.mubr.f32.mxu0 0.0
        %2731 = vmatmul.mubr.f32.gmra.mrb[0].mxu0 %v2650
        %v2732 = vpop.f32.mrb[0].mxu0
        %v2733 = vadd.f32 %v2013, %v2732
        %v2734 = vpop.f32.mrb[0].mxu0
        %v2735 = vadd.f32 %v2015, %v2734
        %2736 = vmatprep.mubr.f32.mxu0 0.0
        %2737 = vmatmul.mubr.f32.gmra.mrb[0].mxu0 %v2652
        %v2738 = vpop.f32.mrb[0].mxu0
        %v2739 = vadd.f32 %v2019, %v2738
        %v2740 = vpop.f32.mrb[0].mxu0
        %v2741 = vadd.f32 %v2021, %v2740
        %2742 = vdwg.mxu0
        %2743 = vmatprep.subr.mxu0 %v1843
        %2744 = vmatpush1.msra.mxu0 %v1842
        %2745 = vmatprep.subr.mxu0 %v1859
        %2746 = vmatpush1.msra.mxu0 %v1858
        %2747 = vmatprep.subr.mxu0 %v1875
        %2748 = vmatpush1.msra.mxu0 %v1874
        %2749 = vmatprep.subr.mxu0 %v1891
        %2750 = vmatpush1.msra.mxu0 %v1890
        %2751 = vmatprep.subr.mxu0 0.0
        %2752 = vmatpush1.msra.mxu0 0.0
        %2753 = vmatprep.subr.mxu0 0.0
        %2754 = vmatpush1.msra.mxu0 0.0
        %2755 = vmatprep.subr.mxu0 0.0
        %2756 = vmatpush1.msra.mxu0 0.0
        %2757 = vmatprep.subr.mxu0 0.0
        %2758 = vmatpush1.msra.mxu0 0.0
        %2759 = vmatprep.subr.mxu0 0.0
        %2760 = vmatpush1.msra.mxu0 0.0
        %2761 = vmatprep.subr.mxu0 0.0
        %2762 = vmatpush1.msra.mxu0 0.0
        %2763 = vmatprep.subr.mxu0 0.0
        %2764 = vmatpush1.msra.mxu0 0.0
        %2765 = vmatprep.subr.mxu0 0.0
        %2766 = vmatpush1.msra.mxu0 0.0
        %2767 = vmatprep.subr.mxu0 0.0
        %2768 = vmatpush1.msra.mxu0 0.0
        %2769 = vmatprep.subr.mxu0 0.0
        %2770 = vmatpush1.msra.mxu0 0.0
        %2771 = vmatprep.subr.mxu0 0.0
        %2772 = vmatpush1.msra.mxu0 0.0
        %2773 = vmatprep.subr.mxu0 0.0
        %2774 = vmatpush1.msra.mxu0 0.0
        %2775 = vmatprep.subr.mxu0 0.0
        %2776 = vmatpush1.msra.mxu0 0.0
        %2777 = vmatprep.subr.mxu0 0.0
        %2778 = vmatpush1.msra.mxu0 0.0
        %2779 = vmatprep.subr.mxu0 0.0
        %2780 = vmatpush1.msra.mxu0 0.0
        %2781 = vmatprep.subr.mxu0 0.0
        %2782 = vmatpush1.msra.mxu0 0.0
        %2783 = vmatprep.subr.mxu0 0.0
        %2784 = vmatpush1.msra.mxu0 0.0
        %2785 = vmatprep.subr.mxu0 0.0
        %2786 = vmatpush1.msra.mxu0 0.0
        %2787 = vmatprep.subr.mxu0 0.0
        %2788 = vmatpush1.msra.mxu0 0.0
        %2789 = vmatprep.subr.mxu0 0.0
        %2790 = vmatpush1.msra.mxu0 0.0
        %2791 = vmatprep.subr.mxu0 0.0
        %2792 = vmatpush1.msra.mxu0 0.0
        %2793 = vmatprep.subr.mxu0 0.0
        %2794 = vmatpush1.msra.mxu0 0.0
        %2795 = vmatprep.subr.mxu0 0.0
        %2796 = vmatpush1.msra.mxu0 0.0
        %2797 = vmatprep.subr.mxu0 0.0
        %2798 = vmatpush1.msra.mxu0 0.0
        %2799 = vmatprep.subr.mxu0 0.0
        %2800 = vmatpush1.msra.mxu0 0.0
        %2801 = vmatprep.subr.mxu0 0.0
        %2802 = vmatpush1.msra.mxu0 0.0
        %2803 = vmatprep.subr.mxu0 0.0
        %2804 = vmatpush1.msra.mxu0 0.0
        %2805 = vmatprep.subr.mxu0 0.0
        %2806 = vmatpush1.msra.mxu0 0.0
        %2807 = vmatprep.mubr.f32.mxu0 0.0
        %2808 = vmatmul.mubr.f32.gmra.mrb[0].mxu0 %v2646
        %v2809 = vpop.f32.mrb[0].mxu0
        %v2810 = vadd.f32 %v2090, %v2809
        %v2811 = vpop.f32.mrb[0].mxu0
        %v2812 = vadd.f32 %v2092, %v2811
        %2813 = vmatprep.mubr.f32.mxu0 0.0
        %2814 = vmatmul.mubr.f32.gmra.mrb[0].mxu0 %v2648
        %v2815 = vpop.f32.mrb[0].mxu0
        %v2816 = vadd.f32 %v2096, %v2815
        %v2817 = vpop.f32.mrb[0].mxu0
        %v2818 = vadd.f32 %v2098, %v2817
        %2819 = vmatprep.mubr.f32.mxu0 0.0
        %2820 = vmatmul.mubr.f32.gmra.mrb[0].mxu0 %v2650
        %v2821 = vpop.f32.mrb[0].mxu0
        %v2822 = vadd.f32 %v2102, %v2821
        %v2823 = vpop.f32.mrb[0].mxu0
        %v2824 = vadd.f32 %v2104, %v2823
        %2825 = vmatprep.mubr.f32.mxu0 0.0
        %2826 = vmatmul.mubr.f32.gmra.mrb[0].mxu0 %v2652
        %v2827 = vpop.f32.mrb[0].mxu0
        %v2828 = vadd.f32 %v2108, %v2827
        %v2829 = vpop.f32.mrb[0].mxu0
        %v2830 = vadd.f32 %v2110, %v2829
        %2831 = vdwg.mxu0
        %2832 = vmatprep.subr.mxu0 %v1845
        %2833 = vmatpush1.msra.mxu0 %v1844
        %2834 = vmatprep.subr.mxu0 %v1861
        %2835 = vmatpush1.msra.mxu0 %v1860
        %2836 = vmatprep.subr.mxu0 %v1877
        %2837 = vmatpush1.msra.mxu0 %v1876
        %2838 = vmatprep.subr.mxu0 %v1893
        %2839 = vmatpush1.msra.mxu0 %v1892
        %2840 = vmatprep.subr.mxu0 0.0
        %2841 = vmatpush1.msra.mxu0 0.0
        %2842 = vmatprep.subr.mxu0 0.0
        %2843 = vmatpush1.msra.mxu0 0.0
        %2844 = vmatprep.subr.mxu0 0.0
        %2845 = vmatpush1.msra.mxu0 0.0
        %2846 = vmatprep.subr.mxu0 0.0
        %2847 = vmatpush1.msra.mxu0 0.0
        %2848 = vmatprep.subr.mxu0 0.0
        %2849 = vmatpush1.msra.mxu0 0.0
        %2850 = vmatprep.subr.mxu0 0.0
        %2851 = vmatpush1.msra.mxu0 0.0
        %2852 = vmatprep.subr.mxu0 0.0
        %2853 = vmatpush1.msra.mxu0 0.0
        %2854 = vmatprep.subr.mxu0 0.0
        %2855 = vmatpush1.msra.mxu0 0.0
        %2856 = vmatprep.subr.mxu0 0.0
        %2857 = vmatpush1.msra.mxu0 0.0
        %2858 = vmatprep.subr.mxu0 0.0
        %2859 = vmatpush1.msra.mxu0 0.0
        %2860 = vmatprep.subr.mxu0 0.0
        %2861 = vmatpush1.msra.mxu0 0.0
        %2862 = vmatprep.subr.mxu0 0.0
        %2863 = vmatpush1.msra.mxu0 0.0
        %2864 = vmatprep.subr.mxu0 0.0
        %2865 = vmatpush1.msra.mxu0 0.0
        %2866 = vmatprep.subr.mxu0 0.0
        %2867 = vmatpush1.msra.mxu0 0.0
        %2868 = vmatprep.subr.mxu0 0.0
        %2869 = vmatpush1.msra.mxu0 0.0
        %2870 = vmatprep.subr.mxu0 0.0
        %2871 = vmatpush1.msra.mxu0 0.0
        %2872 = vmatprep.subr.mxu0 0.0
        %2873 = vmatpush1.msra.mxu0 0.0
        %2874 = vmatprep.subr.mxu0 0.0
        %2875 = vmatpush1.msra.mxu0 0.0
        %2876 = vmatprep.subr.mxu0 0.0
        %2877 = vmatpush1.msra.mxu0 0.0
        %2878 = vmatprep.subr.mxu0 0.0
        %2879 = vmatpush1.msra.mxu0 0.0
        %2880 = vmatprep.subr.mxu0 0.0
        %2881 = vmatpush1.msra.mxu0 0.0
        %2882 = vmatprep.subr.mxu0 0.0
        %2883 = vmatpush1.msra.mxu0 0.0
        %2884 = vmatprep.subr.mxu0 0.0
        %2885 = vmatpush1.msra.mxu0 0.0
        %2886 = vmatprep.subr.mxu0 0.0
        %2887 = vmatpush1.msra.mxu0 0.0
        %2888 = vmatprep.subr.mxu0 0.0
        %2889 = vmatpush1.msra.mxu0 0.0
        %2890 = vmatprep.subr.mxu0 0.0
        %2891 = vmatpush1.msra.mxu0 0.0
        %2892 = vmatprep.subr.mxu0 0.0
        %2893 = vmatpush1.msra.mxu0 0.0
        %2894 = vmatprep.subr.mxu0 0.0
        %2895 = vmatpush1.msra.mxu0 0.0
        %2896 = vmatprep.mubr.f32.mxu0 0.0
        %2897 = vmatmul.mubr.f32.gmra.mrb[0].mxu0 %v2646
        %v2898 = vpop.f32.mrb[0].mxu0
        %v2899 = vadd.f32 %v2179, %v2898
        %v2900 = vpop.f32.mrb[0].mxu0
        %v2901 = vadd.f32 %v2181, %v2900
        %2902 = vmatprep.mubr.f32.mxu0 0.0
        %2903 = vmatmul.mubr.f32.gmra.mrb[0].mxu0 %v2648
        %v2904 = vpop.f32.mrb[0].mxu0
        %v2905 = vadd.f32 %v2185, %v2904
        %v2906 = vpop.f32.mrb[0].mxu0
        %v2907 = vadd.f32 %v2187, %v2906
        %2908 = vmatprep.mubr.f32.mxu0 0.0
        %2909 = vmatmul.mubr.f32.gmra.mrb[0].mxu0 %v2650
        %v2910 = vpop.f32.mrb[0].mxu0
        %v2911 = vadd.f32 %v2191, %v2910
        %v2912 = vpop.f32.mrb[0].mxu0
        %v2913 = vadd.f32 %v2193, %v2912
        %2914 = vmatprep.mubr.f32.mxu0 0.0
        %2915 = vmatmul.mubr.f32.gmra.mrb[0].mxu0 %v2652
        %v2916 = vpop.f32.mrb[0].mxu0
        %v2917 = vadd.f32 %v2197, %v2916
        %v2918 = vpop.f32.mrb[0].mxu0
        %v2919 = vadd.f32 %v2199, %v2918
        %2920 = vdwg.mxu0
        %2921 = vmatprep.subr.mxu0 %v1847
        %2922 = vmatpush1.msra.mxu0 %v1846
        %2923 = vmatprep.subr.mxu0 %v1863
        %2924 = vmatpush1.msra.mxu0 %v1862
        %2925 = vmatprep.subr.mxu0 %v1879
        %2926 = vmatpush1.msra.mxu0 %v1878
        %2927 = vmatprep.subr.mxu0 %v1895
        %2928 = vmatpush1.msra.mxu0 %v1894
        %2929 = vmatprep.subr.mxu0 0.0
        %2930 = vmatpush1.msra.mxu0 0.0
        %2931 = vmatprep.subr.mxu0 0.0
        %2932 = vmatpush1.msra.mxu0 0.0
        %2933 = vmatprep.subr.mxu0 0.0
        %2934 = vmatpush1.msra.mxu0 0.0
        %2935 = vmatprep.subr.mxu0 0.0
        %2936 = vmatpush1.msra.mxu0 0.0
        %2937 = vmatprep.subr.mxu0 0.0
        %2938 = vmatpush1.msra.mxu0 0.0
        %2939 = vmatprep.subr.mxu0 0.0
        %2940 = vmatpush1.msra.mxu0 0.0
        %2941 = vmatprep.subr.mxu0 0.0
        %2942 = vmatpush1.msra.mxu0 0.0
        %2943 = vmatprep.subr.mxu0 0.0
        %2944 = vmatpush1.msra.mxu0 0.0
        %2945 = vmatprep.subr.mxu0 0.0
        %2946 = vmatpush1.msra.mxu0 0.0
        %2947 = vmatprep.subr.mxu0 0.0
        %2948 = vmatpush1.msra.mxu0 0.0
        %2949 = vmatprep.subr.mxu0 0.0
        %2950 = vmatpush1.msra.mxu0 0.0
        %2951 = vmatprep.subr.mxu0 0.0
        %2952 = vmatpush1.msra.mxu0 0.0
        %2953 = vmatprep.subr.mxu0 0.0
        %2954 = vmatpush1.msra.mxu0 0.0
        %2955 = vmatprep.subr.mxu0 0.0
        %2956 = vmatpush1.msra.mxu0 0.0
        %2957 = vmatprep.subr.mxu0 0.0
        %2958 = vmatpush1.msra.mxu0 0.0
        %2959 = vmatprep.subr.mxu0 0.0
        %2960 = vmatpush1.msra.mxu0 0.0
        %2961 = vmatprep.subr.mxu0 0.0
        %2962 = vmatpush1.msra.mxu0 0.0
        %2963 = vmatprep.subr.mxu0 0.0
        %2964 = vmatpush1.msra.mxu0 0.0
        %2965 = vmatprep.subr.mxu0 0.0
        %2966 = vmatpush1.msra.mxu0 0.0
        %2967 = vmatprep.subr.mxu0 0.0
        %2968 = vmatpush1.msra.mxu0 0.0
        %2969 = vmatprep.subr.mxu0 0.0
        %2970 = vmatpush1.msra.mxu0 0.0
        %2971 = vmatprep.subr.mxu0 0.0
        %2972 = vmatpush1.msra.mxu0 0.0
        %2973 = vmatprep.subr.mxu0 0.0
        %2974 = vmatpush1.msra.mxu0 0.0
        %2975 = vmatprep.subr.mxu0 0.0
        %2976 = vmatpush1.msra.mxu0 0.0
        %2977 = vmatprep.subr.mxu0 0.0
        %2978 = vmatpush1.msra.mxu0 0.0
        %2979 = vmatprep.subr.mxu0 0.0
        %2980 = vmatpush1.msra.mxu0 0.0
        %2981 = vmatprep.subr.mxu0 0.0
        %2982 = vmatpush1.msra.mxu0 0.0
        %2983 = vmatprep.subr.mxu0 0.0
        %2984 = vmatpush1.msra.mxu0 0.0
        %2985 = vmatprep.mubr.f32.mxu0 0.0
        %2986 = vmatmul.mubr.f32.gmra.mrb[0].mxu0 %v2646
        %v2987 = vpop.f32.mrb[0].mxu0
        %v2988 = vadd.f32 %v2268, %v2987
        %v2989 = vpop.f32.mrb[0].mxu0
        %v2990 = vadd.f32 %v2270, %v2989
        %2991 = vmatprep.mubr.f32.mxu0 0.0
        %2992 = vmatmul.mubr.f32.gmra.mrb[0].mxu0 %v2648
        %v2993 = vpop.f32.mrb[0].mxu0
        %v2994 = vadd.f32 %v2274, %v2993
        %v2995 = vpop.f32.mrb[0].mxu0
        %v2996 = vadd.f32 %v2276, %v2995
        %2997 = vmatprep.mubr.f32.mxu0 0.0
        %2998 = vmatmul.mubr.f32.gmra.mrb[0].mxu0 %v2650
        %v2999 = vpop.f32.mrb[0].mxu0
        %v3000 = vadd.f32 %v2280, %v2999
        %v3001 = vpop.f32.mrb[0].mxu0
        %v3002 = vadd.f32 %v2282, %v3001
        %3003 = vmatprep.mubr.f32.mxu0 0.0
        %3004 = vmatmul.mubr.f32.gmra.mrb[0].mxu0 %v2652
        %v3005 = vpop.f32.mrb[0].mxu0
        %v3006 = vadd.f32 %v2286, %v3005
        %v3007 = vpop.f32.mrb[0].mxu0
        %v3008 = vadd.f32 %v2288, %v3007
        %3009 = vdwg.mxu0
        %3010 = vmatprep.subr.mxu0 %v1849
        %3011 = vmatpush1.msra.mxu0 %v1848
        %3012 = vmatprep.subr.mxu0 %v1865
        %3013 = vmatpush1.msra.mxu0 %v1864
        %3014 = vmatprep.subr.mxu0 %v1881
        %3015 = vmatpush1.msra.mxu0 %v1880
        %3016 = vmatprep.subr.mxu0 %v1897
        %3017 = vmatpush1.msra.mxu0 %v1896
        %3018 = vmatprep.subr.mxu0 0.0
        %3019 = vmatpush1.msra.mxu0 0.0
        %3020 = vmatprep.subr.mxu0 0.0
        %3021 = vmatpush1.msra.mxu0 0.0
        %3022 = vmatprep.subr.mxu0 0.0
        %3023 = vmatpush1.msra.mxu0 0.0
        %3024 = vmatprep.subr.mxu0 0.0
        %3025 = vmatpush1.msra.mxu0 0.0
        %3026 = vmatprep.subr.mxu0 0.0
        %3027 = vmatpush1.msra.mxu0 0.0
        %3028 = vmatprep.subr.mxu0 0.0
        %3029 = vmatpush1.msra.mxu0 0.0
        %3030 = vmatprep.subr.mxu0 0.0
        %3031 = vmatpush1.msra.mxu0 0.0
        %3032 = vmatprep.subr.mxu0 0.0
        %3033 = vmatpush1.msra.mxu0 0.0
        %3034 = vmatprep.subr.mxu0 0.0
        %3035 = vmatpush1.msra.mxu0 0.0
        %3036 = vmatprep.subr.mxu0 0.0
        %3037 = vmatpush1.msra.mxu0 0.0
        %3038 = vmatprep.subr.mxu0 0.0
        %3039 = vmatpush1.msra.mxu0 0.0
        %3040 = vmatprep.subr.mxu0 0.0
        %3041 = vmatpush1.msra.mxu0 0.0
        %3042 = vmatprep.subr.mxu0 0.0
        %3043 = vmatpush1.msra.mxu0 0.0
        %3044 = vmatprep.subr.mxu0 0.0
        %3045 = vmatpush1.msra.mxu0 0.0
        %3046 = vmatprep.subr.mxu0 0.0
        %3047 = vmatpush1.msra.mxu0 0.0
        %3048 = vmatprep.subr.mxu0 0.0
        %3049 = vmatpush1.msra.mxu0 0.0
        %3050 = vmatprep.subr.mxu0 0.0
        %3051 = vmatpush1.msra.mxu0 0.0
        %3052 = vmatprep.subr.mxu0 0.0
        %3053 = vmatpush1.msra.mxu0 0.0
        %3054 = vmatprep.subr.mxu0 0.0
        %3055 = vmatpush1.msra.mxu0 0.0
        %3056 = vmatprep.subr.mxu0 0.0
        %3057 = vmatpush1.msra.mxu0 0.0
        %3058 = vmatprep.subr.mxu0 0.0
        %3059 = vmatpush1.msra.mxu0 0.0
        %3060 = vmatprep.subr.mxu0 0.0
        %3061 = vmatpush1.msra.mxu0 0.0
        %3062 = vmatprep.subr.mxu0 0.0
        %3063 = vmatpush1.msra.mxu0 0.0
        %3064 = vmatprep.subr.mxu0 0.0
        %3065 = vmatpush1.msra.mxu0 0.0
        %3066 = vmatprep.subr.mxu0 0.0
        %3067 = vmatpush1.msra.mxu0 0.0
        %3068 = vmatprep.subr.mxu0 0.0
        %3069 = vmatpush1.msra.mxu0 0.0
        %3070 = vmatprep.subr.mxu0 0.0
        %3071 = vmatpush1.msra.mxu0 0.0
        %3072 = vmatprep.subr.mxu0 0.0
        %3073 = vmatpush1.msra.mxu0 0.0
        %3074 = vmatprep.mubr.f32.mxu0 0.0
        %3075 = vmatmul.mubr.f32.gmra.mrb[0].mxu0 %v2646
        %v3076 = vpop.f32.mrb[0].mxu0
        %v3077 = vadd.f32 %v2357, %v3076
        %v3078 = vpop.f32.mrb[0].mxu0
        %v3079 = vadd.f32 %v2359, %v3078
        %3080 = vmatprep.mubr.f32.mxu0 0.0
        %3081 = vmatmul.mubr.f32.gmra.mrb[0].mxu0 %v2648
        %v3082 = vpop.f32.mrb[0].mxu0
        %v3083 = vadd.f32 %v2363, %v3082
        %v3084 = vpop.f32.mrb[0].mxu0
        %v3085 = vadd.f32 %v2365, %v3084
        %3086 = vmatprep.mubr.f32.mxu0 0.0
        %3087 = vmatmul.mubr.f32.gmra.mrb[0].mxu0 %v2650
        %v3088 = vpop.f32.mrb[0].mxu0
        %v3089 = vadd.f32 %v2369, %v3088
        %v3090 = vpop.f32.mrb[0].mxu0
        %v3091 = vadd.f32 %v2371, %v3090
        %3092 = vmatprep.mubr.f32.mxu0 0.0
        %3093 = vmatmul.mubr.f32.gmra.mrb[0].mxu0 %v2652
        %v3094 = vpop.f32.mrb[0].mxu0
        %v3095 = vadd.f32 %v2375, %v3094
        %v3096 = vpop.f32.mrb[0].mxu0
        %v3097 = vadd.f32 %v2377, %v3096
        %3098 = vdwg.mxu0
        %3099 = vmatprep.subr.mxu0 %v1851
        %3100 = vmatpush1.msra.mxu0 %v1850
        %3101 = vmatprep.subr.mxu0 %v1867
        %3102 = vmatpush1.msra.mxu0 %v1866
        %3103 = vmatprep.subr.mxu0 %v1883
        %3104 = vmatpush1.msra.mxu0 %v1882
        %3105 = vmatprep.subr.mxu0 %v1899
        %3106 = vmatpush1.msra.mxu0 %v1898
        %3107 = vmatprep.subr.mxu0 0.0
        %3108 = vmatpush1.msra.mxu0 0.0
        %3109 = vmatprep.subr.mxu0 0.0
        %3110 = vmatpush1.msra.mxu0 0.0
        %3111 = vmatprep.subr.mxu0 0.0
        %3112 = vmatpush1.msra.mxu0 0.0
        %3113 = vmatprep.subr.mxu0 0.0
        %3114 = vmatpush1.msra.mxu0 0.0
        %3115 = vmatprep.subr.mxu0 0.0
        %3116 = vmatpush1.msra.mxu0 0.0
        %3117 = vmatprep.subr.mxu0 0.0
        %3118 = vmatpush1.msra.mxu0 0.0
        %3119 = vmatprep.subr.mxu0 0.0
        %3120 = vmatpush1.msra.mxu0 0.0
        %3121 = vmatprep.subr.mxu0 0.0
        %3122 = vmatpush1.msra.mxu0 0.0
        %3123 = vmatprep.subr.mxu0 0.0
        %3124 = vmatpush1.msra.mxu0 0.0
        %3125 = vmatprep.subr.mxu0 0.0
        %3126 = vmatpush1.msra.mxu0 0.0
        %3127 = vmatprep.subr.mxu0 0.0
        %3128 = vmatpush1.msra.mxu0 0.0
        %3129 = vmatprep.subr.mxu0 0.0
        %3130 = vmatpush1.msra.mxu0 0.0
        %3131 = vmatprep.subr.mxu0 0.0
        %3132 = vmatpush1.msra.mxu0 0.0
        %3133 = vmatprep.subr.mxu0 0.0
        %3134 = vmatpush1.msra.mxu0 0.0
        %3135 = vmatprep.subr.mxu0 0.0
        %3136 = vmatpush1.msra.mxu0 0.0
        %3137 = vmatprep.subr.mxu0 0.0
        %3138 = vmatpush1.msra.mxu0 0.0
        %3139 = vmatprep.subr.mxu0 0.0
        %3140 = vmatpush1.msra.mxu0 0.0
        %3141 = vmatprep.subr.mxu0 0.0
        %3142 = vmatpush1.msra.mxu0 0.0
        %3143 = vmatprep.subr.mxu0 0.0
        %3144 = vmatpush1.msra.mxu0 0.0
        %3145 = vmatprep.subr.mxu0 0.0
        %3146 = vmatpush1.msra.mxu0 0.0
        %3147 = vmatprep.subr.mxu0 0.0
        %3148 = vmatpush1.msra.mxu0 0.0
        %3149 = vmatprep.subr.mxu0 0.0
        %3150 = vmatpush1.msra.mxu0 0.0
        %3151 = vmatprep.subr.mxu0 0.0
        %3152 = vmatpush1.msra.mxu0 0.0
        %3153 = vmatprep.subr.mxu0 0.0
        %3154 = vmatpush1.msra.mxu0 0.0
        %3155 = vmatprep.subr.mxu0 0.0
        %3156 = vmatpush1.msra.mxu0 0.0
        %3157 = vmatprep.subr.mxu0 0.0
        %3158 = vmatpush1.msra.mxu0 0.0
        %3159 = vmatprep.subr.mxu0 0.0
        %3160 = vmatpush1.msra.mxu0 0.0
        %3161 = vmatprep.subr.mxu0 0.0
        %3162 = vmatpush1.msra.mxu0 0.0
        %3163 = vmatprep.mubr.f32.mxu0 0.0
        %3164 = vmatmul.mubr.f32.gmra.mrb[0].mxu0 %v2646
        %v3165 = vpop.f32.mrb[0].mxu0
        %v3166 = vadd.f32 %v2446, %v3165
        %v3167 = vpop.f32.mrb[0].mxu0
        %v3168 = vadd.f32 %v2448, %v3167
        %3169 = vmatprep.mubr.f32.mxu0 0.0
        %3170 = vmatmul.mubr.f32.gmra.mrb[0].mxu0 %v2648
        %v3171 = vpop.f32.mrb[0].mxu0
        %v3172 = vadd.f32 %v2452, %v3171
        %v3173 = vpop.f32.mrb[0].mxu0
        %v3174 = vadd.f32 %v2454, %v3173
        %3175 = vmatprep.mubr.f32.mxu0 0.0
        %3176 = vmatmul.mubr.f32.gmra.mrb[0].mxu0 %v2650
        %v3177 = vpop.f32.mrb[0].mxu0
        %v3178 = vadd.f32 %v2458, %v3177
        %v3179 = vpop.f32.mrb[0].mxu0
        %v3180 = vadd.f32 %v2460, %v3179
        %3181 = vmatprep.mubr.f32.mxu0 0.0
        %3182 = vmatmul.mubr.f32.gmra.mrb[0].mxu0 %v2652
        %v3183 = vpop.f32.mrb[0].mxu0
        %v3184 = vadd.f32 %v2464, %v3183
        %v3185 = vpop.f32.mrb[0].mxu0
        %v3186 = vadd.f32 %v2466, %v3185
        %3187 = vdwg.mxu0
        %3188 = vmatprep.subr.mxu0 %v1853
        %3189 = vmatpush1.msra.mxu0 %v1852
        %3190 = vmatprep.subr.mxu0 %v1869
        %3191 = vmatpush1.msra.mxu0 %v1868
        %3192 = vmatprep.subr.mxu0 %v1885
        %3193 = vmatpush1.msra.mxu0 %v1884
        %3194 = vmatprep.subr.mxu0 %v1901
        %3195 = vmatpush1.msra.mxu0 %v1900
        %3196 = vmatprep.subr.mxu0 0.0
        %3197 = vmatpush1.msra.mxu0 0.0
        %3198 = vmatprep.subr.mxu0 0.0
        %3199 = vmatpush1.msra.mxu0 0.0
        %3200 = vmatprep.subr.mxu0 0.0
        %3201 = vmatpush1.msra.mxu0 0.0
        %3202 = vmatprep.subr.mxu0 0.0
        %3203 = vmatpush1.msra.mxu0 0.0
        %3204 = vmatprep.subr.mxu0 0.0
        %3205 = vmatpush1.msra.mxu0 0.0
        %3206 = vmatprep.subr.mxu0 0.0
        %3207 = vmatpush1.msra.mxu0 0.0
        %3208 = vmatprep.subr.mxu0 0.0
        %3209 = vmatpush1.msra.mxu0 0.0
        %3210 = vmatprep.subr.mxu0 0.0
        %3211 = vmatpush1.msra.mxu0 0.0
        %3212 = vmatprep.subr.mxu0 0.0
        %3213 = vmatpush1.msra.mxu0 0.0
        %3214 = vmatprep.subr.mxu0 0.0
        %3215 = vmatpush1.msra.mxu0 0.0
        %3216 = vmatprep.subr.mxu0 0.0
        %3217 = vmatpush1.msra.mxu0 0.0
        %3218 = vmatprep.subr.mxu0 0.0
        %3219 = vmatpush1.msra.mxu0 0.0
        %3220 = vmatprep.subr.mxu0 0.0
        %3221 = vmatpush1.msra.mxu0 0.0
        %3222 = vmatprep.subr.mxu0 0.0
        %3223 = vmatpush1.msra.mxu0 0.0
        %3224 = vmatprep.subr.mxu0 0.0
        %3225 = vmatpush1.msra.mxu0 0.0
        %3226 = vmatprep.subr.mxu0 0.0
        %3227 = vmatpush1.msra.mxu0 0.0
        %3228 = vmatprep.subr.mxu0 0.0
        %3229 = vmatpush1.msra.mxu0 0.0
        %3230 = vmatprep.subr.mxu0 0.0
        %3231 = vmatpush1.msra.mxu0 0.0
        %3232 = vmatprep.subr.mxu0 0.0
        %3233 = vmatpush1.msra.mxu0 0.0
        %3234 = vmatprep.subr.mxu0 0.0
        %3235 = vmatpush1.msra.mxu0 0.0
        %3236 = vmatprep.subr.mxu0 0.0
        %3237 = vmatpush1.msra.mxu0 0.0
        %3238 = vmatprep.subr.mxu0 0.0
        %3239 = vmatpush1.msra.mxu0 0.0
        %3240 = vmatprep.subr.mxu0 0.0
        %3241 = vmatpush1.msra.mxu0 0.0
        %3242 = vmatprep.subr.mxu0 0.0
        %3243 = vmatpush1.msra.mxu0 0.0
        %3244 = vmatprep.subr.mxu0 0.0
        %3245 = vmatpush1.msra.mxu0 0.0
        %3246 = vmatprep.subr.mxu0 0.0
        %3247 = vmatpush1.msra.mxu0 0.0
        %3248 = vmatprep.subr.mxu0 0.0
        %3249 = vmatpush1.msra.mxu0 0.0
        %3250 = vmatprep.subr.mxu0 0.0
        %3251 = vmatpush1.msra.mxu0 0.0
        %3252 = vmatprep.mubr.f32.mxu0 0.0
        %3253 = vmatmul.mubr.f32.gmra.mrb[0].mxu0 %v2646
        %v3254 = vpop.f32.mrb[0].mxu0
        %v3255 = vadd.f32 %v2535, %v3254
        %v3256 = vpop.f32.mrb[0].mxu0
        %v3257 = vadd.f32 %v2537, %v3256
        %3258 = vmatprep.mubr.f32.mxu0 0.0
        %3259 = vmatmul.mubr.f32.gmra.mrb[0].mxu0 %v2648
        %v3260 = vpop.f32.mrb[0].mxu0
        %v3261 = vadd.f32 %v2541, %v3260
        %v3262 = vpop.f32.mrb[0].mxu0
        %v3263 = vadd.f32 %v2543, %v3262
        %3264 = vmatprep.mubr.f32.mxu0 0.0
        %3265 = vmatmul.mubr.f32.gmra.mrb[0].mxu0 %v2650
        %v3266 = vpop.f32.mrb[0].mxu0
        %v3267 = vadd.f32 %v2547, %v3266
        %v3268 = vpop.f32.mrb[0].mxu0
        %v3269 = vadd.f32 %v2549, %v3268
        %3270 = vmatprep.mubr.f32.mxu0 0.0
        %3271 = vmatmul.mubr.f32.gmra.mrb[0].mxu0 %v2652
        %v3272 = vpop.f32.mrb[0].mxu0
        %v3273 = vadd.f32 %v2553, %v3272
        %v3274 = vpop.f32.mrb[0].mxu0
        %v3275 = vadd.f32 %v2555, %v3274
        %3276 = vdwg.mxu0
        %3277 = vmatprep.subr.mxu0 %v1855
        %3278 = vmatpush1.msra.mxu0 %v1854
        %3279 = vmatprep.subr.mxu0 %v1871
        %3280 = vmatpush1.msra.mxu0 %v1870
        %3281 = vmatprep.subr.mxu0 %v1887
        %3282 = vmatpush1.msra.mxu0 %v1886
        %3283 = vmatprep.subr.mxu0 %v1903
        %3284 = vmatpush1.msra.mxu0 %v1902
        %3285 = vmatprep.subr.mxu0 0.0
        %3286 = vmatpush1.msra.mxu0 0.0
        %3287 = vmatprep.subr.mxu0 0.0
        %3288 = vmatpush1.msra.mxu0 0.0
        %3289 = vmatprep.subr.mxu0 0.0
        %3290 = vmatpush1.msra.mxu0 0.0
        %3291 = vmatprep.subr.mxu0 0.0
        %3292 = vmatpush1.msra.mxu0 0.0
        %3293 = vmatprep.subr.mxu0 0.0
        %3294 = vmatpush1.msra.mxu0 0.0
        %3295 = vmatprep.subr.mxu0 0.0
        %3296 = vmatpush1.msra.mxu0 0.0
        %3297 = vmatprep.subr.mxu0 0.0
        %3298 = vmatpush1.msra.mxu0 0.0
        %3299 = vmatprep.subr.mxu0 0.0
        %3300 = vmatpush1.msra.mxu0 0.0
        %3301 = vmatprep.subr.mxu0 0.0
        %3302 = vmatpush1.msra.mxu0 0.0
        %3303 = vmatprep.subr.mxu0 0.0
        %3304 = vmatpush1.msra.mxu0 0.0
        %3305 = vmatprep.subr.mxu0 0.0
        %3306 = vmatpush1.msra.mxu0 0.0
        %3307 = vmatprep.subr.mxu0 0.0
        %3308 = vmatpush1.msra.mxu0 0.0
        %3309 = vmatprep.subr.mxu0 0.0
        %3310 = vmatpush1.msra.mxu0 0.0
        %3311 = vmatprep.subr.mxu0 0.0
        %3312 = vmatpush1.msra.mxu0 0.0
        %3313 = vmatprep.subr.mxu0 0.0
        %3314 = vmatpush1.msra.mxu0 0.0
        %3315 = vmatprep.subr.mxu0 0.0
        %3316 = vmatpush1.msra.mxu0 0.0
        %3317 = vmatprep.subr.mxu0 0.0
        %3318 = vmatpush1.msra.mxu0 0.0
        %3319 = vmatprep.subr.mxu0 0.0
        %3320 = vmatpush1.msra.mxu0 0.0
        %3321 = vmatprep.subr.mxu0 0.0
        %3322 = vmatpush1.msra.mxu0 0.0
        %3323 = vmatprep.subr.mxu0 0.0
        %3324 = vmatpush1.msra.mxu0 0.0
        %3325 = vmatprep.subr.mxu0 0.0
        %3326 = vmatpush1.msra.mxu0 0.0
        %3327 = vmatprep.subr.mxu0 0.0
        %3328 = vmatpush1.msra.mxu0 0.0
        %3329 = vmatprep.subr.mxu0 0.0
        %3330 = vmatpush1.msra.mxu0 0.0
        %3331 = vmatprep.subr.mxu0 0.0
        %3332 = vmatpush1.msra.mxu0 0.0
        %3333 = vmatprep.subr.mxu0 0.0
        %3334 = vmatpush1.msra.mxu0 0.0
        %3335 = vmatprep.subr.mxu0 0.0
        %3336 = vmatpush1.msra.mxu0 0.0
        %3337 = vmatprep.subr.mxu0 0.0
        %3338 = vmatpush1.msra.mxu0 0.0
        %3339 = vmatprep.subr.mxu0 0.0
        %3340 = vmatpush1.msra.mxu0 0.0
        %3341 = vmatprep.mubr.f32.mxu0 0.0
        %3342 = vmatmul.mubr.f32.gmra.mrb[0].mxu0 %v2646
        %v3343 = vpop.f32.mrb[0].mxu0
        %v3344 = vadd.f32 %v2624, %v3343
        %v3345 = vpop.f32.mrb[0].mxu0
        %v3346 = vadd.f32 %v2626, %v3345
        %3347 = vmatprep.mubr.f32.mxu0 0.0
        %3348 = vmatmul.mubr.f32.gmra.mrb[0].mxu0 %v2648
        %v3349 = vpop.f32.mrb[0].mxu0
        %v3350 = vadd.f32 %v2630, %v3349
        %v3351 = vpop.f32.mrb[0].mxu0
        %v3352 = vadd.f32 %v2632, %v3351
        %3353 = vmatprep.mubr.f32.mxu0 0.0
        %3354 = vmatmul.mubr.f32.gmra.mrb[0].mxu0 %v2650
        %v3355 = vpop.f32.mrb[0].mxu0
        %v3356 = vadd.f32 %v2636, %v3355
        %v3357 = vpop.f32.mrb[0].mxu0
        %v3358 = vadd.f32 %v2638, %v3357
        %3359 = vmatprep.mubr.f32.mxu0 0.0
        %3360 = vmatmul.mubr.f32.gmra.mrb[0].mxu0 %v2652
        %v3361 = vpop.f32.mrb[0].mxu0
        %v3362 = vadd.f32 %v2642, %v3361
        %v3363 = vpop.f32.mrb[0].mxu0
        %v3364 = vadd.f32 %v2644, %v3363
        %3365 = vdwg.mxu0
        %3367 = vset.pattern.permute.xlu0 0
        %3368 = vperm.xlu0 %3367, %v1910
        %v3369 = vpop.permute.xlu0 %3368
        %3372 = vset.pattern.permute.xlu0 0
        %3373 = vperm.xlu0 %3372, %v1911
        %v3374 = vpop.permute.xlu0 %3373
        %3377 = vset.pattern.permute.xlu0 0
        %3378 = vperm.xlu0 %3377, %v1912
        %v3379 = vpop.permute.xlu0 %3378
        %3382 = vset.pattern.permute.xlu0 0
        %3383 = vperm.xlu0 %3382, %v1913
        %v3384 = vpop.permute.xlu0 %3383
        %v3386 = vadd.f32 %v2721, %v3369
        %v3387 = vadd.f32 %v2723, %v3369
        %v3388 = vadd.f32 %v2810, %v3369
        %v3389 = vadd.f32 %v2812, %v3369
        %v3390 = vadd.f32 %v2899, %v3369
        %v3391 = vadd.f32 %v2901, %v3369
        %v3392 = vadd.f32 %v2988, %v3369
        %v3393 = vadd.f32 %v2990, %v3369
        %v3394 = vadd.f32 %v3077, %v3369
        %v3395 = vadd.f32 %v3079, %v3369
        %v3396 = vadd.f32 %v3166, %v3369
        %v3397 = vadd.f32 %v3168, %v3369
        %v3398 = vadd.f32 %v3255, %v3369
        %v3399 = vadd.f32 %v3257, %v3369
        %v3400 = vadd.f32 %v3344, %v3369
        %v3401 = vadd.f32 %v3346, %v3369
        %v3402 = vadd.f32 %v2727, %v3374
        %v3403 = vadd.f32 %v2729, %v3374
        %v3404 = vadd.f32 %v2816, %v3374
        %v3405 = vadd.f32 %v2818, %v3374
        %v3406 = vadd.f32 %v2905, %v3374
        %v3407 = vadd.f32 %v2907, %v3374
        %v3408 = vadd.f32 %v2994, %v3374
        %v3409 = vadd.f32 %v2996, %v3374
        %v3410 = vadd.f32 %v3083, %v3374
        %v3411 = vadd.f32 %v3085, %v3374
        %v3412 = vadd.f32 %v3172, %v3374
        %v3413 = vadd.f32 %v3174, %v3374
        %v3414 = vadd.f32 %v3261, %v3374
        %v3415 = vadd.f32 %v3263, %v3374
        %v3416 = vadd.f32 %v3350, %v3374
        %v3417 = vadd.f32 %v3352, %v3374
        %v3418 = vadd.f32 %v2733, %v3379
        %v3419 = vadd.f32 %v2735, %v3379
        %v3420 = vadd.f32 %v2822, %v3379
        %v3421 = vadd.f32 %v2824, %v3379
        %v3422 = vadd.f32 %v2911, %v3379
        %v3423 = vadd.f32 %v2913, %v3379
        %v3424 = vadd.f32 %v3000, %v3379
        %v3425 = vadd.f32 %v3002, %v3379
        %v3426 = vadd.f32 %v3089, %v3379
        %v3427 = vadd.f32 %v3091, %v3379
        %v3428 = vadd.f32 %v3178, %v3379
        %v3429 = vadd.f32 %v3180, %v3379
        %v3430 = vadd.f32 %v3267, %v3379
        %v3431 = vadd.f32 %v3269, %v3379
        %v3432 = vadd.f32 %v3356, %v3379
        %v3433 = vadd.f32 %v3358, %v3379
        %v3434 = vadd.f32 %v2739, %v3384
        %v3435 = vadd.f32 %v2741, %v3384
        %v3436 = vadd.f32 %v2828, %v3384
        %v3437 = vadd.f32 %v2830, %v3384
        %v3438 = vadd.f32 %v2917, %v3384
        %v3439 = vadd.f32 %v2919, %v3384
        %v3440 = vadd.f32 %v3006, %v3384
        %v3441 = vadd.f32 %v3008, %v3384
        %v3442 = vadd.f32 %v3095, %v3384
        %v3443 = vadd.f32 %v3097, %v3384
        %v3444 = vadd.f32 %v3184, %v3384
        %v3445 = vadd.f32 %v3186, %v3384
        %v3446 = vadd.f32 %v3273, %v3384
        %v3447 = vadd.f32 %v3275, %v3384
        %v3448 = vadd.f32 %v3362, %v3384
        %v3449 = vadd.f32 %v3364, %v3384
        %v3450 = vmax.f32 %v3386, 0.0
        %v3451 = vmax.f32 %v3387, 0.0
        %v3452 = vmax.f32 %v3388, 0.0
        %v3453 = vmax.f32 %v3389, 0.0
        %v3454 = vmax.f32 %v3390, 0.0
        %v3455 = vmax.f32 %v3391, 0.0
        %v3456 = vmax.f32 %v3392, 0.0
        %v3457 = vmax.f32 %v3393, 0.0
        %v3458 = vmax.f32 %v3394, 0.0
        %v3459 = vmax.f32 %v3395, 0.0
        %v3460 = vmax.f32 %v3396, 0.0
        %v3461 = vmax.f32 %v3397, 0.0
        %v3462 = vmax.f32 %v3398, 0.0
        %v3463 = vmax.f32 %v3399, 0.0
        %v3464 = vmax.f32 %v3400, 0.0
        %v3465 = vmax.f32 %v3401, 0.0
        %v3466 = vmax.f32 %v3402, 0.0
        %v3467 = vmax.f32 %v3403, 0.0
        %v3468 = vmax.f32 %v3404, 0.0
        %v3469 = vmax.f32 %v3405, 0.0
        %v3470 = vmax.f32 %v3406, 0.0
        %v3471 = vmax.f32 %v3407, 0.0
        %v3472 = vmax.f32 %v3408, 0.0
        %v3473 = vmax.f32 %v3409, 0.0
        %v3474 = vmax.f32 %v3410, 0.0
        %v3475 = vmax.f32 %v3411, 0.0
        %v3476 = vmax.f32 %v3412, 0.0
        %v3477 = vmax.f32 %v3413, 0.0
        %v3478 = vmax.f32 %v3414, 0.0
        %v3479 = vmax.f32 %v3415, 0.0
        %v3480 = vmax.f32 %v3416, 0.0
        %v3481 = vmax.f32 %v3417, 0.0
        %v3482 = vmax.f32 %v3418, 0.0
        %v3483 = vmax.f32 %v3419, 0.0
        %v3484 = vmax.f32 %v3420, 0.0
        %v3485 = vmax.f32 %v3421, 0.0
        %v3486 = vmax.f32 %v3422, 0.0
        %v3487 = vmax.f32 %v3423, 0.0
        %v3488 = vmax.f32 %v3424, 0.0
        %v3489 = vmax.f32 %v3425, 0.0
        %v3490 = vmax.f32 %v3426, 0.0
        %v3491 = vmax.f32 %v3427, 0.0
        %v3492 = vmax.f32 %v3428, 0.0
        %v3493 = vmax.f32 %v3429, 0.0
        %v3494 = vmax.f32 %v3430, 0.0
        %v3495 = vmax.f32 %v3431, 0.0
        %v3496 = vmax.f32 %v3432, 0.0
        %v3497 = vmax.f32 %v3433, 0.0
        %v3498 = vmax.f32 %v3434, 0.0
        %v3499 = vmax.f32 %v3435, 0.0
        %v3500 = vmax.f32 %v3436, 0.0
        %v3501 = vmax.f32 %v3437, 0.0
        %v3502 = vmax.f32 %v3438, 0.0
        %v3503 = vmax.f32 %v3439, 0.0
        %v3504 = vmax.f32 %v3440, 0.0
        %v3505 = vmax.f32 %v3441, 0.0
        %v3506 = vmax.f32 %v3442, 0.0
        %v3507 = vmax.f32 %v3443, 0.0
        %v3508 = vmax.f32 %v3444, 0.0
        %v3509 = vmax.f32 %v3445, 0.0
        %v3510 = vmax.f32 %v3446, 0.0
        %v3511 = vmax.f32 %v3447, 0.0
        %v3512 = vmax.f32 %v3448, 0.0
        %v3513 = vmax.f32 %v3449, 0.0
        %s3514 = scalar_lea.vmem %s1, 120
        %v3515 = vld [vmem:[%s3514] sm:$0xff]
        %v3516 = vld [vmem:[%s3514 + $0x8] sm:$0xff]
        %v3517 = vld [vmem:[%s3514 + $0x10] sm:$0xff]
        %v3518 = vld [vmem:[%s3514 + $0x18] sm:$0xff]
        %v3519 = vld [vmem:[%s3514 + $0x20] sm:$0x1]
        %s3520 = scalar_lea.vmem %s2, 120
        %v3521 = vld [vmem:[%s3520] sm:$0xff]
        %v3522 = vld [vmem:[%s3520 + $0x8] sm:$0xff]
        %v3523 = vld [vmem:[%s3520 + $0x10] sm:$0xff]
        %v3524 = vld [vmem:[%s3520 + $0x18] sm:$0xff]
        %v3525 = vld [vmem:[%s3520 + $0x20] sm:$0x1]
        %3527 = vset.pattern.permute.xlu0 0
        %3528 = vperm.xlu0 %3527, %v3521
        %v3529 = vpop.permute.xlu0 %3528
        %3532 = vset.pattern.permute.xlu0 0
        %3533 = vperm.xlu0 %3532, %v3522
        %v3534 = vpop.permute.xlu0 %3533
        %3537 = vset.pattern.permute.xlu0 0
        %3538 = vperm.xlu0 %3537, %v3523
        %v3539 = vpop.permute.xlu0 %3538
        %3542 = vset.pattern.permute.xlu0 0
        %3543 = vperm.xlu0 %3542, %v3524
        %v3544 = vpop.permute.xlu0 %3543
        %3547 = vset.pattern.permute.xlu0 0
        %3548 = vperm.xlu0 %3547, %v3525
        %v3549 = vpop.permute.xlu0 %3548
        %v3552 = vsel %vm1115, %v3515, 0
        %v3555 = vsel %vm1115, %v3516, 0
        %v3558 = vsel %vm1115, %v3517, 0
        %v3561 = vsel %vm1115, %v3518, 0
        %v3564 = vsel %vm1115, %v3519, 0
        %3566 = vmatprep.subr.mxu0 %v3451
        %3567 = vmatpush1.msra.mxu0 %v3450
        %3568 = vmatprep.subr.mxu0 %v3467
        %3569 = vmatpush1.msra.mxu0 %v3466
        %3570 = vmatprep.subr.mxu0 %v3483
        %3571 = vmatpush1.msra.mxu0 %v3482
        %3572 = vmatprep.subr.mxu0 %v3499
        %3573 = vmatpush1.msra.mxu0 %v3498
        %3574 = vmatprep.subr.mxu0 0.0
        %3575 = vmatpush1.msra.mxu0 0.0
        %3576 = vmatprep.subr.mxu0 0.0
        %3577 = vmatpush1.msra.mxu0 0.0
        %3578 = vmatprep.subr.mxu0 0.0
        %3579 = vmatpush1.msra.mxu0 0.0
        %3580 = vmatprep.subr.mxu0 0.0
        %3581 = vmatpush1.msra.mxu0 0.0
        %3582 = vmatprep.subr.mxu0 0.0
        %3583 = vmatpush1.msra.mxu0 0.0
        %3584 = vmatprep.subr.mxu0 0.0
        %3585 = vmatpush1.msra.mxu0 0.0
        %3586 = vmatprep.subr.mxu0 0.0
        %3587 = vmatpush1.msra.mxu0 0.0
        %3588 = vmatprep.subr.mxu0 0.0
        %3589 = vmatpush1.msra.mxu0 0.0
        %3590 = vmatprep.subr.mxu0 0.0
        %3591 = vmatpush1.msra.mxu0 0.0
        %3592 = vmatprep.subr.mxu0 0.0
        %3593 = vmatpush1.msra.mxu0 0.0
        %3594 = vmatprep.subr.mxu0 0.0
        %3595 = vmatpush1.msra.mxu0 0.0
        %3596 = vmatprep.subr.mxu0 0.0
        %3597 = vmatpush1.msra.mxu0 0.0
        %3598 = vmatprep.subr.mxu0 0.0
        %3599 = vmatpush1.msra.mxu0 0.0
        %3600 = vmatprep.subr.mxu0 0.0
        %3601 = vmatpush1.msra.mxu0 0.0
        %3602 = vmatprep.subr.mxu0 0.0
        %3603 = vmatpush1.msra.mxu0 0.0
        %3604 = vmatprep.subr.mxu0 0.0
        %3605 = vmatpush1.msra.mxu0 0.0
        %3606 = vmatprep.subr.mxu0 0.0
        %3607 = vmatpush1.msra.mxu0 0.0
        %3608 = vmatprep.subr.mxu0 0.0
        %3609 = vmatpush1.msra.mxu0 0.0
        %3610 = vmatprep.subr.mxu0 0.0
        %3611 = vmatpush1.msra.mxu0 0.0
        %3612 = vmatprep.subr.mxu0 0.0
        %3613 = vmatpush1.msra.mxu0 0.0
        %3614 = vmatprep.subr.mxu0 0.0
        %3615 = vmatpush1.msra.mxu0 0.0
        %3616 = vmatprep.subr.mxu0 0.0
        %3617 = vmatpush1.msra.mxu0 0.0
        %3618 = vmatprep.subr.mxu0 0.0
        %3619 = vmatpush1.msra.mxu0 0.0
        %3620 = vmatprep.subr.mxu0 0.0
        %3621 = vmatpush1.msra.mxu0 0.0
        %3622 = vmatprep.subr.mxu0 0.0
        %3623 = vmatpush1.msra.mxu0 0.0
        %3624 = vmatprep.subr.mxu0 0.0
        %3625 = vmatpush1.msra.mxu0 0.0
        %3626 = vmatprep.subr.mxu0 0.0
        %3627 = vmatpush1.msra.mxu0 0.0
        %3628 = vmatprep.subr.mxu0 0.0
        %3629 = vmatpush1.msra.mxu0 0.0
        %3630 = vmatprep.mubr.f32.mxu0 0.0
        %3631 = vmatmul.mubr.f32.gmra.mrb[0].mxu0 %v3552
        %v3632 = vpop.f32.mrb[0].mxu0
        %v3633 = vadd.f32 %v3529, %v3632
        %v3634 = vpop.f32.mrb[0].mxu0
        %v3635 = vadd.f32 %v3529, %v3634
        %3636 = vmatprep.mubr.f32.mxu0 0.0
        %3637 = vmatmul.mubr.f32.gmra.mrb[0].mxu0 %v3555
        %v3638 = vpop.f32.mrb[0].mxu0
        %v3639 = vadd.f32 %v3534, %v3638
        %v3640 = vpop.f32.mrb[0].mxu0
        %v3641 = vadd.f32 %v3534, %v3640
        %3642 = vmatprep.mubr.f32.mxu0 0.0
        %3643 = vmatmul.mubr.f32.gmra.mrb[0].mxu0 %v3558
        %v3644 = vpop.f32.mrb[0].mxu0
        %v3645 = vadd.f32 %v3539, %v3644
        %v3646 = vpop.f32.mrb[0].mxu0
        %v3647 = vadd.f32 %v3539, %v3646
        %3648 = vmatprep.mubr.f32.mxu0 0.0
        %3649 = vmatmul.mubr.f32.gmra.mrb[0].mxu0 %v3561
        %v3650 = vpop.f32.mrb[0].mxu0
        %v3651 = vadd.f32 %v3544, %v3650
        %v3652 = vpop.f32.mrb[0].mxu0
        %v3653 = vadd.f32 %v3544, %v3652
        %3654 = vmatprep.mubr.f32.mxu0 0.0
        %3655 = vmatmul.mubr.f32.gmra.mrb[0].mxu0 %v3564
        %v3656 = vpop.f32.mrb[0].mxu0
        %v3657 = vadd.f32 %v3549, %v3656
        %v3658 = vpop.f32.mrb[0].mxu0
        %v3659 = vadd.f32 %v3549, %v3658
        %3660 = vdwg.mxu0
        %3661 = vmatprep.subr.mxu0 %v3453
        %3662 = vmatpush1.msra.mxu0 %v3452
        %3663 = vmatprep.subr.mxu0 %v3469
        %3664 = vmatpush1.msra.mxu0 %v3468
        %3665 = vmatprep.subr.mxu0 %v3485
        %3666 = vmatpush1.msra.mxu0 %v3484
        %3667 = vmatprep.subr.mxu0 %v3501
        %3668 = vmatpush1.msra.mxu0 %v3500
        %3669 = vmatprep.subr.mxu0 0.0
        %3670 = vmatpush1.msra.mxu0 0.0
        %3671 = vmatprep.subr.mxu0 0.0
        %3672 = vmatpush1.msra.mxu0 0.0
        %3673 = vmatprep.subr.mxu0 0.0
        %3674 = vmatpush1.msra.mxu0 0.0
        %3675 = vmatprep.subr.mxu0 0.0
        %3676 = vmatpush1.msra.mxu0 0.0
        %3677 = vmatprep.subr.mxu0 0.0
        %3678 = vmatpush1.msra.mxu0 0.0
        %3679 = vmatprep.subr.mxu0 0.0
        %3680 = vmatpush1.msra.mxu0 0.0
        %3681 = vmatprep.subr.mxu0 0.0
        %3682 = vmatpush1.msra.mxu0 0.0
        %3683 = vmatprep.subr.mxu0 0.0
        %3684 = vmatpush1.msra.mxu0 0.0
        %3685 = vmatprep.subr.mxu0 0.0
        %3686 = vmatpush1.msra.mxu0 0.0
        %3687 = vmatprep.subr.mxu0 0.0
        %3688 = vmatpush1.msra.mxu0 0.0
        %3689 = vmatprep.subr.mxu0 0.0
        %3690 = vmatpush1.msra.mxu0 0.0
        %3691 = vmatprep.subr.mxu0 0.0
        %3692 = vmatpush1.msra.mxu0 0.0
        %3693 = vmatprep.subr.mxu0 0.0
        %3694 = vmatpush1.msra.mxu0 0.0
        %3695 = vmatprep.subr.mxu0 0.0
        %3696 = vmatpush1.msra.mxu0 0.0
        %3697 = vmatprep.subr.mxu0 0.0
        %3698 = vmatpush1.msra.mxu0 0.0
        %3699 = vmatprep.subr.mxu0 0.0
        %3700 = vmatpush1.msra.mxu0 0.0
        %3701 = vmatprep.subr.mxu0 0.0
        %3702 = vmatpush1.msra.mxu0 0.0
        %3703 = vmatprep.subr.mxu0 0.0
        %3704 = vmatpush1.msra.mxu0 0.0
        %3705 = vmatprep.subr.mxu0 0.0
        %3706 = vmatpush1.msra.mxu0 0.0
        %3707 = vmatprep.subr.mxu0 0.0
        %3708 = vmatpush1.msra.mxu0 0.0
        %3709 = vmatprep.subr.mxu0 0.0
        %3710 = vmatpush1.msra.mxu0 0.0
        %3711 = vmatprep.subr.mxu0 0.0
        %3712 = vmatpush1.msra.mxu0 0.0
        %3713 = vmatprep.subr.mxu0 0.0
        %3714 = vmatpush1.msra.mxu0 0.0
        %3715 = vmatprep.subr.mxu0 0.0
        %3716 = vmatpush1.msra.mxu0 0.0
        %3717 = vmatprep.subr.mxu0 0.0
        %3718 = vmatpush1.msra.mxu0 0.0
        %3719 = vmatprep.subr.mxu0 0.0
        %3720 = vmatpush1.msra.mxu0 0.0
        %3721 = vmatprep.subr.mxu0 0.0
        %3722 = vmatpush1.msra.mxu0 0.0
        %3723 = vmatprep.subr.mxu0 0.0
        %3724 = vmatpush1.msra.mxu0 0.0
        %3725 = vmatprep.mubr.f32.mxu0 0.0
        %3726 = vmatmul.mubr.f32.gmra.mrb[0].mxu0 %v3552
        %v3727 = vpop.f32.mrb[0].mxu0
        %v3728 = vadd.f32 %v3529, %v3727
        %v3729 = vpop.f32.mrb[0].mxu0
        %v3730 = vadd.f32 %v3529, %v3729
        %3731 = vmatprep.mubr.f32.mxu0 0.0
        %3732 = vmatmul.mubr.f32.gmra.mrb[0].mxu0 %v3555
        %v3733 = vpop.f32.mrb[0].mxu0
        %v3734 = vadd.f32 %v3534, %v3733
        %v3735 = vpop.f32.mrb[0].mxu0
        %v3736 = vadd.f32 %v3534, %v3735
        %3737 = vmatprep.mubr.f32.mxu0 0.0
        %3738 = vmatmul.mubr.f32.gmra.mrb[0].mxu0 %v3558
        %v3739 = vpop.f32.mrb[0].mxu0
        %v3740 = vadd.f32 %v3539, %v3739
        %v3741 = vpop.f32.mrb[0].mxu0
        %v3742 = vadd.f32 %v3539, %v3741
        %3743 = vmatprep.mubr.f32.mxu0 0.0
        %3744 = vmatmul.mubr.f32.gmra.mrb[0].mxu0 %v3561
        %v3745 = vpop.f32.mrb[0].mxu0
        %v3746 = vadd.f32 %v3544, %v3745
        %v3747 = vpop.f32.mrb[0].mxu0
        %v3748 = vadd.f32 %v3544, %v3747
        %3749 = vmatprep.mubr.f32.mxu0 0.0
        %3750 = vmatmul.mubr.f32.gmra.mrb[0].mxu0 %v3564
        %v3751 = vpop.f32.mrb[0].mxu0
        %v3752 = vadd.f32 %v3549, %v3751
        %v3753 = vpop.f32.mrb[0].mxu0
        %v3754 = vadd.f32 %v3549, %v3753
        %3755 = vdwg.mxu0
        %3756 = vmatprep.subr.mxu0 %v3455
        %3757 = vmatpush1.msra.mxu0 %v3454
        %3758 = vmatprep.subr.mxu0 %v3471
        %3759 = vmatpush1.msra.mxu0 %v3470
        %3760 = vmatprep.subr.mxu0 %v3487
        %3761 = vmatpush1.msra.mxu0 %v3486
        %3762 = vmatprep.subr.mxu0 %v3503
        %3763 = vmatpush1.msra.mxu0 %v3502
        %3764 = vmatprep.subr.mxu0 0.0
        %3765 = vmatpush1.msra.mxu0 0.0
        %3766 = vmatprep.subr.mxu0 0.0
        %3767 = vmatpush1.msra.mxu0 0.0
        %3768 = vmatprep.subr.mxu0 0.0
        %3769 = vmatpush1.msra.mxu0 0.0
        %3770 = vmatprep.subr.mxu0 0.0
        %3771 = vmatpush1.msra.mxu0 0.0
        %3772 = vmatprep.subr.mxu0 0.0
        %3773 = vmatpush1.msra.mxu0 0.0
        %3774 = vmatprep.subr.mxu0 0.0
        %3775 = vmatpush1.msra.mxu0 0.0
        %3776 = vmatprep.subr.mxu0 0.0
        %3777 = vmatpush1.msra.mxu0 0.0
        %3778 = vmatprep.subr.mxu0 0.0
        %3779 = vmatpush1.msra.mxu0 0.0
        %3780 = vmatprep.subr.mxu0 0.0
        %3781 = vmatpush1.msra.mxu0 0.0
        %3782 = vmatprep.subr.mxu0 0.0
        %3783 = vmatpush1.msra.mxu0 0.0
        %3784 = vmatprep.subr.mxu0 0.0
        %3785 = vmatpush1.msra.mxu0 0.0
        %3786 = vmatprep.subr.mxu0 0.0
        %3787 = vmatpush1.msra.mxu0 0.0
        %3788 = vmatprep.subr.mxu0 0.0
        %3789 = vmatpush1.msra.mxu0 0.0
        %3790 = vmatprep.subr.mxu0 0.0
        %3791 = vmatpush1.msra.mxu0 0.0
        %3792 = vmatprep.subr.mxu0 0.0
        %3793 = vmatpush1.msra.mxu0 0.0
        %3794 = vmatprep.subr.mxu0 0.0
        %3795 = vmatpush1.msra.mxu0 0.0
        %3796 = vmatprep.subr.mxu0 0.0
        %3797 = vmatpush1.msra.mxu0 0.0
        %3798 = vmatprep.subr.mxu0 0.0
        %3799 = vmatpush1.msra.mxu0 0.0
        %3800 = vmatprep.subr.mxu0 0.0
        %3801 = vmatpush1.msra.mxu0 0.0
        %3802 = vmatprep.subr.mxu0 0.0
        %3803 = vmatpush1.msra.mxu0 0.0
        %3804 = vmatprep.subr.mxu0 0.0
        %3805 = vmatpush1.msra.mxu0 0.0
        %3806 = vmatprep.subr.mxu0 0.0
        %3807 = vmatpush1.msra.mxu0 0.0
        %3808 = vmatprep.subr.mxu0 0.0
        %3809 = vmatpush1.msra.mxu0 0.0
        %3810 = vmatprep.subr.mxu0 0.0
        %3811 = vmatpush1.msra.mxu0 0.0
        %3812 = vmatprep.subr.mxu0 0.0
        %3813 = vmatpush1.msra.mxu0 0.0
        %3814 = vmatprep.subr.mxu0 0.0
        %3815 = vmatpush1.msra.mxu0 0.0
        %3816 = vmatprep.subr.mxu0 0.0
        %3817 = vmatpush1.msra.mxu0 0.0
        %3818 = vmatprep.subr.mxu0 0.0
        %3819 = vmatpush1.msra.mxu0 0.0
        %3820 = vmatprep.mubr.f32.mxu0 0.0
        %3821 = vmatmul.mubr.f32.gmra.mrb[0].mxu0 %v3552
        %v3822 = vpop.f32.mrb[0].mxu0
        %v3823 = vadd.f32 %v3529, %v3822
        %v3824 = vpop.f32.mrb[0].mxu0
        %v3825 = vadd.f32 %v3529, %v3824
        %3826 = vmatprep.mubr.f32.mxu0 0.0
        %3827 = vmatmul.mubr.f32.gmra.mrb[0].mxu0 %v3555
        %v3828 = vpop.f32.mrb[0].mxu0
        %v3829 = vadd.f32 %v3534, %v3828
        %v3830 = vpop.f32.mrb[0].mxu0
        %v3831 = vadd.f32 %v3534, %v3830
        %3832 = vmatprep.mubr.f32.mxu0 0.0
        %3833 = vmatmul.mubr.f32.gmra.mrb[0].mxu0 %v3558
        %v3834 = vpop.f32.mrb[0].mxu0
        %v3835 = vadd.f32 %v3539, %v3834
        %v3836 = vpop.f32.mrb[0].mxu0
        %v3837 = vadd.f32 %v3539, %v3836
        %3838 = vmatprep.mubr.f32.mxu0 0.0
        %3839 = vmatmul.mubr.f32.gmra.mrb[0].mxu0 %v3561
        %v3840 = vpop.f32.mrb[0].mxu0
        %v3841 = vadd.f32 %v3544, %v3840
        %v3842 = vpop.f32.mrb[0].mxu0
        %v3843 = vadd.f32 %v3544, %v3842
        %3844 = vmatprep.mubr.f32.mxu0 0.0
        %3845 = vmatmul.mubr.f32.gmra.mrb[0].mxu0 %v3564
        %v3846 = vpop.f32.mrb[0].mxu0
        %v3847 = vadd.f32 %v3549, %v3846
        %v3848 = vpop.f32.mrb[0].mxu0
        %v3849 = vadd.f32 %v3549, %v3848
        %3850 = vdwg.mxu0
        %3851 = vmatprep.subr.mxu0 %v3457
        %3852 = vmatpush1.msra.mxu0 %v3456
        %3853 = vmatprep.subr.mxu0 %v3473
        %3854 = vmatpush1.msra.mxu0 %v3472
        %3855 = vmatprep.subr.mxu0 %v3489
        %3856 = vmatpush1.msra.mxu0 %v3488
        %3857 = vmatprep.subr.mxu0 %v3505
        %3858 = vmatpush1.msra.mxu0 %v3504
        %3859 = vmatprep.subr.mxu0 0.0
        %3860 = vmatpush1.msra.mxu0 0.0
        %3861 = vmatprep.subr.mxu0 0.0
        %3862 = vmatpush1.msra.mxu0 0.0
        %3863 = vmatprep.subr.mxu0 0.0
        %3864 = vmatpush1.msra.mxu0 0.0
        %3865 = vmatprep.subr.mxu0 0.0
        %3866 = vmatpush1.msra.mxu0 0.0
        %3867 = vmatprep.subr.mxu0 0.0
        %3868 = vmatpush1.msra.mxu0 0.0
        %3869 = vmatprep.subr.mxu0 0.0
        %3870 = vmatpush1.msra.mxu0 0.0
        %3871 = vmatprep.subr.mxu0 0.0
        %3872 = vmatpush1.msra.mxu0 0.0
        %3873 = vmatprep.subr.mxu0 0.0
        %3874 = vmatpush1.msra.mxu0 0.0
        %3875 = vmatprep.subr.mxu0 0.0
        %3876 = vmatpush1.msra.mxu0 0.0
        %3877 = vmatprep.subr.mxu0 0.0
        %3878 = vmatpush1.msra.mxu0 0.0
        %3879 = vmatprep.subr.mxu0 0.0
        %3880 = vmatpush1.msra.mxu0 0.0
        %3881 = vmatprep.subr.mxu0 0.0
        %3882 = vmatpush1.msra.mxu0 0.0
        %3883 = vmatprep.subr.mxu0 0.0
        %3884 = vmatpush1.msra.mxu0 0.0
        %3885 = vmatprep.subr.mxu0 0.0
        %3886 = vmatpush1.msra.mxu0 0.0
        %3887 = vmatprep.subr.mxu0 0.0
        %3888 = vmatpush1.msra.mxu0 0.0
        %3889 = vmatprep.subr.mxu0 0.0
        %3890 = vmatpush1.msra.mxu0 0.0
        %3891 = vmatprep.subr.mxu0 0.0
        %3892 = vmatpush1.msra.mxu0 0.0
        %3893 = vmatprep.subr.mxu0 0.0
        %3894 = vmatpush1.msra.mxu0 0.0
        %3895 = vmatprep.subr.mxu0 0.0
        %3896 = vmatpush1.msra.mxu0 0.0
        %3897 = vmatprep.subr.mxu0 0.0
        %3898 = vmatpush1.msra.mxu0 0.0
        %3899 = vmatprep.subr.mxu0 0.0
        %3900 = vmatpush1.msra.mxu0 0.0
        %3901 = vmatprep.subr.mxu0 0.0
        %3902 = vmatpush1.msra.mxu0 0.0
        %3903 = vmatprep.subr.mxu0 0.0
        %3904 = vmatpush1.msra.mxu0 0.0
        %3905 = vmatprep.subr.mxu0 0.0
        %3906 = vmatpush1.msra.mxu0 0.0
        %3907 = vmatprep.subr.mxu0 0.0
        %3908 = vmatpush1.msra.mxu0 0.0
        %3909 = vmatprep.subr.mxu0 0.0
        %3910 = vmatpush1.msra.mxu0 0.0
        %3911 = vmatprep.subr.mxu0 0.0
        %3912 = vmatpush1.msra.mxu0 0.0
        %3913 = vmatprep.subr.mxu0 0.0
        %3914 = vmatpush1.msra.mxu0 0.0
        %3915 = vmatprep.mubr.f32.mxu0 0.0
        %3916 = vmatmul.mubr.f32.gmra.mrb[0].mxu0 %v3552
        %v3917 = vpop.f32.mrb[0].mxu0
        %v3918 = vadd.f32 %v3529, %v3917
        %v3919 = vpop.f32.mrb[0].mxu0
        %v3920 = vadd.f32 %v3529, %v3919
        %3921 = vmatprep.mubr.f32.mxu0 0.0
        %3922 = vmatmul.mubr.f32.gmra.mrb[0].mxu0 %v3555
        %v3923 = vpop.f32.mrb[0].mxu0
        %v3924 = vadd.f32 %v3534, %v3923
        %v3925 = vpop.f32.mrb[0].mxu0
        %v3926 = vadd.f32 %v3534, %v3925
        %3927 = vmatprep.mubr.f32.mxu0 0.0
        %3928 = vmatmul.mubr.f32.gmra.mrb[0].mxu0 %v3558
        %v3929 = vpop.f32.mrb[0].mxu0
        %v3930 = vadd.f32 %v3539, %v3929
        %v3931 = vpop.f32.mrb[0].mxu0
        %v3932 = vadd.f32 %v3539, %v3931
        %3933 = vmatprep.mubr.f32.mxu0 0.0
        %3934 = vmatmul.mubr.f32.gmra.mrb[0].mxu0 %v3561
        %v3935 = vpop.f32.mrb[0].mxu0
        %v3936 = vadd.f32 %v3544, %v3935
        %v3937 = vpop.f32.mrb[0].mxu0
        %v3938 = vadd.f32 %v3544, %v3937
        %3939 = vmatprep.mubr.f32.mxu0 0.0
        %3940 = vmatmul.mubr.f32.gmra.mrb[0].mxu0 %v3564
        %v3941 = vpop.f32.mrb[0].mxu0
        %v3942 = vadd.f32 %v3549, %v3941
        %v3943 = vpop.f32.mrb[0].mxu0
        %v3944 = vadd.f32 %v3549, %v3943
        %3945 = vdwg.mxu0
        %3946 = vmatprep.subr.mxu0 %v3459
        %3947 = vmatpush1.msra.mxu0 %v3458
        %3948 = vmatprep.subr.mxu0 %v3475
        %3949 = vmatpush1.msra.mxu0 %v3474
        %3950 = vmatprep.subr.mxu0 %v3491
        %3951 = vmatpush1.msra.mxu0 %v3490
        %3952 = vmatprep.subr.mxu0 %v3507
        %3953 = vmatpush1.msra.mxu0 %v3506
        %3954 = vmatprep.subr.mxu0 0.0
        %3955 = vmatpush1.msra.mxu0 0.0
        %3956 = vmatprep.subr.mxu0 0.0
        %3957 = vmatpush1.msra.mxu0 0.0
        %3958 = vmatprep.subr.mxu0 0.0
        %3959 = vmatpush1.msra.mxu0 0.0
        %3960 = vmatprep.subr.mxu0 0.0
        %3961 = vmatpush1.msra.mxu0 0.0
        %3962 = vmatprep.subr.mxu0 0.0
        %3963 = vmatpush1.msra.mxu0 0.0
        %3964 = vmatprep.subr.mxu0 0.0
        %3965 = vmatpush1.msra.mxu0 0.0
        %3966 = vmatprep.subr.mxu0 0.0
        %3967 = vmatpush1.msra.mxu0 0.0
        %3968 = vmatprep.subr.mxu0 0.0
        %3969 = vmatpush1.msra.mxu0 0.0
        %3970 = vmatprep.subr.mxu0 0.0
        %3971 = vmatpush1.msra.mxu0 0.0
        %3972 = vmatprep.subr.mxu0 0.0
        %3973 = vmatpush1.msra.mxu0 0.0
        %3974 = vmatprep.subr.mxu0 0.0
        %3975 = vmatpush1.msra.mxu0 0.0
        %3976 = vmatprep.subr.mxu0 0.0
        %3977 = vmatpush1.msra.mxu0 0.0
        %3978 = vmatprep.subr.mxu0 0.0
        %3979 = vmatpush1.msra.mxu0 0.0
        %3980 = vmatprep.subr.mxu0 0.0
        %3981 = vmatpush1.msra.mxu0 0.0
        %3982 = vmatprep.subr.mxu0 0.0
        %3983 = vmatpush1.msra.mxu0 0.0
        %3984 = vmatprep.subr.mxu0 0.0
        %3985 = vmatpush1.msra.mxu0 0.0
        %3986 = vmatprep.subr.mxu0 0.0
        %3987 = vmatpush1.msra.mxu0 0.0
        %3988 = vmatprep.subr.mxu0 0.0
        %3989 = vmatpush1.msra.mxu0 0.0
        %3990 = vmatprep.subr.mxu0 0.0
        %3991 = vmatpush1.msra.mxu0 0.0
        %3992 = vmatprep.subr.mxu0 0.0
        %3993 = vmatpush1.msra.mxu0 0.0
        %3994 = vmatprep.subr.mxu0 0.0
        %3995 = vmatpush1.msra.mxu0 0.0
        %3996 = vmatprep.subr.mxu0 0.0
        %3997 = vmatpush1.msra.mxu0 0.0
        %3998 = vmatprep.subr.mxu0 0.0
        %3999 = vmatpush1.msra.mxu0 0.0
        %4000 = vmatprep.subr.mxu0 0.0
        %4001 = vmatpush1.msra.mxu0 0.0
        %4002 = vmatprep.subr.mxu0 0.0
        %4003 = vmatpush1.msra.mxu0 0.0
        %4004 = vmatprep.subr.mxu0 0.0
        %4005 = vmatpush1.msra.mxu0 0.0
        %4006 = vmatprep.subr.mxu0 0.0
        %4007 = vmatpush1.msra.mxu0 0.0
        %4008 = vmatprep.subr.mxu0 0.0
        %4009 = vmatpush1.msra.mxu0 0.0
        %4010 = vmatprep.mubr.f32.mxu0 0.0
        %4011 = vmatmul.mubr.f32.gmra.mrb[0].mxu0 %v3552
        %v4012 = vpop.f32.mrb[0].mxu0
        %v4013 = vadd.f32 %v3529, %v4012
        %v4014 = vpop.f32.mrb[0].mxu0
        %v4015 = vadd.f32 %v3529, %v4014
        %4016 = vmatprep.mubr.f32.mxu0 0.0
        %4017 = vmatmul.mubr.f32.gmra.mrb[0].mxu0 %v3555
        %v4018 = vpop.f32.mrb[0].mxu0
        %v4019 = vadd.f32 %v3534, %v4018
        %v4020 = vpop.f32.mrb[0].mxu0
        %v4021 = vadd.f32 %v3534, %v4020
        %4022 = vmatprep.mubr.f32.mxu0 0.0
        %4023 = vmatmul.mubr.f32.gmra.mrb[0].mxu0 %v3558
        %v4024 = vpop.f32.mrb[0].mxu0
        %v4025 = vadd.f32 %v3539, %v4024
        %v4026 = vpop.f32.mrb[0].mxu0
        %v4027 = vadd.f32 %v3539, %v4026
        %4028 = vmatprep.mubr.f32.mxu0 0.0
        %4029 = vmatmul.mubr.f32.gmra.mrb[0].mxu0 %v3561
        %v4030 = vpop.f32.mrb[0].mxu0
        %v4031 = vadd.f32 %v3544, %v4030
        %v4032 = vpop.f32.mrb[0].mxu0
        %v4033 = vadd.f32 %v3544, %v4032
        %4034 = vmatprep.mubr.f32.mxu0 0.0
        %4035 = vmatmul.mubr.f32.gmra.mrb[0].mxu0 %v3564
        %v4036 = vpop.f32.mrb[0].mxu0
        %v4037 = vadd.f32 %v3549, %v4036
        %v4038 = vpop.f32.mrb[0].mxu0
        %v4039 = vadd.f32 %v3549, %v4038
        %4040 = vdwg.mxu0
        %4041 = vmatprep.subr.mxu0 %v3461
        %4042 = vmatpush1.msra.mxu0 %v3460
        %4043 = vmatprep.subr.mxu0 %v3477
        %4044 = vmatpush1.msra.mxu0 %v3476
        %4045 = vmatprep.subr.mxu0 %v3493
        %4046 = vmatpush1.msra.mxu0 %v3492
        %4047 = vmatprep.subr.mxu0 %v3509
        %4048 = vmatpush1.msra.mxu0 %v3508
        %4049 = vmatprep.subr.mxu0 0.0
        %4050 = vmatpush1.msra.mxu0 0.0
        %4051 = vmatprep.subr.mxu0 0.0
        %4052 = vmatpush1.msra.mxu0 0.0
        %4053 = vmatprep.subr.mxu0 0.0
        %4054 = vmatpush1.msra.mxu0 0.0
        %4055 = vmatprep.subr.mxu0 0.0
        %4056 = vmatpush1.msra.mxu0 0.0
        %4057 = vmatprep.subr.mxu0 0.0
        %4058 = vmatpush1.msra.mxu0 0.0
        %4059 = vmatprep.subr.mxu0 0.0
        %4060 = vmatpush1.msra.mxu0 0.0
        %4061 = vmatprep.subr.mxu0 0.0
        %4062 = vmatpush1.msra.mxu0 0.0
        %4063 = vmatprep.subr.mxu0 0.0
        %4064 = vmatpush1.msra.mxu0 0.0
        %4065 = vmatprep.subr.mxu0 0.0
        %4066 = vmatpush1.msra.mxu0 0.0
        %4067 = vmatprep.subr.mxu0 0.0
        %4068 = vmatpush1.msra.mxu0 0.0
        %4069 = vmatprep.subr.mxu0 0.0
        %4070 = vmatpush1.msra.mxu0 0.0
        %4071 = vmatprep.subr.mxu0 0.0
        %4072 = vmatpush1.msra.mxu0 0.0
        %4073 = vmatprep.subr.mxu0 0.0
        %4074 = vmatpush1.msra.mxu0 0.0
        %4075 = vmatprep.subr.mxu0 0.0
        %4076 = vmatpush1.msra.mxu0 0.0
        %4077 = vmatprep.subr.mxu0 0.0
        %4078 = vmatpush1.msra.mxu0 0.0
        %4079 = vmatprep.subr.mxu0 0.0
        %4080 = vmatpush1.msra.mxu0 0.0
        %4081 = vmatprep.subr.mxu0 0.0
        %4082 = vmatpush1.msra.mxu0 0.0
        %4083 = vmatprep.subr.mxu0 0.0
        %4084 = vmatpush1.msra.mxu0 0.0
        %4085 = vmatprep.subr.mxu0 0.0
        %4086 = vmatpush1.msra.mxu0 0.0
        %4087 = vmatprep.subr.mxu0 0.0
        %4088 = vmatpush1.msra.mxu0 0.0
        %4089 = vmatprep.subr.mxu0 0.0
        %4090 = vmatpush1.msra.mxu0 0.0
        %4091 = vmatprep.subr.mxu0 0.0
        %4092 = vmatpush1.msra.mxu0 0.0
        %4093 = vmatprep.subr.mxu0 0.0
        %4094 = vmatpush1.msra.mxu0 0.0
        %4095 = vmatprep.subr.mxu0 0.0
        %4096 = vmatpush1.msra.mxu0 0.0
        %4097 = vmatprep.subr.mxu0 0.0
        %4098 = vmatpush1.msra.mxu0 0.0
        %4099 = vmatprep.subr.mxu0 0.0
        %4100 = vmatpush1.msra.mxu0 0.0
        %4101 = vmatprep.subr.mxu0 0.0
        %4102 = vmatpush1.msra.mxu0 0.0
        %4103 = vmatprep.subr.mxu0 0.0
        %4104 = vmatpush1.msra.mxu0 0.0
        %4105 = vmatprep.mubr.f32.mxu0 0.0
        %4106 = vmatmul.mubr.f32.gmra.mrb[0].mxu0 %v3552
        %v4107 = vpop.f32.mrb[0].mxu0
        %v4108 = vadd.f32 %v3529, %v4107
        %v4109 = vpop.f32.mrb[0].mxu0
        %v4110 = vadd.f32 %v3529, %v4109
        %4111 = vmatprep.mubr.f32.mxu0 0.0
        %4112 = vmatmul.mubr.f32.gmra.mrb[0].mxu0 %v3555
        %v4113 = vpop.f32.mrb[0].mxu0
        %v4114 = vadd.f32 %v3534, %v4113
        %v4115 = vpop.f32.mrb[0].mxu0
        %v4116 = vadd.f32 %v3534, %v4115
        %4117 = vmatprep.mubr.f32.mxu0 0.0
        %4118 = vmatmul.mubr.f32.gmra.mrb[0].mxu0 %v3558
        %v4119 = vpop.f32.mrb[0].mxu0
        %v4120 = vadd.f32 %v3539, %v4119
        %v4121 = vpop.f32.mrb[0].mxu0
        %v4122 = vadd.f32 %v3539, %v4121
        %4123 = vmatprep.mubr.f32.mxu0 0.0
        %4124 = vmatmul.mubr.f32.gmra.mrb[0].mxu0 %v3561
        %v4125 = vpop.f32.mrb[0].mxu0
        %v4126 = vadd.f32 %v3544, %v4125
        %v4127 = vpop.f32.mrb[0].mxu0
        %v4128 = vadd.f32 %v3544, %v4127
        %4129 = vmatprep.mubr.f32.mxu0 0.0
        %4130 = vmatmul.mubr.f32.gmra.mrb[0].mxu0 %v3564
        %v4131 = vpop.f32.mrb[0].mxu0
        %v4132 = vadd.f32 %v3549, %v4131
        %v4133 = vpop.f32.mrb[0].mxu0
        %v4134 = vadd.f32 %v3549, %v4133
        %4135 = vdwg.mxu0
        %4136 = vmatprep.subr.mxu0 %v3463
        %4137 = vmatpush1.msra.mxu0 %v3462
        %4138 = vmatprep.subr.mxu0 %v3479
        %4139 = vmatpush1.msra.mxu0 %v3478
        %4140 = vmatprep.subr.mxu0 %v3495
        %4141 = vmatpush1.msra.mxu0 %v3494
        %4142 = vmatprep.subr.mxu0 %v3511
        %4143 = vmatpush1.msra.mxu0 %v3510
        %4144 = vmatprep.subr.mxu0 0.0
        %4145 = vmatpush1.msra.mxu0 0.0
        %4146 = vmatprep.subr.mxu0 0.0
        %4147 = vmatpush1.msra.mxu0 0.0
        %4148 = vmatprep.subr.mxu0 0.0
        %4149 = vmatpush1.msra.mxu0 0.0
        %4150 = vmatprep.subr.mxu0 0.0
        %4151 = vmatpush1.msra.mxu0 0.0
        %4152 = vmatprep.subr.mxu0 0.0
        %4153 = vmatpush1.msra.mxu0 0.0
        %4154 = vmatprep.subr.mxu0 0.0
        %4155 = vmatpush1.msra.mxu0 0.0
        %4156 = vmatprep.subr.mxu0 0.0
        %4157 = vmatpush1.msra.mxu0 0.0
        %4158 = vmatprep.subr.mxu0 0.0
        %4159 = vmatpush1.msra.mxu0 0.0
        %4160 = vmatprep.subr.mxu0 0.0
        %4161 = vmatpush1.msra.mxu0 0.0
        %4162 = vmatprep.subr.mxu0 0.0
        %4163 = vmatpush1.msra.mxu0 0.0
        %4164 = vmatprep.subr.mxu0 0.0
        %4165 = vmatpush1.msra.mxu0 0.0
        %4166 = vmatprep.subr.mxu0 0.0
        %4167 = vmatpush1.msra.mxu0 0.0
        %4168 = vmatprep.subr.mxu0 0.0
        %4169 = vmatpush1.msra.mxu0 0.0
        %4170 = vmatprep.subr.mxu0 0.0
        %4171 = vmatpush1.msra.mxu0 0.0
        %4172 = vmatprep.subr.mxu0 0.0
        %4173 = vmatpush1.msra.mxu0 0.0
        %4174 = vmatprep.subr.mxu0 0.0
        %4175 = vmatpush1.msra.mxu0 0.0
        %4176 = vmatprep.subr.mxu0 0.0
        %4177 = vmatpush1.msra.mxu0 0.0
        %4178 = vmatprep.subr.mxu0 0.0
        %4179 = vmatpush1.msra.mxu0 0.0
        %4180 = vmatprep.subr.mxu0 0.0
        %4181 = vmatpush1.msra.mxu0 0.0
        %4182 = vmatprep.subr.mxu0 0.0
        %4183 = vmatpush1.msra.mxu0 0.0
        %4184 = vmatprep.subr.mxu0 0.0
        %4185 = vmatpush1.msra.mxu0 0.0
        %4186 = vmatprep.subr.mxu0 0.0
        %4187 = vmatpush1.msra.mxu0 0.0
        %4188 = vmatprep.subr.mxu0 0.0
        %4189 = vmatpush1.msra.mxu0 0.0
        %4190 = vmatprep.subr.mxu0 0.0
        %4191 = vmatpush1.msra.mxu0 0.0
        %4192 = vmatprep.subr.mxu0 0.0
        %4193 = vmatpush1.msra.mxu0 0.0
        %4194 = vmatprep.subr.mxu0 0.0
        %4195 = vmatpush1.msra.mxu0 0.0
        %4196 = vmatprep.subr.mxu0 0.0
        %4197 = vmatpush1.msra.mxu0 0.0
        %4198 = vmatprep.subr.mxu0 0.0
        %4199 = vmatpush1.msra.mxu0 0.0
        %4200 = vmatprep.mubr.f32.mxu0 0.0
        %4201 = vmatmul.mubr.f32.gmra.mrb[0].mxu0 %v3552
        %v4202 = vpop.f32.mrb[0].mxu0
        %v4203 = vadd.f32 %v3529, %v4202
        %v4204 = vpop.f32.mrb[0].mxu0
        %v4205 = vadd.f32 %v3529, %v4204
        %4206 = vmatprep.mubr.f32.mxu0 0.0
        %4207 = vmatmul.mubr.f32.gmra.mrb[0].mxu0 %v3555
        %v4208 = vpop.f32.mrb[0].mxu0
        %v4209 = vadd.f32 %v3534, %v4208
        %v4210 = vpop.f32.mrb[0].mxu0
        %v4211 = vadd.f32 %v3534, %v4210
        %4212 = vmatprep.mubr.f32.mxu0 0.0
        %4213 = vmatmul.mubr.f32.gmra.mrb[0].mxu0 %v3558
        %v4214 = vpop.f32.mrb[0].mxu0
        %v4215 = vadd.f32 %v3539, %v4214
        %v4216 = vpop.f32.mrb[0].mxu0
        %v4217 = vadd.f32 %v3539, %v4216
        %4218 = vmatprep.mubr.f32.mxu0 0.0
        %4219 = vmatmul.mubr.f32.gmra.mrb[0].mxu0 %v3561
        %v4220 = vpop.f32.mrb[0].mxu0
        %v4221 = vadd.f32 %v3544, %v4220
        %v4222 = vpop.f32.mrb[0].mxu0
        %v4223 = vadd.f32 %v3544, %v4222
        %4224 = vmatprep.mubr.f32.mxu0 0.0
        %4225 = vmatmul.mubr.f32.gmra.mrb[0].mxu0 %v3564
        %v4226 = vpop.f32.mrb[0].mxu0
        %v4227 = vadd.f32 %v3549, %v4226
        %v4228 = vpop.f32.mrb[0].mxu0
        %v4229 = vadd.f32 %v3549, %v4228
        %4230 = vdwg.mxu0
        %4231 = vmatprep.subr.mxu0 %v3465
        %4232 = vmatpush1.msra.mxu0 %v3464
        %4233 = vmatprep.subr.mxu0 %v3481
        %4234 = vmatpush1.msra.mxu0 %v3480
        %4235 = vmatprep.subr.mxu0 %v3497
        %4236 = vmatpush1.msra.mxu0 %v3496
        %4237 = vmatprep.subr.mxu0 %v3513
        %4238 = vmatpush1.msra.mxu0 %v3512
        %4239 = vmatprep.subr.mxu0 0.0
        %4240 = vmatpush1.msra.mxu0 0.0
        %4241 = vmatprep.subr.mxu0 0.0
        %4242 = vmatpush1.msra.mxu0 0.0
        %4243 = vmatprep.subr.mxu0 0.0
        %4244 = vmatpush1.msra.mxu0 0.0
        %4245 = vmatprep.subr.mxu0 0.0
        %4246 = vmatpush1.msra.mxu0 0.0
        %4247 = vmatprep.subr.mxu0 0.0
        %4248 = vmatpush1.msra.mxu0 0.0
        %4249 = vmatprep.subr.mxu0 0.0
        %4250 = vmatpush1.msra.mxu0 0.0
        %4251 = vmatprep.subr.mxu0 0.0
        %4252 = vmatpush1.msra.mxu0 0.0
        %4253 = vmatprep.subr.mxu0 0.0
        %4254 = vmatpush1.msra.mxu0 0.0
        %4255 = vmatprep.subr.mxu0 0.0
        %4256 = vmatpush1.msra.mxu0 0.0
        %4257 = vmatprep.subr.mxu0 0.0
        %4258 = vmatpush1.msra.mxu0 0.0
        %4259 = vmatprep.subr.mxu0 0.0
        %4260 = vmatpush1.msra.mxu0 0.0
        %4261 = vmatprep.subr.mxu0 0.0
        %4262 = vmatpush1.msra.mxu0 0.0
        %4263 = vmatprep.subr.mxu0 0.0
        %4264 = vmatpush1.msra.mxu0 0.0
        %4265 = vmatprep.subr.mxu0 0.0
        %4266 = vmatpush1.msra.mxu0 0.0
        %4267 = vmatprep.subr.mxu0 0.0
        %4268 = vmatpush1.msra.mxu0 0.0
        %4269 = vmatprep.subr.mxu0 0.0
        %4270 = vmatpush1.msra.mxu0 0.0
        %4271 = vmatprep.subr.mxu0 0.0
        %4272 = vmatpush1.msra.mxu0 0.0
        %4273 = vmatprep.subr.mxu0 0.0
        %4274 = vmatpush1.msra.mxu0 0.0
        %4275 = vmatprep.subr.mxu0 0.0
        %4276 = vmatpush1.msra.mxu0 0.0
        %4277 = vmatprep.subr.mxu0 0.0
        %4278 = vmatpush1.msra.mxu0 0.0
        %4279 = vmatprep.subr.mxu0 0.0
        %4280 = vmatpush1.msra.mxu0 0.0
        %4281 = vmatprep.subr.mxu0 0.0
        %4282 = vmatpush1.msra.mxu0 0.0
        %4283 = vmatprep.subr.mxu0 0.0
        %4284 = vmatpush1.msra.mxu0 0.0
        %4285 = vmatprep.subr.mxu0 0.0
        %4286 = vmatpush1.msra.mxu0 0.0
        %4287 = vmatprep.subr.mxu0 0.0
        %4288 = vmatpush1.msra.mxu0 0.0
        %4289 = vmatprep.subr.mxu0 0.0
        %4290 = vmatpush1.msra.mxu0 0.0
        %4291 = vmatprep.subr.mxu0 0.0
        %4292 = vmatpush1.msra.mxu0 0.0
        %4293 = vmatprep.subr.mxu0 0.0
        %4294 = vmatpush1.msra.mxu0 0.0
        %4295 = vmatprep.mubr.f32.mxu0 0.0
        %4296 = vmatmul.mubr.f32.gmra.mrb[0].mxu0 %v3552
        %v4297 = vpop.f32.mrb[0].mxu0
        %v4298 = vadd.f32 %v3529, %v4297
        %v4299 = vpop.f32.mrb[0].mxu0
        %v4300 = vadd.f32 %v3529, %v4299
        %4301 = vmatprep.mubr.f32.mxu0 0.0
        %4302 = vmatmul.mubr.f32.gmra.mrb[0].mxu0 %v3555
        %v4303 = vpop.f32.mrb[0].mxu0
        %v4304 = vadd.f32 %v3534, %v4303
        %v4305 = vpop.f32.mrb[0].mxu0
        %v4306 = vadd.f32 %v3534, %v4305
        %4307 = vmatprep.mubr.f32.mxu0 0.0
        %4308 = vmatmul.mubr.f32.gmra.mrb[0].mxu0 %v3558
        %v4309 = vpop.f32.mrb[0].mxu0
        %v4310 = vadd.f32 %v3539, %v4309
        %v4311 = vpop.f32.mrb[0].mxu0
        %v4312 = vadd.f32 %v3539, %v4311
        %4313 = vmatprep.mubr.f32.mxu0 0.0
        %4314 = vmatmul.mubr.f32.gmra.mrb[0].mxu0 %v3561
        %v4315 = vpop.f32.mrb[0].mxu0
        %v4316 = vadd.f32 %v3544, %v4315
        %v4317 = vpop.f32.mrb[0].mxu0
        %v4318 = vadd.f32 %v3544, %v4317
        %4319 = vmatprep.mubr.f32.mxu0 0.0
        %4320 = vmatmul.mubr.f32.gmra.mrb[0].mxu0 %v3564
        %v4321 = vpop.f32.mrb[0].mxu0
        %v4322 = vadd.f32 %v3549, %v4321
        %v4323 = vpop.f32.mrb[0].mxu0
        %v4324 = vadd.f32 %v3549, %v4323
        %4325 = vdwg.mxu0
        %v4342 = vcombine.low %v3657, %v3659
        %v4343 = vcombine.low %v3752, %v3754
        %v4344 = vcombine.low %v3847, %v3849
        %v4345 = vcombine.low %v3942, %v3944
        %v4347 = vunpack.c.l.s4 1966171168
        %v4348 = vunpack.c.0.s8 %v4347
        %v4349 = vlaneseq
        %v4350 = vshrl.u32 %v4349, 7
        %v4351 = vsub.s32 %v4348, %v4350
        %v4352 = vrot.slane %v4342, %v4351
        %v4354 = vunpack.c.l.s4 1966171168
        %v4355 = vunpack.c.0.s8 %v4354
        %v4356 = vlaneseq
        %v4357 = vshrl.u32 %v4356, 7
        %v4358 = vsub.s32 %v4355, %v4357
        %v4359 = vrot.slane %v4343, %v4358
        %v4361 = vunpack.c.l.s4 1966171168
        %v4362 = vunpack.c.0.s8 %v4361
        %v4363 = vlaneseq
        %v4364 = vshrl.u32 %v4363, 7
        %v4365 = vsub.s32 %v4362, %v4364
        %v4366 = vrot.slane %v4344, %v4365
        %v4368 = vunpack.c.l.s4 1966171168
        %v4369 = vunpack.c.0.s8 %v4368
        %v4370 = vlaneseq
        %v4371 = vshrl.u32 %v4370, 7
        %v4372 = vsub.s32 %v4369, %v4371
        %v4373 = vrot.slane %v4345, %v4372
        %v4374 = vcombine.low %v4352, %v4359
        %v4375 = vcombine.low %v4366, %v4373
        %v4377 = vunpack.c.l.s4 1966171168
        %v4378 = vunpack.c.0.s8 %v4377
        %v4379 = vlaneseq
        %v4380 = vshrl.u32 %v4379, 7
        %v4381 = vsub.s32 %v4378, %v4380
        %v4382 = vrot.slane %v4374, %v4381
        %v4384 = vunpack.c.l.s4 1966171168
        %v4385 = vunpack.c.0.s8 %v4384
        %v4386 = vlaneseq
        %v4387 = vshrl.u32 %v4386, 7
        %v4388 = vsub.s32 %v4385, %v4387
        %v4389 = vrot.slane %v4375, %v4388
        %v4390 = vcombine.low %v4382, %v4389
        %v4391 = vcombine.low %v4037, %v4039
        %v4392 = vcombine.low %v4132, %v4134
        %v4393 = vcombine.low %v4227, %v4229
        %v4394 = vcombine.low %v4322, %v4324
        %v4396 = vunpack.c.l.s4 1966171168
        %v4397 = vunpack.c.0.s8 %v4396
        %v4398 = vlaneseq
        %v4399 = vshrl.u32 %v4398, 7
        %v4400 = vsub.s32 %v4397, %v4399
        %v4401 = vrot.slane %v4391, %v4400
        %v4403 = vunpack.c.l.s4 1966171168
        %v4404 = vunpack.c.0.s8 %v4403
        %v4405 = vlaneseq
        %v4406 = vshrl.u32 %v4405, 7
        %v4407 = vsub.s32 %v4404, %v4406
        %v4408 = vrot.slane %v4392, %v4407
        %v4410 = vunpack.c.l.s4 1966171168
        %v4411 = vunpack.c.0.s8 %v4410
        %v4412 = vlaneseq
        %v4413 = vshrl.u32 %v4412, 7
        %v4414 = vsub.s32 %v4411, %v4413
        %v4415 = vrot.slane %v4393, %v4414
        %v4417 = vunpack.c.l.s4 1966171168
        %v4418 = vunpack.c.0.s8 %v4417
        %v4419 = vlaneseq
        %v4420 = vshrl.u32 %v4419, 7
        %v4421 = vsub.s32 %v4418, %v4420
        %v4422 = vrot.slane %v4394, %v4421
        %v4423 = vcombine.low %v4401, %v4408
        %v4424 = vcombine.low %v4415, %v4422
        %v4426 = vunpack.c.l.s4 1966171168
        %v4427 = vunpack.c.0.s8 %v4426
        %v4428 = vlaneseq
        %v4429 = vshrl.u32 %v4428, 7
        %v4430 = vsub.s32 %v4427, %v4429
        %v4431 = vrot.slane %v4423, %v4430
        %v4433 = vunpack.c.l.s4 1966171168
        %v4434 = vunpack.c.0.s8 %v4433
        %v4435 = vlaneseq
        %v4436 = vshrl.u32 %v4435, 7
        %v4437 = vsub.s32 %v4434, %v4436
        %v4438 = vrot.slane %v4424, %v4437
        %v4439 = vcombine.low %v4431, %v4438
        %4442 = vst [vmem:[%s195] sm:$0xff] %v4390
        %4443 = vst [vmem:[%s195 + $0x8] sm:$0xff] %v4439
        %v4444 = vmax.f32 %v3633, 0.0
        %v4445 = vmax.f32 %v3635, 0.0
        %v4446 = vmax.f32 %v3728, 0.0
        %v4447 = vmax.f32 %v3730, 0.0
        %v4448 = vmax.f32 %v3823, 0.0
        %v4449 = vmax.f32 %v3825, 0.0
        %v4450 = vmax.f32 %v3918, 0.0
        %v4451 = vmax.f32 %v3920, 0.0
        %v4452 = vmax.f32 %v4013, 0.0
        %v4453 = vmax.f32 %v4015, 0.0
        %v4454 = vmax.f32 %v4108, 0.0
        %v4455 = vmax.f32 %v4110, 0.0
        %v4456 = vmax.f32 %v4203, 0.0
        %v4457 = vmax.f32 %v4205, 0.0
        %v4458 = vmax.f32 %v4298, 0.0
        %v4459 = vmax.f32 %v4300, 0.0
        %v4460 = vmax.f32 %v3639, 0.0
        %v4461 = vmax.f32 %v3641, 0.0
        %v4462 = vmax.f32 %v3734, 0.0
        %v4463 = vmax.f32 %v3736, 0.0
        %v4464 = vmax.f32 %v3829, 0.0
        %v4465 = vmax.f32 %v3831, 0.0
        %v4466 = vmax.f32 %v3924, 0.0
        %v4467 = vmax.f32 %v3926, 0.0
        %v4468 = vmax.f32 %v4019, 0.0
        %v4469 = vmax.f32 %v4021, 0.0
        %v4470 = vmax.f32 %v4114, 0.0
        %v4471 = vmax.f32 %v4116, 0.0
        %v4472 = vmax.f32 %v4209, 0.0
        %v4473 = vmax.f32 %v4211, 0.0
        %v4474 = vmax.f32 %v4304, 0.0
        %v4475 = vmax.f32 %v4306, 0.0
        %v4476 = vmax.f32 %v3645, 0.0
        %v4477 = vmax.f32 %v3647, 0.0
        %v4478 = vmax.f32 %v3740, 0.0
        %v4479 = vmax.f32 %v3742, 0.0
        %v4480 = vmax.f32 %v3835, 0.0
        %v4481 = vmax.f32 %v3837, 0.0
        %v4482 = vmax.f32 %v3930, 0.0
        %v4483 = vmax.f32 %v3932, 0.0
        %v4484 = vmax.f32 %v4025, 0.0
        %v4485 = vmax.f32 %v4027, 0.0
        %v4486 = vmax.f32 %v4120, 0.0
        %v4487 = vmax.f32 %v4122, 0.0
        %v4488 = vmax.f32 %v4215, 0.0
        %v4489 = vmax.f32 %v4217, 0.0
        %v4490 = vmax.f32 %v4310, 0.0
        %v4491 = vmax.f32 %v4312, 0.0
        %v4492 = vmax.f32 %v3651, 0.0
        %v4493 = vmax.f32 %v3653, 0.0
        %v4494 = vmax.f32 %v3746, 0.0
        %v4495 = vmax.f32 %v3748, 0.0
        %v4496 = vmax.f32 %v3841, 0.0
        %v4497 = vmax.f32 %v3843, 0.0
        %v4498 = vmax.f32 %v3936, 0.0
        %v4499 = vmax.f32 %v3938, 0.0
        %v4500 = vmax.f32 %v4031, 0.0
        %v4501 = vmax.f32 %v4033, 0.0
        %v4502 = vmax.f32 %v4126, 0.0
        %v4503 = vmax.f32 %v4128, 0.0
        %v4504 = vmax.f32 %v4221, 0.0
        %v4505 = vmax.f32 %v4223, 0.0
        %v4506 = vmax.f32 %v4316, 0.0
        %v4507 = vmax.f32 %v4318, 0.0
        %4508 = vst [vmem:[%s202] sm:$0xff] %v4444
        %4509 = vst [vmem:[%s202 + $0x8] sm:$0xff] %v4445
        %4510 = vst [vmem:[%s202 + $0x10] sm:$0xff] %v4446
        %4511 = vst [vmem:[%s202 + $0x18] sm:$0xff] %v4447
        %4512 = vst [vmem:[%s202 + $0x20] sm:$0xff] %v4448
        %4513 = vst [vmem:[%s202 + $0x28] sm:$0xff] %v4449
        %4514 = vst [vmem:[%s202 + $0x30] sm:$0xff] %v4450
        %4515 = vst [vmem:[%s202 + $0x38] sm:$0xff] %v4451
        %4516 = vst [vmem:[%s202 + $0x40] sm:$0xff] %v4452
        %4517 = vst [vmem:[%s202 + $0x48] sm:$0xff] %v4453
        %4518 = vst [vmem:[%s202 + $0x50] sm:$0xff] %v4454
        %4519 = vst [vmem:[%s202 + $0x58] sm:$0xff] %v4455
        %4520 = vst [vmem:[%s202 + $0x60] sm:$0xff] %v4456
        %4521 = vst [vmem:[%s202 + $0x68] sm:$0xff] %v4457
        %4522 = vst [vmem:[%s202 + $0x70] sm:$0xff] %v4458
        %4523 = vst [vmem:[%s202 + $0x78] sm:$0xff] %v4459
        %4524 = vst [vmem:[%s202 + $0x80] sm:$0xff] %v4460
        %4525 = vst [vmem:[%s202 + $0x88] sm:$0xff] %v4461
        %4526 = vst [vmem:[%s202 + $0x90] sm:$0xff] %v4462
        %4527 = vst [vmem:[%s202 + $0x98] sm:$0xff] %v4463
        %4528 = vst [vmem:[%s202 + $0xa0] sm:$0xff] %v4464
        %4529 = vst [vmem:[%s202 + $0xa8] sm:$0xff] %v4465
        %4530 = vst [vmem:[%s202 + $0xb0] sm:$0xff] %v4466
        %4531 = vst [vmem:[%s202 + $0xb8] sm:$0xff] %v4467
        %4532 = vst [vmem:[%s202 + $0xc0] sm:$0xff] %v4468
        %4533 = vst [vmem:[%s202 + $0xc8] sm:$0xff] %v4469
        %4534 = vst [vmem:[%s202 + $0xd0] sm:$0xff] %v4470
        %4535 = vst [vmem:[%s202 + $0xd8] sm:$0xff] %v4471
        %4536 = vst [vmem:[%s202 + $0xe0] sm:$0xff] %v4472
        %4537 = vst [vmem:[%s202 + $0xe8] sm:$0xff] %v4473
        %4538 = vst [vmem:[%s202 + $0xf0] sm:$0xff] %v4474
        %4539 = vst [vmem:[%s202 + $0xf8] sm:$0xff] %v4475
        %4540 = vst [vmem:[%s202 + $0x100] sm:$0xff] %v4476
        %4541 = vst [vmem:[%s202 + $0x108] sm:$0xff] %v4477
        %4542 = vst [vmem:[%s202 + $0x110] sm:$0xff] %v4478
        %4543 = vst [vmem:[%s202 + $0x118] sm:$0xff] %v4479
        %4544 = vst [vmem:[%s202 + $0x120] sm:$0xff] %v4480
        %4545 = vst [vmem:[%s202 + $0x128] sm:$0xff] %v4481
        %4546 = vst [vmem:[%s202 + $0x130] sm:$0xff] %v4482
        %4547 = vst [vmem:[%s202 + $0x138] sm:$0xff] %v4483
        %4548 = vst [vmem:[%s202 + $0x140] sm:$0xff] %v4484
        %4549 = vst [vmem:[%s202 + $0x148] sm:$0xff] %v4485
        %4550 = vst [vmem:[%s202 + $0x150] sm:$0xff] %v4486
        %4551 = vst [vmem:[%s202 + $0x158] sm:$0xff] %v4487
        %4552 = vst [vmem:[%s202 + $0x160] sm:$0xff] %v4488
        %4553 = vst [vmem:[%s202 + $0x168] sm:$0xff] %v4489
        %4554 = vst [vmem:[%s202 + $0x170] sm:$0xff] %v4490
        %4555 = vst [vmem:[%s202 + $0x178] sm:$0xff] %v4491
        %4556 = vst [vmem:[%s202 + $0x180] sm:$0xff] %v4492
        %4557 = vst [vmem:[%s202 + $0x188] sm:$0xff] %v4493
        %4558 = vst [vmem:[%s202 + $0x190] sm:$0xff] %v4494
        %4559 = vst [vmem:[%s202 + $0x198] sm:$0xff] %v4495
        %4560 = vst [vmem:[%s202 + $0x1a0] sm:$0xff] %v4496
        %4561 = vst [vmem:[%s202 + $0x1a8] sm:$0xff] %v4497
        %4562 = vst [vmem:[%s202 + $0x1b0] sm:$0xff] %v4498
        %4563 = vst [vmem:[%s202 + $0x1b8] sm:$0xff] %v4499
        %4564 = vst [vmem:[%s202 + $0x1c0] sm:$0xff] %v4500
        %4565 = vst [vmem:[%s202 + $0x1c8] sm:$0xff] %v4501
        %4566 = vst [vmem:[%s202 + $0x1d0] sm:$0xff] %v4502
        %4567 = vst [vmem:[%s202 + $0x1d8] sm:$0xff] %v4503
        %4568 = vst [vmem:[%s202 + $0x1e0] sm:$0xff] %v4504
        %4569 = vst [vmem:[%s202 + $0x1e8] sm:$0xff] %v4505
        %4570 = vst [vmem:[%s202 + $0x1f0] sm:$0xff] %v4506
        %4571 = vst [vmem:[%s202 + $0x1f8] sm:$0xff] %v4507
        %s4572 = sand.u32 %s98, 1
        %s4573 = scalar_lea.sflag [#allocation3], %s4572
        %s4574 = sand.u32 %s98, 1
        %s4575 = smul.addr %s4574, 16
        %s4576 = scalar_lea.vmem [#allocation2], %s4575
        %s4577 = sand.u32 %s124, 1
        %s4578 = scalar_lea.sflag [#allocation5], %s4577
        %s4579 = sand.u32 %s124, 1
        %s4580 = smul.addr %s4579, 512
        %s4581 = scalar_lea.vmem [#allocation4], %s4580
        // Predicated region
        $region33: #{mlp_sdf_forward.1} parent=31 // pred_check
          %p4582 = pneg %p108
        $region34: #{mlp_sdf_forward.1} parent=31 // pred_check_branch
          %4584 = sbr.rel (%p4582) target = $region36
        $region35: #{mlp_sdf_forward.1} parent=31 // pred_region
          %s4585 = smul.u32 16, %s22
          %s4587 = ssub.s32 256, 256
          %4588 = vsyncadd %s4573, %s4587
          %s4589 = smul.addr %s4585, 16
          %s4590 = scalar_lea.hbm %s3, %s4589
          %s4592 = sshll.u32 %s4576, 4
          %s4593 = int_to_ptr.vmem [resolvable:$true] %s4592
          %4595 = dma.vmem_to_hbm [thread:$0]  %s4593, 256, %s4590, %s4573
        $region36: #{mlp_sdf_forward.1} parent=31 // pred_fallthru
          _
        // Predicated region
        $region37: #{mlp_sdf_forward.1} parent=31 // pred_check
          %p4596 = pneg %p134
        $region38: #{mlp_sdf_forward.1} parent=31 // pred_check_branch
          %4598 = sbr.rel (%p4596) target = $region40
        $region39: #{mlp_sdf_forward.1} parent=31 // pred_region
          %s4599 = smul.u32 16, %s22
          %s4601 = ssub.s32 8192, 8192
          %4602 = vsyncadd %s4578, %s4601
          %s4603 = smul.addr %s4599, 128
          %s4604 = scalar_lea.hbm %s4, %s4603
          %s4605 = sshll.u32 %s4581, 4
          %s4606 = int_to_ptr.vmem [resolvable:$true] %s4605
          %4611 = dma.vmem_to_hbm [thread:$0]  %s4606, 8192, %s4604, %s4578, 2048, 8192, 128
        $region40: #{mlp_sdf_forward.1} parent=31 // pred_fallthru
          _
      $region32: #{mlp_sdf_forward.1} parent=5 // pred_fallthru
        _
      %p4612 = scmp.le.s32.totalorder 2, %s17
      // Predicated region
      $region41: #{mlp_sdf_forward.1} parent=5 // pred_check
        %p4613 = pneg %p4612
      $region42: #{mlp_sdf_forward.1} parent=5 // pred_check_branch
        %4615 = sbr.rel (%p4613) target = $region44
      $region43: #{mlp_sdf_forward.1} parent=5 // pred_region
        %s4616 = ssub.s32 %s17, 2
        // Predicated region
        $region45: #{mlp_sdf_forward.1} parent=43 // pred_check
          %p4617 = pneg %p114
        $region46: #{mlp_sdf_forward.1} parent=43 // pred_check_branch
          %4619 = sbr.rel (%p4617) target = $region48
        $region47: #{mlp_sdf_forward.1} parent=43 // pred_region
          %s4620 = sand.u32 %s99, 1
          %s4621 = scalar_lea.sflag [#allocation3], %s4620
          %s4622 = sand.u32 %s99, 1
          %s4623 = smul.addr %s4622, 16
          %s4624 = scalar_lea.vmem [#allocation2], %s4623
          %4625 = dma.done %s4621, 256
        $region48: #{mlp_sdf_forward.1} parent=43 // pred_fallthru
          _
        // Predicated region
        $region49: #{mlp_sdf_forward.1} parent=43 // pred_check
          %p4626 = pneg %p140
        $region50: #{mlp_sdf_forward.1} parent=43 // pred_check_branch
          %4628 = sbr.rel (%p4626) target = $region52
        $region51: #{mlp_sdf_forward.1} parent=43 // pred_region
          %s4629 = sand.u32 %s125, 1
          %s4630 = scalar_lea.sflag [#allocation5], %s4629
          %s4631 = sand.u32 %s125, 1
          %s4632 = smul.addr %s4631, 512
          %s4633 = scalar_lea.vmem [#allocation4], %s4632
          %4634 = dma.done %s4630, 8192
        $region52: #{mlp_sdf_forward.1} parent=43 // pred_fallthru
          _
      $region44: #{mlp_sdf_forward.1} parent=5 // pred_fallthru
        _
    $region6: #{mlp_sdf_forward.1} parent=1 // loop_footer
      %s21 = sadd.s32 1, %s17
    $region7: #{mlp_sdf_forward.1} parent=1 // loop_footer_branch
      %16 = sbr.rel target = $region3
    $region8: #{mlp_sdf_forward.1} parent=1 // loop_exit
      _
    %4635 = vsyncpa [#allocation3], 1
    %s4636 = scalar_lea.sflag [#allocation3], 1
    %4637 = vsyncpa %s4636, 1
    %4638 = vsyncpa [#allocation5], 1
    %s4639 = scalar_lea.sflag [#allocation5], 1
    %4640 = vsyncpa %s4639, 1

</llo_original>
